<compile_context>
chip_gen: v7x
topology: tpu7x:2x2x1
jax: 0.10.0
libtpu: 0.0.40
codegen_flags: <defaults>
</compile_context>

<pallas_src>
import numpy as np
import jax
import jax.numpy as jnp
from jax.experimental import pallas as pl
from jax.experimental.pallas import tpu as pltpu

INPUT_SIZE = 784
HIDDEN = [512, 256]
NUM_CLASSES = 10
OUT_PAD = 128          # classifier output padded to one full 128-lane vreg
TWO_PI = 2.0 * np.pi
BN_EPS = 1e-5


# ----------------------------- parameter init ------------------------------

def _frequencies(output_size, base_freq, max_freq):
    return jnp.asarray(
        [min(base_freq * (i + 1), max_freq) for i in range(output_size)],
        dtype=jnp.float32,
    )


def _harmonic_linear_init(key, in_size, out_size, base_freq, max_freq):
    """Replicates HarmonicLayer.__init__ weight/bias init deterministically."""
    freqs = _frequencies(out_size, base_freq, max_freq)
    freq_scale = 1.0 / jnp.sqrt(freqs)
    freq_scale = freq_scale / jnp.mean(freq_scale)
    bound = 1.0 / np.sqrt(in_size)
    kw, kb = jax.random.split(key)
    # PyTorch weight is (out, in); we store transposed (in, out) for x @ W.
    w = jax.random.uniform(kw, (out_size, in_size), jnp.float32, -bound, bound)
    w = w * freq_scale[:, None]
    b = jax.random.uniform(kb, (out_size,), jnp.float32, -bound, bound)
    b = b * freq_scale
    return w.T, b, freqs


def make_params(key):
    """Module-faithful (f32, unfolded) parameters."""
    k1, k2, k3 = jax.random.split(key, 3)

    w1, b1, f1 = _harmonic_linear_init(k1, INPUT_SIZE, HIDDEN[0], 1.0, 5.0)
    w2, b2, f2 = _harmonic_linear_init(k2, HIDDEN[0], HIDDEN[1], 1.0, 3.0)

    # BatchNorm1d eval-mode affine at PyTorch defaults
    # (weight=1, bias=0, running_mean=0, running_var=1, eps=1e-5):
    #   scale = gamma / sqrt(var + eps), shift = beta - mean * scale
    bn1_scale = jnp.full((HIDDEN[0],), 1.0 / np.sqrt(1.0 + BN_EPS), jnp.float32)
    bn1_shift = jnp.zeros((HIDDEN[0],), jnp.float32)
    bn2_scale = jnp.full((HIDDEN[1],), 1.0 / np.sqrt(1.0 + BN_EPS), jnp.float32)
    bn2_shift = jnp.zeros((HIDDEN[1],), jnp.float32)
    # TODO(synk): training-mode BatchNorm (batch statistics) and Dropout are not
    # implemented; this kernel reproduces eval()-mode forward semantics.

    bound = 1.0 / np.sqrt(HIDDEN[1])
    kw, kb = jax.random.split(k3)
    w3 = jax.random.uniform(kw, (NUM_CLASSES, HIDDEN[1]), jnp.float32, -bound, bound).T
    b3 = jax.random.uniform(kb, (NUM_CLASSES,), jnp.float32, -bound, bound)

    return (w1, b1, f1, bn1_scale, bn1_shift,
            w2, b2, f2, bn2_scale, bn2_shift,
            w3, b3)


def prepare_kernel_params(params):
    """Fold BN affines into the following linears, pad classifier lanes,
    and cast weights to bf16."""
    (w1, b1, f1, s1, t1, w2, b2, f2, s2, t2, w3, b3) = params
    bf = jnp.bfloat16

    # Exact algebraic fold of the eval-mode BatchNorm affine (y*s + t) into the
    # next linear:  (y*s + t) @ W + b == y @ (s[:,None]*W) + (t @ W + b).
    w2f = s1[:, None] * w2
    b2f = t1 @ w2 + b2
    w3f = s2[:, None] * w3
    b3f = t2 @ w3 + b3

    # Pad classifier lanes 10 -> 128 (lane-dense stores); zero columns are inert.
    w3p = jnp.pad(w3f, ((0, 0), (0, OUT_PAD - NUM_CLASSES)))
    b3p = jnp.pad(b3f, (0, OUT_PAD - NUM_CLASSES))

    # sin(2*pi*y/f) == sin(y * (2*pi/f)); precompute the per-feature scale.
    c1 = TWO_PI / f1
    c2 = TWO_PI / f2

    row = lambda v: v.reshape(1, -1).astype(jnp.float32)
    return (w1.astype(bf), row(b1), row(c1),
            w2f.astype(bf), row(b2f), row(c2),
            w3p.astype(bf), row(b3p))


# --------------------------------- kernel ----------------------------------

def harmonic_mlp_kernel(
    x_ref,                       # (bm, 784)          f32
    w1_ref, b1_ref, c1_ref,      # (784, 512) bf16, (1,512) f32, (1,512) f32
    w2_ref, b2_ref, c2_ref,      # (512, 256) bf16, (1,256) f32, (1,256) f32
    w3_ref, b3_ref,              # (256, 128) bf16, (1,128) f32
    o_ref,                       # (bm, 128)  f32
):
    # In-kernel f32 -> bf16 cast of the activations: one VPU pass hidden under
    # the matmul; avoids a separate wrapper-side pad/cast HBM pass.
    xb = x_ref[...].astype(jnp.bfloat16)

    # ---- HarmonicLayer 1 (784 -> 512): bf16 MXU inputs, f32 accumulation ----
    h = jnp.dot(xb, w1_ref[...],
                preferred_element_type=jnp.float32) + b1_ref[...]
    a1 = jnp.sin(h * c1_ref[...]) + 0.1 * h            # f32 epilogue (v5e-safe)

    # ---- HarmonicLayer 2 (512 -> 256), BN1 pre-folded into w2/b2 ----
    g = jnp.dot(a1.astype(jnp.bfloat16), w2_ref[...],
                preferred_element_type=jnp.float32) + b2_ref[...]
    a2 = jnp.sin(g * c2_ref[...]) + 0.1 * g

    # ---- classifier (256 -> 128 padded lanes), BN2 pre-folded into w3/b3 ----
    o_ref[...] = jnp.dot(a2.astype(jnp.bfloat16), w3_ref[...],
                         preferred_element_type=jnp.float32) + b3_ref[...]


def _choose_bm(batch, *, max_bm=512, target_steps=4):
    """Batch-tile selection:
      * aim for >= target_steps grid steps (>= 2 per TensorCore on v7x, and
        enough steps on v5e/v6e to overlap the next x-tile DMA with compute),
      * round to a multiple of 16 (sublane-friendly for f32 and bf16 tiles),
      * cap at max_bm=512 so the double-buffered x/out tiles + f32 a1/a2
        intermediates (~6-7 MB) stay well under v5e's 16 MiB scoped-VMEM
        default (v6e/v7x have 32 MiB).  Push vmem_limit_bytes only if raising
        max_bm beyond ~1024.
    """
    bm = -(-batch // target_steps)        # cdiv(batch, target_steps)
    bm = -(-bm // 16) * 16                # round up to a multiple of 16
    return max(16, min(max_bm, bm))


def harmonic_mlp_forward(x, kparams, *, bm=None):
    """x: (B, 784) f32.  Returns (B, NUM_CLASSES) f32 logits."""
    (w1, b1, c1, w2, b2, c2, w3, b3) = kparams
    B, F = x.shape
    assert F == INPUT_SIZE

    if bm is None:
        bm = _choose_bm(B)
    b_pad = -(-B // bm) * bm                       # round batch up to bm multiple

    # Only pad when the batch is ragged; padded rows are zeros (no NaN hazard)
    # and are sliced off below.  No dtype cast and no K padding here -- x goes
    # to the kernel as-is.
    if b_pad != B:
        x = jnp.pad(x, ((0, b_pad - B), (0, 0)))

    # Constant (grid-invariant) operands: single-buffered -- the second
    # pipeline buffer would be dead VMEM since their block index never changes.
    const = lambda shape: pl.BlockSpec(shape, lambda i: (0, 0),
                                       pipeline_mode=pl.Buffered(1))

    out = pl.pallas_call(
        harmonic_mlp_kernel,
        out_shape=jax.ShapeDtypeStruct((b_pad, OUT_PAD), jnp.float32),
        grid_spec=pltpu.PrefetchScalarGridSpec(
            num_scalar_prefetch=0,
            grid=(b_pad // bm,),
            in_specs=[
                pl.BlockSpec((bm, INPUT_SIZE), lambda i: (i, 0)),  # x tile (f32, full 784 last dim)
                const((INPUT_SIZE, HIDDEN[0])),                    # w1
                const((1, HIDDEN[0])),                             # b1
                const((1, HIDDEN[0])),                             # 2*pi/f1
                const((HIDDEN[0], HIDDEN[1])),                     # w2 (BN1 folded)
                const((1, HIDDEN[1])),                             # b2 (BN1 folded)
                const((1, HIDDEN[1])),                             # 2*pi/f2
                const((HIDDEN[1], OUT_PAD)),                       # w3 (BN2 folded, lane-padded)
                const((1, OUT_PAD)),                               # b3 (lane-padded)
            ],
            out_specs=pl.BlockSpec((bm, OUT_PAD), lambda i: (i, 0)),
        ),
        compiler_params=pltpu.CompilerParams(
            dimension_semantics=("parallel",),   # shard batch steps across TCs
        ),
    )(x, w1, b1, c1, w2, b2, c2, w3, b3)

    return out[:B, :NUM_CLASSES]


# ------------------------------- references --------------------------------

def reference_forward(x, params):
    """Pure-JAX f32 reference of the eval-mode PyTorch forward pass."""
    (w1, b1, f1, s1, t1, w2, b2, f2, s2, t2, w3, b3) = params
    h = x @ w1 + b1
    h = jnp.sin(TWO_PI * h / f1) + 0.1 * h
    h = h * s1 + t1
    g = h @ w2 + b2
    g = jnp.sin(TWO_PI * g / f2) + 0.1 * g
    g = g * s2 + t2
    return g @ w3 + b3


def reference_forward_bf16(x, params):
    """Reference mirroring the kernel's numerics (folded BN, bf16 dot inputs,
    f32 accumulation) for a tight structural check."""
    (w1, b1, f1, s1, t1, w2, b2, f2, s2, t2, w3, b3) = params
    bf = jnp.bfloat16
    w2f = s1[:, None] * w2
    b2f = t1 @ w2 + b2
    w3f = s2[:, None] * w3
    b3f = t2 @ w3 + b3
    h = jnp.dot(x.astype(bf), w1.astype(bf),
                preferred_element_type=jnp.float32) + b1
    a1 = jnp.sin((TWO_PI / f1) * h) + 0.1 * h
    g = jnp.dot(a1.astype(bf), w2f.astype(bf),
                preferred_element_type=jnp.float32) + b2f
    a2 = jnp.sin((TWO_PI / f2) * g) + 0.1 * g
    return jnp.dot(a2.astype(bf), w3f.astype(bf),
                   preferred_element_type=jnp.float32) + b3f


# ---------------------------------- main ------------------------------------

if __name__ == "__main__":
    key = jax.random.PRNGKey(0)
    kp, kx = jax.random.split(key)

    params = make_params(kp)
    kparams = prepare_kernel_params(params)

    # MNIST-like input (B, 1, 28, 28) flattened to (B, 784).  B=36 keeps the
    # example small while exercising both the ragged-batch padding path
    # (36 -> 48 rows at the auto-chosen bm=16) and a multi-step parallel grid.
    B = 36
    x_img = jax.random.normal(kx, (B, 1, 28, 28), jnp.float32)
    x = x_img.reshape(B, -1)

    out = jax.block_until_ready(harmonic_mlp_forward(x, kparams))
    assert out.shape == (B, NUM_CLASSES)

    # Tight check vs. a reference that mirrors the kernel numerics exactly.
    ref_mirror = reference_forward_bf16(x, params)
    np.testing.assert_allclose(np.asarray(out), np.asarray(ref_mirror),
                               rtol=5e-3, atol=5e-3)

    # Semantic check vs. the pure-f32 eval-mode module forward; looser
    # tolerance only because the kernel feeds bf16 into the MXU.
    ref_f32 = reference_forward(x, params)
    np.testing.assert_allclose(np.asarray(out), np.asarray(ref_f32),
                               rtol=6e-2, atol=6e-2)

    print("KERNEL_OK")
</pallas_src>

<mosaic_0001>
module attributes {stable_mosaic.version = 11 : i64} {
  func.func @harmonic_mlp_kernel(%arg0: i32, %arg1: memref<16x784xf32, #tpu.memory_space<vmem>>, %arg2: memref<784x512xbf16, #tpu.memory_space<vmem>>, %arg3: memref<1x512xf32, #tpu.memory_space<vmem>>, %arg4: memref<1x512xf32, #tpu.memory_space<vmem>>, %arg5: memref<512x256xbf16, #tpu.memory_space<vmem>>, %arg6: memref<1x256xf32, #tpu.memory_space<vmem>>, %arg7: memref<1x256xf32, #tpu.memory_space<vmem>>, %arg8: memref<256x128xbf16, #tpu.memory_space<vmem>>, %arg9: memref<1x128xf32, #tpu.memory_space<vmem>>, %arg10: memref<16x128xf32, #tpu.memory_space<vmem>>) attributes {dimension_semantics = [#tpu.dimension_semantics<parallel>], iteration_bounds = array<i64: 3>, scalar_prefetch = 0 : i64, scratch_operands = 0 : i64, tpu.core_type = #tpu.core_type<tc>, window_params = [{transform_indices = @transform_0, window_bounds = array<i64: 16, 784>}, {pipeline_mode = #tpu.pipeline_mode<synchronous>, transform_indices = @transform_1, window_bounds = array<i64: 784, 512>}, {pipeline_mode = #tpu.pipeline_mode<synchronous>, transform_indices = @transform_2, window_bounds = array<i64: 1, 512>}, {pipeline_mode = #tpu.pipeline_mode<synchronous>, transform_indices = @transform_3, window_bounds = array<i64: 1, 512>}, {pipeline_mode = #tpu.pipeline_mode<synchronous>, transform_indices = @transform_4, window_bounds = array<i64: 512, 256>}, {pipeline_mode = #tpu.pipeline_mode<synchronous>, transform_indices = @transform_5, window_bounds = array<i64: 1, 256>}, {pipeline_mode = #tpu.pipeline_mode<synchronous>, transform_indices = @transform_6, window_bounds = array<i64: 1, 256>}, {pipeline_mode = #tpu.pipeline_mode<synchronous>, transform_indices = @transform_7, window_bounds = array<i64: 256, 128>}, {pipeline_mode = #tpu.pipeline_mode<synchronous>, transform_indices = @transform_8, window_bounds = array<i64: 1, 128>}, {transform_indices = @transform_9, window_bounds = array<i64: 16, 128>}]} {
    %c0 = arith.constant 0 : index
    %c0_0 = arith.constant 0 : index
    %0 = vector.load %arg1[%c0, %c0_0] : memref<16x784xf32, #tpu.memory_space<vmem>>, vector<16x784xf32>
    %1 = arith.truncf %0 : vector<16x784xf32> to vector<16x784xbf16>
    %c0_1 = arith.constant 0 : index
    %c0_2 = arith.constant 0 : index
    %2 = vector.load %arg2[%c0_1, %c0_2] : memref<784x512xbf16, #tpu.memory_space<vmem>>, vector<784x512xbf16>
    %cst = arith.constant dense<0.000000e+00> : vector<16x512xf32>
    %3 = tpu.matmul %1, %2, %cst {dimension_numbers = #tpu.dot_dimension_numbers<[1], [0], [0], [1], [0, 0, 1, 1], [], []>} : vector<16x784xbf16>, vector<784x512xbf16>, vector<16x512xf32> -> vector<16x512xf32>
    %c0_3 = arith.constant 0 : index
    %c0_4 = arith.constant 0 : index
    %4 = vector.load %arg3[%c0_3, %c0_4] : memref<1x512xf32, #tpu.memory_space<vmem>>, vector<1x512xf32>
    %5 = vector.broadcast %4 : vector<1x512xf32> to vector<16x512xf32>
    %6 = arith.addf %3, %5 : vector<16x512xf32>
    %c0_5 = arith.constant 0 : index
    %c0_6 = arith.constant 0 : index
    %7 = vector.load %arg4[%c0_5, %c0_6] : memref<1x512xf32, #tpu.memory_space<vmem>>, vector<1x512xf32>
    %8 = vector.broadcast %7 : vector<1x512xf32> to vector<16x512xf32>
    %9 = arith.mulf %6, %8 : vector<16x512xf32>
    %10 = math.sin %9 : vector<16x512xf32>
    %cst_7 = arith.constant 1.000000e-01 : f32
    %11 = vector.broadcast %cst_7 : f32 to vector<16x512xf32>
    %12 = arith.mulf %11, %6 : vector<16x512xf32>
    %13 = arith.addf %10, %12 : vector<16x512xf32>
    %14 = arith.truncf %13 : vector<16x512xf32> to vector<16x512xbf16>
    %c0_8 = arith.constant 0 : index
    %c0_9 = arith.constant 0 : index
    %15 = vector.load %arg5[%c0_8, %c0_9] : memref<512x256xbf16, #tpu.memory_space<vmem>>, vector<512x256xbf16>
    %cst_10 = arith.constant dense<0.000000e+00> : vector<16x256xf32>
    %16 = tpu.matmul %14, %15, %cst_10 {dimension_numbers = #tpu.dot_dimension_numbers<[1], [0], [0], [1], [0, 0, 1, 1], [], []>} : vector<16x512xbf16>, vector<512x256xbf16>, vector<16x256xf32> -> vector<16x256xf32>
    %c0_11 = arith.constant 0 : index
    %c0_12 = arith.constant 0 : index
    %17 = vector.load %arg6[%c0_11, %c0_12] : memref<1x256xf32, #tpu.memory_space<vmem>>, vector<1x256xf32>
    %18 = vector.broadcast %17 : vector<1x256xf32> to vector<16x256xf32>
    %19 = arith.addf %16, %18 : vector<16x256xf32>
    %c0_13 = arith.constant 0 : index
    %c0_14 = arith.constant 0 : index
    %20 = vector.load %arg7[%c0_13, %c0_14] : memref<1x256xf32, #tpu.memory_space<vmem>>, vector<1x256xf32>
    %21 = vector.broadcast %20 : vector<1x256xf32> to vector<16x256xf32>
    %22 = arith.mulf %19, %21 : vector<16x256xf32>
    %23 = math.sin %22 : vector<16x256xf32>
    %cst_15 = arith.constant 1.000000e-01 : f32
    %24 = vector.broadcast %cst_15 : f32 to vector<16x256xf32>
    %25 = arith.mulf %24, %19 : vector<16x256xf32>
    %26 = arith.addf %23, %25 : vector<16x256xf32>
    %27 = arith.truncf %26 : vector<16x256xf32> to vector<16x256xbf16>
    %c0_16 = arith.constant 0 : index
    %c0_17 = arith.constant 0 : index
    %28 = vector.load %arg8[%c0_16, %c0_17] : memref<256x128xbf16, #tpu.memory_space<vmem>>, vector<256x128xbf16>
    %cst_18 = arith.constant dense<0.000000e+00> : vector<16x128xf32>
    %29 = tpu.matmul %27, %28, %cst_18 {dimension_numbers = #tpu.dot_dimension_numbers<[1], [0], [0], [1], [0, 0, 1, 1], [], []>} : vector<16x256xbf16>, vector<256x128xbf16>, vector<16x128xf32> -> vector<16x128xf32>
    %c0_19 = arith.constant 0 : index
    %c0_20 = arith.constant 0 : index
    %30 = vector.load %arg9[%c0_19, %c0_20] : memref<1x128xf32, #tpu.memory_space<vmem>>, vector<1x128xf32>
    %31 = vector.broadcast %30 : vector<1x128xf32> to vector<16x128xf32>
    %32 = arith.addf %29, %31 : vector<16x128xf32>
    %c0_21 = arith.constant 0 : index
    %c0_22 = arith.constant 0 : index
    %33 = vector.load %arg10[%c0_21, %c0_22] : memref<16x128xf32, #tpu.memory_space<vmem>>, vector<16x128xf32>
    tpu.vector_store %arg10[%c0_21, %c0_22], %32 {strides = array<i32>} : memref<16x128xf32, #tpu.memory_space<vmem>>, vector<16x128xf32>,
    return
  }
  func.func @transform_0(%arg0: i32) -> (i32, i32) {
    %c0_i32 = arith.constant 0 : i32
    %c0_i32_0 = arith.constant 0 : i32
    return %arg0, %c0_i32 : i32, i32
  }
  func.func @transform_1(%arg0: i32) -> (i32, i32) {
    %c0_i32 = arith.constant 0 : i32
    %c0_i32_0 = arith.constant 0 : i32
    %c0_i32_1 = arith.constant 0 : i32
    return %c0_i32, %c0_i32_0 : i32, i32
  }
  func.func @transform_2(%arg0: i32) -> (i32, i32) {
    %c0_i32 = arith.constant 0 : i32
    %c0_i32_0 = arith.constant 0 : i32
    %c0_i32_1 = arith.constant 0 : i32
    return %c0_i32, %c0_i32_0 : i32, i32
  }
  func.func @transform_3(%arg0: i32) -> (i32, i32) {
    %c0_i32 = arith.constant 0 : i32
    %c0_i32_0 = arith.constant 0 : i32
    %c0_i32_1 = arith.constant 0 : i32
    return %c0_i32, %c0_i32_0 : i32, i32
  }
  func.func @transform_4(%arg0: i32) -> (i32, i32) {
    %c0_i32 = arith.constant 0 : i32
    %c0_i32_0 = arith.constant 0 : i32
    %c0_i32_1 = arith.constant 0 : i32
    return %c0_i32, %c0_i32_0 : i32, i32
  }
  func.func @transform_5(%arg0: i32) -> (i32, i32) {
    %c0_i32 = arith.constant 0 : i32
    %c0_i32_0 = arith.constant 0 : i32
    %c0_i32_1 = arith.constant 0 : i32
    return %c0_i32, %c0_i32_0 : i32, i32
  }
  func.func @transform_6(%arg0: i32) -> (i32, i32) {
    %c0_i32 = arith.constant 0 : i32
    %c0_i32_0 = arith.constant 0 : i32
    %c0_i32_1 = arith.constant 0 : i32
    return %c0_i32, %c0_i32_0 : i32, i32
  }
  func.func @transform_7(%arg0: i32) -> (i32, i32) {
    %c0_i32 = arith.constant 0 : i32
    %c0_i32_0 = arith.constant 0 : i32
    %c0_i32_1 = arith.constant 0 : i32
    return %c0_i32, %c0_i32_0 : i32, i32
  }
  func.func @transform_8(%arg0: i32) -> (i32, i32) {
    %c0_i32 = arith.constant 0 : i32
    %c0_i32_0 = arith.constant 0 : i32
    %c0_i32_1 = arith.constant 0 : i32
    return %c0_i32, %c0_i32_0 : i32, i32
  }
  func.func @transform_9(%arg0: i32) -> (i32, i32) {
    %c0_i32 = arith.constant 0 : i32
    %c0_i32_0 = arith.constant 0 : i32
    return %arg0, %c0_i32 : i32, i32
  }
}

</mosaic_0001>

<llo_original>
// kernel: tpu_custom_call.1
$region0: #{tpu_custom_call.1}
  #allocation0 [shape = 'u32[]', space=smem, size = 0x4, offset = 0x4, fixed_abs, tag = 'smem constant byte address 0x4 - core index']
  #allocation1 [shape = 'u32[144,128]{1,0:T(1,128)}', space=vmem, size = 0x12000, scoped, tag = 'internal scratch']
  %s0 = inlined_call_operand.hbm [shape: f32[48,784], index: 0, kind: input, shape index: {}]
  %s1 = inlined_call_operand.hbm [shape: bf16[784,512], index: 1, kind: input, shape index: {}]
  %s2 = inlined_call_operand.vmem [shape: f32[1,512], index: 2, kind: input, shape index: {}]
  %s3 = inlined_call_operand.vmem [shape: f32[1,512], index: 3, kind: input, shape index: {}]
  %s4 = inlined_call_operand.hbm [shape: bf16[512,256], index: 4, kind: input, shape index: {}]
  %s5 = inlined_call_operand.vmem [shape: f32[1,256], index: 5, kind: input, shape index: {}]
  %s6 = inlined_call_operand.vmem [shape: f32[1,256], index: 6, kind: input, shape index: {}]
  %s7 = inlined_call_operand.hbm [shape: bf16[256,128], index: 7, kind: input, shape index: {}]
  %s8 = inlined_call_operand.vmem [shape: f32[1,128], index: 8, kind: input, shape index: {}]
  %s9 = inlined_call_operand.hbm [shape: f32[48,128], index: 9, kind: output, shape index: {}]
  %s10 = sld [smem:[#allocation0]]
  $region85: #{tpu_custom_call.1} parent=0
    _
  %s12 = ssub.s32 1, %s10
  %s13 = scalar_select 0, %s12, %s10
  $region1: #{tpu_custom_call.1} parent=0
    #allocation2 [shape = 'u8[114688]{0}', space=vmem, size = 0x1c000, scoped, tag = 'input window, operand 0']
    #allocation3 [shape = 's32[2]{0}', space=sflag, size = 0x8, scoped, tag = 'scoped memory for tpu_custom_call.1']
    #allocation4 [shape = 's32[2]{0}', space=sflag, size = 0x8, scoped, tag = 'scoped memory for tpu_custom_call.1']
    #allocation5 [shape = 'u8[802816]{0}', space=vmem, size = 0xc4000, scoped, tag = 'input window, operand 1, single buffered']
    #allocation6 [shape = 's32[1]{0}', space=sflag, size = 0x4, scoped, tag = 'scoped memory for tpu_custom_call.1']
    #allocation7 [shape = 'u8[262144]{0}', space=vmem, size = 0x40000, scoped, tag = 'input window, operand 4, single buffered']
    #allocation8 [shape = 'u8[65536]{0}', space=vmem, size = 0x10000, scoped, tag = 'input window, operand 7, single buffered']
    #allocation9 [shape = 's32[1]{0}', space=sflag, size = 0x4, scoped, tag = 'scoped memory for tpu_custom_call.1']
    #allocation10 [shape = 'u8[16384]{0}', space=vmem, size = 0x4000, scoped, tag = 'output window, operand 0']
    %14 = vsyncpa [#allocation3], 0
    %s15 = scalar_lea.sflag [#allocation3], 1
    %16 = vsyncpa %s15, 0
    %17 = vsyncpa [#allocation6], 0
    %18 = vsyncpa [#allocation9], 0
    %19 = vsyncpa [#allocation4], 0
    %s20 = scalar_lea.sflag [#allocation4], 1
    %21 = vsyncpa %s20, 0
    loop: start=0, step=1, limit=5
    $region2: #{tpu_custom_call.1} parent=1 // loop_pre_header
      _
    $region3: #{tpu_custom_call.1} parent=1 // loop_header
      %s23 = sphi 0, %s27
      %p24 = scmp.ge.s32.totalorder %s23, 5
      %s33 = sphi 0, %s35
      %s36 = sphi 0, %s33
      %s37 = sphi 0, %s36
      %s53 = sphi 0, %s37
      %s57 = sphi 0, %s57
      %s59 = sphi 0, %s57
      %s60 = sphi 0, %s59
      %s74 = sphi 0, %s60
      %s78 = sphi 0, %s78
      %s80 = sphi 0, %s78
      %s81 = sphi 0, %s80
      %s95 = sphi 0, %s81
      %s99 = sphi 0, %s99
      %s101 = sphi 0, %s99
      %s102 = sphi 0, %s101
      %s116 = sphi 0, %s102
      %s120 = sphi 0, %s120
      %s122 = sphi 0, %s120
      %s123 = sphi 0, %s122
      %s137 = sphi 0, %s123
      %s141 = sphi 0, %s141
      %s143 = sphi 0, %s141
      %s144 = sphi 0, %s143
      %s158 = sphi 0, %s144
      %s162 = sphi 0, %s162
      %s164 = sphi 0, %s162
      %s165 = sphi 0, %s164
      %s179 = sphi 0, %s165
      %s183 = sphi 0, %s183
      %s185 = sphi 0, %s183
      %s186 = sphi 0, %s185
      %s200 = sphi 0, %s186
      %s204 = sphi 0, %s204
      %s206 = sphi 0, %s204
      %s207 = sphi 0, %s206
      %s221 = sphi 0, %s207
      %s227 = sphi 0, %s229
      %s230 = sphi 0, %s227
      %s231 = sphi 0, %s230
      %s247 = sphi 0, %s231
    $region4: #{tpu_custom_call.1} parent=1 // loop_header_branch
      %26 = sbr.rel (%p24) target = $region8
    $region5: #{tpu_custom_call.1} parent=1 // loop_body
      %s28 = ssub.s32 %s23, 1
      %s29 = ssub.s32 %s23, 2
      %s30 = sadd.s32 %s23, 1
      %s31 = ssub.s32 %s23, %s30
      %p32 = scmp.eq.s32.totalorder %s31, 0
      %s34 = sadd.s32 %s33, 1
      %s35 = scalar_select %p32, %s33, %s34
      %p38 = pneg %p32
      %p39 = scmp.eq.s32.totalorder %s23, 2
      %p40 = por %p38, %p39
      %p41 = scmp.ne.s32.totalorder %s33, %s36
      %p42 = scmp.eq.s32.totalorder %s23, 0
      %p43 = por %p41, %p42
      %p44 = scmp.ne.s32.totalorder %s33, %s36
      %p45 = scmp.eq.s32.totalorder %s28, 2
      %p46 = por %p44, %p45
      %p47 = scmp.ne.s32.totalorder %s36, %s37
      %p48 = scmp.eq.s32.totalorder %s28, 0
      %p49 = por %p47, %p48
      %p50 = scmp.ne.s32.totalorder %s36, %s37
      %p51 = scmp.eq.s32.totalorder %s29, 2
      %p52 = por %p50, %p51
      %p54 = scmp.ne.s32.totalorder %s37, %s53
      %p55 = scmp.eq.s32.totalorder %s29, 0
      %p56 = por %p54, %p55
      %s58 = sadd.s32 %s57, 1
      %p61 = scmp.eq.s32.totalorder %s23, 2
      %p62 = scmp.ne.s32.totalorder %s57, %s59
      %p63 = scmp.eq.s32.totalorder %s23, 0
      %p64 = por %p62, %p63
      %p65 = scmp.ne.s32.totalorder %s57, %s59
      %p66 = scmp.eq.s32.totalorder %s28, 2
      %p67 = por %p65, %p66
      %p68 = scmp.ne.s32.totalorder %s59, %s60
      %p69 = scmp.eq.s32.totalorder %s28, 0
      %p70 = por %p68, %p69
      %p71 = scmp.ne.s32.totalorder %s59, %s60
      %p72 = scmp.eq.s32.totalorder %s29, 2
      %p73 = por %p71, %p72
      %p75 = scmp.ne.s32.totalorder %s60, %s74
      %p76 = scmp.eq.s32.totalorder %s29, 0
      %p77 = por %p75, %p76
      %s79 = sadd.s32 %s78, 1
      %p82 = scmp.eq.s32.totalorder %s23, 2
      %p83 = scmp.ne.s32.totalorder %s78, %s80
      %p84 = scmp.eq.s32.totalorder %s23, 0
      %p85 = por %p83, %p84
      %p86 = scmp.ne.s32.totalorder %s78, %s80
      %p87 = scmp.eq.s32.totalorder %s28, 2
      %p88 = por %p86, %p87
      %p89 = scmp.ne.s32.totalorder %s80, %s81
      %p90 = scmp.eq.s32.totalorder %s28, 0
      %p91 = por %p89, %p90
      %p92 = scmp.ne.s32.totalorder %s80, %s81
      %p93 = scmp.eq.s32.totalorder %s29, 2
      %p94 = por %p92, %p93
      %p96 = scmp.ne.s32.totalorder %s81, %s95
      %p97 = scmp.eq.s32.totalorder %s29, 0
      %p98 = por %p96, %p97
      %s100 = sadd.s32 %s99, 1
      %p103 = scmp.eq.s32.totalorder %s23, 2
      %p104 = scmp.ne.s32.totalorder %s99, %s101
      %p105 = scmp.eq.s32.totalorder %s23, 0
      %p106 = por %p104, %p105
      %p107 = scmp.ne.s32.totalorder %s99, %s101
      %p108 = scmp.eq.s32.totalorder %s28, 2
      %p109 = por %p107, %p108
      %p110 = scmp.ne.s32.totalorder %s101, %s102
      %p111 = scmp.eq.s32.totalorder %s28, 0
      %p112 = por %p110, %p111
      %p113 = scmp.ne.s32.totalorder %s101, %s102
      %p114 = scmp.eq.s32.totalorder %s29, 2
      %p115 = por %p113, %p114
      %p117 = scmp.ne.s32.totalorder %s102, %s116
      %p118 = scmp.eq.s32.totalorder %s29, 0
      %p119 = por %p117, %p118
      %s121 = sadd.s32 %s120, 1
      %p124 = scmp.eq.s32.totalorder %s23, 2
      %p125 = scmp.ne.s32.totalorder %s120, %s122
      %p126 = scmp.eq.s32.totalorder %s23, 0
      %p127 = por %p125, %p126
      %p128 = scmp.ne.s32.totalorder %s120, %s122
      %p129 = scmp.eq.s32.totalorder %s28, 2
      %p130 = por %p128, %p129
      %p131 = scmp.ne.s32.totalorder %s122, %s123
      %p132 = scmp.eq.s32.totalorder %s28, 0
      %p133 = por %p131, %p132
      %p134 = scmp.ne.s32.totalorder %s122, %s123
      %p135 = scmp.eq.s32.totalorder %s29, 2
      %p136 = por %p134, %p135
      %p138 = scmp.ne.s32.totalorder %s123, %s137
      %p139 = scmp.eq.s32.totalorder %s29, 0
      %p140 = por %p138, %p139
      %s142 = sadd.s32 %s141, 1
      %p145 = scmp.eq.s32.totalorder %s23, 2
      %p146 = scmp.ne.s32.totalorder %s141, %s143
      %p147 = scmp.eq.s32.totalorder %s23, 0
      %p148 = por %p146, %p147
      %p149 = scmp.ne.s32.totalorder %s141, %s143
      %p150 = scmp.eq.s32.totalorder %s28, 2
      %p151 = por %p149, %p150
      %p152 = scmp.ne.s32.totalorder %s143, %s144
      %p153 = scmp.eq.s32.totalorder %s28, 0
      %p154 = por %p152, %p153
      %p155 = scmp.ne.s32.totalorder %s143, %s144
      %p156 = scmp.eq.s32.totalorder %s29, 2
      %p157 = por %p155, %p156
      %p159 = scmp.ne.s32.totalorder %s144, %s158
      %p160 = scmp.eq.s32.totalorder %s29, 0
      %p161 = por %p159, %p160
      %s163 = sadd.s32 %s162, 1
      %p166 = scmp.eq.s32.totalorder %s23, 2
      %p167 = scmp.ne.s32.totalorder %s162, %s164
      %p168 = scmp.eq.s32.totalorder %s23, 0
      %p169 = por %p167, %p168
      %p170 = scmp.ne.s32.totalorder %s162, %s164
      %p171 = scmp.eq.s32.totalorder %s28, 2
      %p172 = por %p170, %p171
      %p173 = scmp.ne.s32.totalorder %s164, %s165
      %p174 = scmp.eq.s32.totalorder %s28, 0
      %p175 = por %p173, %p174
      %p176 = scmp.ne.s32.totalorder %s164, %s165
      %p177 = scmp.eq.s32.totalorder %s29, 2
      %p178 = por %p176, %p177
      %p180 = scmp.ne.s32.totalorder %s165, %s179
      %p181 = scmp.eq.s32.totalorder %s29, 0
      %p182 = por %p180, %p181
      %s184 = sadd.s32 %s183, 1
      %p187 = scmp.eq.s32.totalorder %s23, 2
      %p188 = scmp.ne.s32.totalorder %s183, %s185
      %p189 = scmp.eq.s32.totalorder %s23, 0
      %p190 = por %p188, %p189
      %p191 = scmp.ne.s32.totalorder %s183, %s185
      %p192 = scmp.eq.s32.totalorder %s28, 2
      %p193 = por %p191, %p192
      %p194 = scmp.ne.s32.totalorder %s185, %s186
      %p195 = scmp.eq.s32.totalorder %s28, 0
      %p196 = por %p194, %p195
      %p197 = scmp.ne.s32.totalorder %s185, %s186
      %p198 = scmp.eq.s32.totalorder %s29, 2
      %p199 = por %p197, %p198
      %p201 = scmp.ne.s32.totalorder %s186, %s200
      %p202 = scmp.eq.s32.totalorder %s29, 0
      %p203 = por %p201, %p202
      %s205 = sadd.s32 %s204, 1
      %p208 = scmp.eq.s32.totalorder %s23, 2
      %p209 = scmp.ne.s32.totalorder %s204, %s206
      %p210 = scmp.eq.s32.totalorder %s23, 0
      %p211 = por %p209, %p210
      %p212 = scmp.ne.s32.totalorder %s204, %s206
      %p213 = scmp.eq.s32.totalorder %s28, 2
      %p214 = por %p212, %p213
      %p215 = scmp.ne.s32.totalorder %s206, %s207
      %p216 = scmp.eq.s32.totalorder %s28, 0
      %p217 = por %p215, %p216
      %p218 = scmp.ne.s32.totalorder %s206, %s207
      %p219 = scmp.eq.s32.totalorder %s29, 2
      %p220 = por %p218, %p219
      %p222 = scmp.ne.s32.totalorder %s207, %s221
      %p223 = scmp.eq.s32.totalorder %s29, 0
      %p224 = por %p222, %p223
      %s225 = ssub.s32 %s23, %s30
      %p226 = scmp.eq.s32.totalorder %s225, 0
      %s228 = sadd.s32 %s227, 1
      %s229 = scalar_select %p226, %s227, %s228
      %p232 = pneg %p226
      %p233 = scmp.eq.s32.totalorder %s23, 2
      %p234 = por %p232, %p233
      %p235 = scmp.ne.s32.totalorder %s227, %s230
      %p236 = scmp.eq.s32.totalorder %s23, 0
      %p237 = por %p235, %p236
      %p238 = scmp.ne.s32.totalorder %s227, %s230
      %p239 = scmp.eq.s32.totalorder %s28, 2
      %p240 = por %p238, %p239
      %p241 = scmp.ne.s32.totalorder %s230, %s231
      %p242 = scmp.eq.s32.totalorder %s28, 0
      %p243 = por %p241, %p242
      %p244 = scmp.ne.s32.totalorder %s230, %s231
      %p245 = scmp.eq.s32.totalorder %s29, 2
      %p246 = por %p244, %p245
      %p248 = scmp.ne.s32.totalorder %s231, %s247
      %p249 = scmp.eq.s32.totalorder %s29, 0
      %p250 = por %p248, %p249
      %p251 = scmp.le.s32.totalorder 1, %s23
      %p252 = scmp.lt.s32.totalorder %s23, 4
      %p253 = pnand %p251, %p252
      %p254 = pneg %p253
      // Predicated region
      $region9: #{tpu_custom_call.1} parent=5 // pred_check
        _
      $region10: #{tpu_custom_call.1} parent=5 // pred_check_branch
        %256 = sbr.rel (%p253) target = $region12
      $region11: #{tpu_custom_call.1} parent=5 // pred_region
        %s257 = ssub.s32 %s23, 1
        // Predicated region
        $region13: #{tpu_custom_call.1} parent=11 // pred_check
          %p258 = pneg %p70
        $region14: #{tpu_custom_call.1} parent=11 // pred_check_branch
          %260 = sbr.rel (%p258) target = $region16
        $region15: #{tpu_custom_call.1} parent=11 // pred_region
          %s262 = ssub.s32 25088, 25088
          %263 = vsyncadd [#allocation6], %s262
          %s264 = sshll.u32 [#allocation5], 4
          %s265 = int_to_ptr.vmem [resolvable:$true] %s264
          %270 = dma.hbm_to_vmem [thread:$0]  %s1, 25088, %s265, [#allocation6], 256, 256, 16
        $region16: #{tpu_custom_call.1} parent=11 // pred_fallthru
          _
        // Predicated region
        $region17: #{tpu_custom_call.1} parent=11 // pred_check
          %p271 = pneg %p91
        $region18: #{tpu_custom_call.1} parent=11 // pred_check_branch
          %273 = sbr.rel (%p271) target = $region20
        $region19: #{tpu_custom_call.1} parent=11 // pred_region
          _
        $region20: #{tpu_custom_call.1} parent=11 // pred_fallthru
          _
        // Predicated region
        $region21: #{tpu_custom_call.1} parent=11 // pred_check
          %p274 = pneg %p112
        $region22: #{tpu_custom_call.1} parent=11 // pred_check_branch
          %276 = sbr.rel (%p274) target = $region24
        $region23: #{tpu_custom_call.1} parent=11 // pred_region
          _
        $region24: #{tpu_custom_call.1} parent=11 // pred_fallthru
          _
        // Predicated region
        $region25: #{tpu_custom_call.1} parent=11 // pred_check
          %p277 = pneg %p133
        $region26: #{tpu_custom_call.1} parent=11 // pred_check_branch
          %279 = sbr.rel (%p277) target = $region28
        $region27: #{tpu_custom_call.1} parent=11 // pred_region
          %s281 = ssub.s32 8192, 8192
          %282 = vsyncadd [#allocation6], %s281
          %s283 = sshll.u32 [#allocation7], 4
          %s284 = int_to_ptr.vmem [resolvable:$true] %s283
          %289 = dma.hbm_to_vmem [thread:$0]  %s4, 8192, %s284, [#allocation6], 128, 128, 8
        $region28: #{tpu_custom_call.1} parent=11 // pred_fallthru
          _
        // Predicated region
        $region29: #{tpu_custom_call.1} parent=11 // pred_check
          %p290 = pneg %p154
        $region30: #{tpu_custom_call.1} parent=11 // pred_check_branch
          %292 = sbr.rel (%p290) target = $region32
        $region31: #{tpu_custom_call.1} parent=11 // pred_region
          _
        $region32: #{tpu_custom_call.1} parent=11 // pred_fallthru
          _
        // Predicated region
        $region33: #{tpu_custom_call.1} parent=11 // pred_check
          %p293 = pneg %p175
        $region34: #{tpu_custom_call.1} parent=11 // pred_check_branch
          %295 = sbr.rel (%p293) target = $region36
        $region35: #{tpu_custom_call.1} parent=11 // pred_region
          _
        $region36: #{tpu_custom_call.1} parent=11 // pred_fallthru
          _
        // Predicated region
        $region37: #{tpu_custom_call.1} parent=11 // pred_check
          %p296 = pneg %p196
        $region38: #{tpu_custom_call.1} parent=11 // pred_check_branch
          %298 = sbr.rel (%p296) target = $region40
        $region39: #{tpu_custom_call.1} parent=11 // pred_region
          %s300 = ssub.s32 2048, 2048
          %301 = vsyncadd [#allocation9], %s300
          %s302 = sshll.u32 [#allocation8], 4
          %s303 = int_to_ptr.vmem [resolvable:$true] %s302
          %308 = dma.hbm_to_vmem [thread:$0]  %s7, 2048, %s303, [#allocation9], 64, 64, 4
        $region40: #{tpu_custom_call.1} parent=11 // pred_fallthru
          _
        // Predicated region
        $region41: #{tpu_custom_call.1} parent=11 // pred_check
          %p309 = pneg %p217
        $region42: #{tpu_custom_call.1} parent=11 // pred_check_branch
          %311 = sbr.rel (%p309) target = $region44
        $region43: #{tpu_custom_call.1} parent=11 // pred_region
          _
        $region44: #{tpu_custom_call.1} parent=11 // pred_fallthru
          _
      $region12: #{tpu_custom_call.1} parent=5 // pred_fallthru
        _
      %p312 = scmp.lt.s32.totalorder %s23, 3
      // Predicated region
      $region45: #{tpu_custom_call.1} parent=5 // pred_check
        %p313 = pneg %p312
      $region46: #{tpu_custom_call.1} parent=5 // pred_check_branch
        %315 = sbr.rel (%p313) target = $region48
      $region47: #{tpu_custom_call.1} parent=5 // pred_region
        // Predicated region
        $region49: #{tpu_custom_call.1} parent=47 // pred_check
          %p316 = pneg %p43
        $region50: #{tpu_custom_call.1} parent=47 // pred_check_branch
          %318 = sbr.rel (%p316) target = $region52
        $region51: #{tpu_custom_call.1} parent=47 // pred_region
          %s319 = sand.u32 %s33, 1
          %s320 = scalar_lea.sflag [#allocation3], %s319
          %s321 = sand.u32 %s33, 1
          %s322 = smul.addr %s321, 112
          %s323 = scalar_lea.vmem [#allocation2], %s322
          %s324 = smul.u32 2, %s23
          %s326 = ssub.s32 1792, 1792
          %327 = vsyncadd %s320, %s326
          %s328 = smul.addr %s324, 7
          %s329 = smul.addr %s328, 128
          %s330 = scalar_lea.hbm %s0, %s329
          %s331 = sshll.u32 %s323, 4
          %s332 = int_to_ptr.vmem [resolvable:$true] %s331
          %337 = dma.hbm_to_vmem [thread:$0]  %s330, 1792, %s332, %s320, 896, 896, 56
        $region52: #{tpu_custom_call.1} parent=47 // pred_fallthru
          _
      $region48: #{tpu_custom_call.1} parent=5 // pred_fallthru
        _
      %p338 = scmp.le.s32.totalorder 1, %s23
      %p339 = scmp.lt.s32.totalorder %s23, 4
      %p340 = pnand %p338, %p339
      %p341 = pneg %p340
      // Predicated region
      $region53: #{tpu_custom_call.1} parent=5 // pred_check
        _
      $region54: #{tpu_custom_call.1} parent=5 // pred_check_branch
        %343 = sbr.rel (%p340) target = $region56
      $region55: #{tpu_custom_call.1} parent=5 // pred_region
        %s344 = ssub.s32 %s23, 1
        %s345 = sand.u32 %s36, 1
        %s346 = scalar_lea.sflag [#allocation3], %s345
        %s347 = sand.u32 %s36, 1
        %s348 = smul.addr %s347, 112
        %s349 = scalar_lea.vmem [#allocation2], %s348
        // Predicated region
        $region57: #{tpu_custom_call.1} parent=55 // pred_check
          %p350 = pneg %p49
        $region58: #{tpu_custom_call.1} parent=55 // pred_check_branch
          %352 = sbr.rel (%p350) target = $region60
        $region59: #{tpu_custom_call.1} parent=55 // pred_region
          %353 = dma.done %s346, 1792
        $region60: #{tpu_custom_call.1} parent=55 // pred_fallthru
          _
        // Predicated region
        $region61: #{tpu_custom_call.1} parent=55 // pred_check
          %p354 = pneg %p70
        $region62: #{tpu_custom_call.1} parent=55 // pred_check_branch
          %356 = sbr.rel (%p354) target = $region64
        $region63: #{tpu_custom_call.1} parent=55 // pred_region
          %357 = dma.done [#allocation6], 25088
        $region64: #{tpu_custom_call.1} parent=55 // pred_fallthru
          _
        // Predicated region
        $region65: #{tpu_custom_call.1} parent=55 // pred_check
          %p358 = pneg %p133
        $region66: #{tpu_custom_call.1} parent=55 // pred_check_branch
          %360 = sbr.rel (%p358) target = $region68
        $region67: #{tpu_custom_call.1} parent=55 // pred_region
          %361 = dma.done [#allocation6], 8192
        $region68: #{tpu_custom_call.1} parent=55 // pred_fallthru
          _
        // Predicated region
        $region69: #{tpu_custom_call.1} parent=55 // pred_check
          %p362 = pneg %p196
        $region70: #{tpu_custom_call.1} parent=55 // pred_check_branch
          %364 = sbr.rel (%p362) target = $region72
        $region71: #{tpu_custom_call.1} parent=55 // pred_region
          %365 = dma.done [#allocation9], 2048
        $region72: #{tpu_custom_call.1} parent=55 // pred_fallthru
          _
        %s366 = sand.u32 %s36, 1
        %s367 = scalar_lea.sflag [#allocation3], %s366
        %s368 = sand.u32 %s36, 1
        %s369 = smul.addr %s368, 112
        %s370 = scalar_lea.vmem [#allocation2], %s369
        %p371 = pneg %p49
        %p372 = pneg %p46
        %p373 = pneg %p70
        %p374 = pneg %p67
        %p375 = pneg %p91
        %p376 = pneg %p88
        %p377 = pneg %p112
        %p378 = pneg %p109
        %p379 = pneg %p133
        %p380 = pneg %p130
        %p381 = pneg %p154
        %p382 = pneg %p151
        %p383 = pneg %p175
        %p384 = pneg %p172
        %p385 = pneg %p196
        %p386 = pneg %p193
        %p387 = pneg %p217
        %p388 = pneg %p214
        %p389 = pneg %p243
        %p390 = pneg %p240
        %s391 = sand.u32 %s230, 1
        %s392 = scalar_lea.sflag [#allocation4], %s391
        %s393 = sand.u32 %s230, 1
        %s394 = smul.addr %s393, 16
        %s395 = scalar_lea.vmem [#allocation10], %s394
        %s396 = smul.u32 2, %s28
        %s397 = smul.u32 2, %s28
        %v399 = vld [vmem:[%s349] sm:$0xff]
        %v400 = vld [vmem:[%s349 + $0x8] sm:$0xff]
        %v401 = vld [vmem:[%s349 + $0x10] sm:$0xff]
        %v402 = vld [vmem:[%s349 + $0x18] sm:$0xff]
        %v403 = vld [vmem:[%s349 + $0x20] sm:$0xff]
        %v404 = vld [vmem:[%s349 + $0x28] sm:$0xff]
        %v405 = vld [vmem:[%s349 + $0x30] sm:$0xff]
        %v406 = vld [vmem:[%s349 + $0x38] sm:$0xff]
        %v407 = vld [vmem:[%s349 + $0x40] sm:$0xff]
        %v408 = vld [vmem:[%s349 + $0x48] sm:$0xff]
        %v409 = vld [vmem:[%s349 + $0x50] sm:$0xff]
        %v410 = vld [vmem:[%s349 + $0x58] sm:$0xff]
        %v411 = vld [vmem:[%s349 + $0x60] sm:$0xff]
        %v412 = vld [vmem:[%s349 + $0x68] sm:$0xff]
        %v413 = vpack.c.bf16 %v406, %v399
        %v414 = vpack.c.bf16 %v407, %v400
        %v415 = vpack.c.bf16 %v408, %v401
        %v416 = vpack.c.bf16 %v409, %v402
        %v417 = vpack.c.bf16 %v410, %v403
        %v418 = vpack.c.bf16 %v411, %v404
        %v419 = vpack.c.bf16 %v412, %v405
        %v420 = vld [vmem:[#allocation5] sm:$0xff]
        %v421 = vld [vmem:[#allocation5 + $0x8] sm:$0xff]
        %v422 = vld [vmem:[#allocation5 + $0x10] sm:$0xff]
        %v423 = vld [vmem:[#allocation5 + $0x18] sm:$0xff]
        %v424 = vld [vmem:[#allocation5 + $0x20] sm:$0xff]
        %v425 = vld [vmem:[#allocation5 + $0x28] sm:$0xff]
        %v426 = vld [vmem:[#allocation5 + $0x30] sm:$0xff]
        %v427 = vld [vmem:[#allocation5 + $0x38] sm:$0xff]
        %v428 = vld [vmem:[#allocation5 + $0x40] sm:$0xff]
        %v429 = vld [vmem:[#allocation5 + $0x48] sm:$0xff]
        %v430 = vld [vmem:[#allocation5 + $0x50] sm:$0xff]
        %v431 = vld [vmem:[#allocation5 + $0x58] sm:$0xff]
        %v432 = vld [vmem:[#allocation5 + $0x60] sm:$0xff]
        %v433 = vld [vmem:[#allocation5 + $0x68] sm:$0xff]
        %v434 = vld [vmem:[#allocation5 + $0x70] sm:$0xff]
        %v435 = vld [vmem:[#allocation5 + $0x78] sm:$0xff]
        %v436 = vld [vmem:[#allocation5 + $0x80] sm:$0xff]
        %v437 = vld [vmem:[#allocation5 + $0x88] sm:$0xff]
        %v438 = vld [vmem:[#allocation5 + $0x90] sm:$0xff]
        %v439 = vld [vmem:[#allocation5 + $0x98] sm:$0xff]
        %v440 = vld [vmem:[#allocation5 + $0xa0] sm:$0xff]
        %v441 = vld [vmem:[#allocation5 + $0xa8] sm:$0xff]
        %v442 = vld [vmem:[#allocation5 + $0xb0] sm:$0xff]
        %v443 = vld [vmem:[#allocation5 + $0xb8] sm:$0xff]
        %v444 = vld [vmem:[#allocation5 + $0xc0] sm:$0xff]
        %v445 = vld [vmem:[#allocation5 + $0xc8] sm:$0xff]
        %v446 = vld [vmem:[#allocation5 + $0xd0] sm:$0xff]
        %v447 = vld [vmem:[#allocation5 + $0xd8] sm:$0xff]
        %v448 = vld [vmem:[#allocation5 + $0xe0] sm:$0xff]
        %v449 = vld [vmem:[#allocation5 + $0xe8] sm:$0xff]
        %v450 = vld [vmem:[#allocation5 + $0xf0] sm:$0xff]
        %v451 = vld [vmem:[#allocation5 + $0xf8] sm:$0xff]
        %v452 = vld [vmem:[#allocation5 + $0x100] sm:$0xff]
        %v453 = vld [vmem:[#allocation5 + $0x108] sm:$0xff]
        %v454 = vld [vmem:[#allocation5 + $0x110] sm:$0xff]
        %v455 = vld [vmem:[#allocation5 + $0x118] sm:$0xff]
        %v456 = vld [vmem:[#allocation5 + $0x120] sm:$0xff]
        %v457 = vld [vmem:[#allocation5 + $0x128] sm:$0xff]
        %v458 = vld [vmem:[#allocation5 + $0x130] sm:$0xff]
        %v459 = vld [vmem:[#allocation5 + $0x138] sm:$0xff]
        %v460 = vld [vmem:[#allocation5 + $0x140] sm:$0xff]
        %v461 = vld [vmem:[#allocation5 + $0x148] sm:$0xff]
        %v462 = vld [vmem:[#allocation5 + $0x150] sm:$0xff]
        %v463 = vld [vmem:[#allocation5 + $0x158] sm:$0xff]
        %v464 = vld [vmem:[#allocation5 + $0x160] sm:$0xff]
        %v465 = vld [vmem:[#allocation5 + $0x168] sm:$0xff]
        %v466 = vld [vmem:[#allocation5 + $0x170] sm:$0xff]
        %v467 = vld [vmem:[#allocation5 + $0x178] sm:$0xff]
        %v468 = vld [vmem:[#allocation5 + $0x180] sm:$0xff]
        %v469 = vld [vmem:[#allocation5 + $0x188] sm:$0xff]
        %v470 = vld [vmem:[#allocation5 + $0x190] sm:$0xff]
        %v471 = vld [vmem:[#allocation5 + $0x198] sm:$0xff]
        %v472 = vld [vmem:[#allocation5 + $0x1a0] sm:$0xff]
        %v473 = vld [vmem:[#allocation5 + $0x1a8] sm:$0xff]
        %v474 = vld [vmem:[#allocation5 + $0x1b0] sm:$0xff]
        %v475 = vld [vmem:[#allocation5 + $0x1b8] sm:$0xff]
        %v476 = vld [vmem:[#allocation5 + $0x1c0] sm:$0xff]
        %v477 = vld [vmem:[#allocation5 + $0x1c8] sm:$0xff]
        %v478 = vld [vmem:[#allocation5 + $0x1d0] sm:$0xff]
        %v479 = vld [vmem:[#allocation5 + $0x1d8] sm:$0xff]
        %v480 = vld [vmem:[#allocation5 + $0x1e0] sm:$0xff]
        %v481 = vld [vmem:[#allocation5 + $0x1e8] sm:$0xff]
        %v482 = vld [vmem:[#allocation5 + $0x1f0] sm:$0xff]
        %v483 = vld [vmem:[#allocation5 + $0x1f8] sm:$0xff]
        %v484 = vld [vmem:[#allocation5 + $0x200] sm:$0xff]
        %v485 = vld [vmem:[#allocation5 + $0x208] sm:$0xff]
        %v486 = vld [vmem:[#allocation5 + $0x210] sm:$0xff]
        %v487 = vld [vmem:[#allocation5 + $0x218] sm:$0xff]
        %v488 = vld [vmem:[#allocation5 + $0x220] sm:$0xff]
        %v489 = vld [vmem:[#allocation5 + $0x228] sm:$0xff]
        %v490 = vld [vmem:[#allocation5 + $0x230] sm:$0xff]
        %v491 = vld [vmem:[#allocation5 + $0x238] sm:$0xff]
        %v492 = vld [vmem:[#allocation5 + $0x240] sm:$0xff]
        %v493 = vld [vmem:[#allocation5 + $0x248] sm:$0xff]
        %v494 = vld [vmem:[#allocation5 + $0x250] sm:$0xff]
        %v495 = vld [vmem:[#allocation5 + $0x258] sm:$0xff]
        %v496 = vld [vmem:[#allocation5 + $0x260] sm:$0xff]
        %v497 = vld [vmem:[#allocation5 + $0x268] sm:$0xff]
        %v498 = vld [vmem:[#allocation5 + $0x270] sm:$0xff]
        %v499 = vld [vmem:[#allocation5 + $0x278] sm:$0xff]
        %v500 = vld [vmem:[#allocation5 + $0x280] sm:$0xff]
        %v501 = vld [vmem:[#allocation5 + $0x288] sm:$0xff]
        %v502 = vld [vmem:[#allocation5 + $0x290] sm:$0xff]
        %v503 = vld [vmem:[#allocation5 + $0x298] sm:$0xff]
        %v504 = vld [vmem:[#allocation5 + $0x2a0] sm:$0xff]
        %v505 = vld [vmem:[#allocation5 + $0x2a8] sm:$0xff]
        %v506 = vld [vmem:[#allocation5 + $0x2b0] sm:$0xff]
        %v507 = vld [vmem:[#allocation5 + $0x2b8] sm:$0xff]
        %v508 = vld [vmem:[#allocation5 + $0x2c0] sm:$0xff]
        %v509 = vld [vmem:[#allocation5 + $0x2c8] sm:$0xff]
        %v510 = vld [vmem:[#allocation5 + $0x2d0] sm:$0xff]
        %v511 = vld [vmem:[#allocation5 + $0x2d8] sm:$0xff]
        %v512 = vld [vmem:[#allocation5 + $0x2e0] sm:$0xff]
        %v513 = vld [vmem:[#allocation5 + $0x2e8] sm:$0xff]
        %v514 = vld [vmem:[#allocation5 + $0x2f0] sm:$0xff]
        %v515 = vld [vmem:[#allocation5 + $0x2f8] sm:$0xff]
        %v516 = vld [vmem:[#allocation5 + $0x300] sm:$0xff]
        %v517 = vld [vmem:[#allocation5 + $0x308] sm:$0xff]
        %v518 = vld [vmem:[#allocation5 + $0x310] sm:$0xff]
        %v519 = vld [vmem:[#allocation5 + $0x318] sm:$0xff]
        %v520 = vld [vmem:[#allocation5 + $0x320] sm:$0xff]
        %v521 = vld [vmem:[#allocation5 + $0x328] sm:$0xff]
        %v522 = vld [vmem:[#allocation5 + $0x330] sm:$0xff]
        %v523 = vld [vmem:[#allocation5 + $0x338] sm:$0xff]
        %v524 = vld [vmem:[#allocation5 + $0x340] sm:$0xff]
        %v525 = vld [vmem:[#allocation5 + $0x348] sm:$0xff]
        %v526 = vld [vmem:[#allocation5 + $0x350] sm:$0xff]
        %v527 = vld [vmem:[#allocation5 + $0x358] sm:$0xff]
        %v528 = vld [vmem:[#allocation5 + $0x360] sm:$0xff]
        %v529 = vld [vmem:[#allocation5 + $0x368] sm:$0xff]
        %v530 = vld [vmem:[#allocation5 + $0x370] sm:$0xff]
        %v531 = vld [vmem:[#allocation5 + $0x378] sm:$0xff]
        %v532 = vld [vmem:[#allocation5 + $0x380] sm:$0xff]
        %v533 = vld [vmem:[#allocation5 + $0x388] sm:$0xff]
        %v534 = vld [vmem:[#allocation5 + $0x390] sm:$0xff]
        %v535 = vld [vmem:[#allocation5 + $0x398] sm:$0xff]
        %v536 = vld [vmem:[#allocation5 + $0x3a0] sm:$0xff]
        %v537 = vld [vmem:[#allocation5 + $0x3a8] sm:$0xff]
        %v538 = vld [vmem:[#allocation5 + $0x3b0] sm:$0xff]
        %v539 = vld [vmem:[#allocation5 + $0x3b8] sm:$0xff]
        %v540 = vld [vmem:[#allocation5 + $0x3c0] sm:$0xff]
        %v541 = vld [vmem:[#allocation5 + $0x3c8] sm:$0xff]
        %v542 = vld [vmem:[#allocation5 + $0x3d0] sm:$0xff]
        %v543 = vld [vmem:[#allocation5 + $0x3d8] sm:$0xff]
        %v544 = vld [vmem:[#allocation5 + $0x3e0] sm:$0xff]
        %v545 = vld [vmem:[#allocation5 + $0x3e8] sm:$0xff]
        %v546 = vld [vmem:[#allocation5 + $0x3f0] sm:$0xff]
        %v547 = vld [vmem:[#allocation5 + $0x3f8] sm:$0xff]
        %v548 = vld [vmem:[#allocation5 + $0x400] sm:$0xff]
        %v549 = vld [vmem:[#allocation5 + $0x408] sm:$0xff]
        %v550 = vld [vmem:[#allocation5 + $0x410] sm:$0xff]
        %v551 = vld [vmem:[#allocation5 + $0x418] sm:$0xff]
        %v552 = vld [vmem:[#allocation5 + $0x420] sm:$0xff]
        %v553 = vld [vmem:[#allocation5 + $0x428] sm:$0xff]
        %v554 = vld [vmem:[#allocation5 + $0x430] sm:$0xff]
        %v555 = vld [vmem:[#allocation5 + $0x438] sm:$0xff]
        %v556 = vld [vmem:[#allocation5 + $0x440] sm:$0xff]
        %v557 = vld [vmem:[#allocation5 + $0x448] sm:$0xff]
        %v558 = vld [vmem:[#allocation5 + $0x450] sm:$0xff]
        %v559 = vld [vmem:[#allocation5 + $0x458] sm:$0xff]
        %v560 = vld [vmem:[#allocation5 + $0x460] sm:$0xff]
        %v561 = vld [vmem:[#allocation5 + $0x468] sm:$0xff]
        %v562 = vld [vmem:[#allocation5 + $0x470] sm:$0xff]
        %v563 = vld [vmem:[#allocation5 + $0x478] sm:$0xff]
        %v564 = vld [vmem:[#allocation5 + $0x480] sm:$0xff]
        %v565 = vld [vmem:[#allocation5 + $0x488] sm:$0xff]
        %v566 = vld [vmem:[#allocation5 + $0x490] sm:$0xff]
        %v567 = vld [vmem:[#allocation5 + $0x498] sm:$0xff]
        %v568 = vld [vmem:[#allocation5 + $0x4a0] sm:$0xff]
        %v569 = vld [vmem:[#allocation5 + $0x4a8] sm:$0xff]
        %v570 = vld [vmem:[#allocation5 + $0x4b0] sm:$0xff]
        %v571 = vld [vmem:[#allocation5 + $0x4b8] sm:$0xff]
        %v572 = vld [vmem:[#allocation5 + $0x4c0] sm:$0xff]
        %v573 = vld [vmem:[#allocation5 + $0x4c8] sm:$0xff]
        %v574 = vld [vmem:[#allocation5 + $0x4d0] sm:$0xff]
        %v575 = vld [vmem:[#allocation5 + $0x4d8] sm:$0xff]
        %v576 = vld [vmem:[#allocation5 + $0x4e0] sm:$0xff]
        %v577 = vld [vmem:[#allocation5 + $0x4e8] sm:$0xff]
        %v578 = vld [vmem:[#allocation5 + $0x4f0] sm:$0xff]
        %v579 = vld [vmem:[#allocation5 + $0x4f8] sm:$0xff]
        %v580 = vld [vmem:[#allocation5 + $0x500] sm:$0xff]
        %v581 = vld [vmem:[#allocation5 + $0x508] sm:$0xff]
        %v582 = vld [vmem:[#allocation5 + $0x510] sm:$0xff]
        %v583 = vld [vmem:[#allocation5 + $0x518] sm:$0xff]
        %v584 = vld [vmem:[#allocation5 + $0x520] sm:$0xff]
        %v585 = vld [vmem:[#allocation5 + $0x528] sm:$0xff]
        %v586 = vld [vmem:[#allocation5 + $0x530] sm:$0xff]
        %v587 = vld [vmem:[#allocation5 + $0x538] sm:$0xff]
        %v588 = vld [vmem:[#allocation5 + $0x540] sm:$0xff]
        %v589 = vld [vmem:[#allocation5 + $0x548] sm:$0xff]
        %v590 = vld [vmem:[#allocation5 + $0x550] sm:$0xff]
        %v591 = vld [vmem:[#allocation5 + $0x558] sm:$0xff]
        %v592 = vld [vmem:[#allocation5 + $0x560] sm:$0xff]
        %v593 = vld [vmem:[#allocation5 + $0x568] sm:$0xff]
        %v594 = vld [vmem:[#allocation5 + $0x570] sm:$0xff]
        %v595 = vld [vmem:[#allocation5 + $0x578] sm:$0xff]
        %v596 = vld [vmem:[#allocation5 + $0x580] sm:$0xff]
        %v597 = vld [vmem:[#allocation5 + $0x588] sm:$0xff]
        %v598 = vld [vmem:[#allocation5 + $0x590] sm:$0xff]
        %v599 = vld [vmem:[#allocation5 + $0x598] sm:$0xff]
        %v600 = vld [vmem:[#allocation5 + $0x5a0] sm:$0xff]
        %v601 = vld [vmem:[#allocation5 + $0x5a8] sm:$0xff]
        %v602 = vld [vmem:[#allocation5 + $0x5b0] sm:$0xff]
        %v603 = vld [vmem:[#allocation5 + $0x5b8] sm:$0xff]
        %v604 = vld [vmem:[#allocation5 + $0x5c0] sm:$0xff]
        %v605 = vld [vmem:[#allocation5 + $0x5c8] sm:$0xff]
        %v606 = vld [vmem:[#allocation5 + $0x5d0] sm:$0xff]
        %v607 = vld [vmem:[#allocation5 + $0x5d8] sm:$0xff]
        %v608 = vld [vmem:[#allocation5 + $0x5e0] sm:$0xff]
        %v609 = vld [vmem:[#allocation5 + $0x5e8] sm:$0xff]
        %v610 = vld [vmem:[#allocation5 + $0x5f0] sm:$0xff]
        %v611 = vld [vmem:[#allocation5 + $0x5f8] sm:$0xff]
        %v612 = vld [vmem:[#allocation5 + $0x600] sm:$0xff]
        %v613 = vld [vmem:[#allocation5 + $0x608] sm:$0xff]
        %v614 = vld [vmem:[#allocation5 + $0x610] sm:$0xff]
        %v615 = vld [vmem:[#allocation5 + $0x618] sm:$0xff]
        %v616 = vld [vmem:[%s2] sm:$0xf]
        %v618 = vlaneseq
        %v619 = vshrl.u32 %v618, 7
        %v620 = vsub.s32 0, %v619
        %v621 = vrot.slane %v616, %v620
        %v622 = vlaneseq
        %v623 = vshrl.u32 %v622, 7
        %v624 = vsub.s32 1, %v623
        %v625 = vrot.slane %v616, %v624
        %v626 = vlaneseq
        %v627 = vshrl.u32 %v626, 7
        %v628 = vsub.s32 2, %v627
        %v629 = vrot.slane %v616, %v628
        %v630 = vlaneseq
        %v631 = vshrl.u32 %v630, 7
        %v632 = vsub.s32 3, %v631
        %v633 = vrot.slane %v616, %v632
        %v834 = vunpack.c.l.b16 %v420
        %v835 = vunpack.c.h.b16 %v420
        %v836 = vunpack.c.l.b16 %v421
        %v837 = vunpack.c.h.b16 %v421
        %v838 = vunpack.c.l.b16 %v422
        %v839 = vunpack.c.h.b16 %v422
        %v840 = vunpack.c.l.b16 %v423
        %v841 = vunpack.c.h.b16 %v423
        %v842 = vunpack.c.l.b16 %v424
        %v843 = vunpack.c.h.b16 %v424
        %v844 = vunpack.c.l.b16 %v425
        %v845 = vunpack.c.h.b16 %v425
        %v846 = vunpack.c.l.b16 %v426
        %v847 = vunpack.c.h.b16 %v426
        %v848 = vunpack.c.l.b16 %v427
        %v849 = vunpack.c.h.b16 %v427
        %v850 = vunpack.c.l.b16 %v428
        %v851 = vunpack.c.h.b16 %v428
        %v852 = vunpack.c.l.b16 %v429
        %v853 = vunpack.c.h.b16 %v429
        %v854 = vunpack.c.l.b16 %v430
        %v855 = vunpack.c.h.b16 %v430
        %v856 = vunpack.c.l.b16 %v431
        %v857 = vunpack.c.h.b16 %v431
        %v858 = vunpack.c.l.b16 %v432
        %v859 = vunpack.c.h.b16 %v432
        %v860 = vunpack.c.l.b16 %v433
        %v861 = vunpack.c.h.b16 %v433
        %v862 = vunpack.c.l.b16 %v434
        %v863 = vunpack.c.h.b16 %v434
        %v864 = vunpack.c.l.b16 %v435
        %v865 = vunpack.c.h.b16 %v435
        %v866 = vunpack.c.l.b16 %v436
        %v867 = vunpack.c.h.b16 %v436
        %v868 = vunpack.c.l.b16 %v437
        %v869 = vunpack.c.h.b16 %v437
        %v870 = vunpack.c.l.b16 %v438
        %v871 = vunpack.c.h.b16 %v438
        %v872 = vunpack.c.l.b16 %v439
        %v873 = vunpack.c.h.b16 %v439
        %v874 = vunpack.c.l.b16 %v440
        %v875 = vunpack.c.h.b16 %v440
        %v876 = vunpack.c.l.b16 %v441
        %v877 = vunpack.c.h.b16 %v441
        %v878 = vunpack.c.l.b16 %v442
        %v879 = vunpack.c.h.b16 %v442
        %v880 = vunpack.c.l.b16 %v443
        %v881 = vunpack.c.h.b16 %v443
        %v882 = vunpack.c.l.b16 %v444
        %v883 = vunpack.c.h.b16 %v444
        %v884 = vunpack.c.l.b16 %v445
        %v885 = vunpack.c.h.b16 %v445
        %v886 = vunpack.c.l.b16 %v446
        %v887 = vunpack.c.h.b16 %v446
        %v888 = vunpack.c.l.b16 %v447
        %v889 = vunpack.c.h.b16 %v447
        %v890 = vunpack.c.l.b16 %v448
        %v891 = vunpack.c.h.b16 %v448
        %v892 = vunpack.c.l.b16 %v449
        %v893 = vunpack.c.h.b16 %v449
        %v894 = vunpack.c.l.b16 %v450
        %v895 = vunpack.c.h.b16 %v450
        %v896 = vunpack.c.l.b16 %v451
        %v897 = vunpack.c.h.b16 %v451
        %v898 = vunpack.c.l.b16 %v452
        %v899 = vunpack.c.h.b16 %v452
        %v900 = vunpack.c.l.b16 %v453
        %v901 = vunpack.c.h.b16 %v453
        %v902 = vunpack.c.l.b16 %v454
        %v903 = vunpack.c.h.b16 %v454
        %v904 = vunpack.c.l.b16 %v455
        %v905 = vunpack.c.h.b16 %v455
        %v906 = vunpack.c.l.b16 %v456
        %v907 = vunpack.c.h.b16 %v456
        %v908 = vunpack.c.l.b16 %v457
        %v909 = vunpack.c.h.b16 %v457
        %v910 = vunpack.c.l.b16 %v458
        %v911 = vunpack.c.h.b16 %v458
        %v912 = vunpack.c.l.b16 %v459
        %v913 = vunpack.c.h.b16 %v459
        %v914 = vunpack.c.l.b16 %v460
        %v915 = vunpack.c.h.b16 %v460
        %v916 = vunpack.c.l.b16 %v461
        %v917 = vunpack.c.h.b16 %v461
        %v918 = vunpack.c.l.b16 %v462
        %v919 = vunpack.c.h.b16 %v462
        %v920 = vunpack.c.l.b16 %v463
        %v921 = vunpack.c.h.b16 %v463
        %v922 = vunpack.c.l.b16 %v464
        %v923 = vunpack.c.h.b16 %v464
        %v924 = vunpack.c.l.b16 %v465
        %v925 = vunpack.c.h.b16 %v465
        %v926 = vunpack.c.l.b16 %v466
        %v927 = vunpack.c.h.b16 %v466
        %v928 = vunpack.c.l.b16 %v467
        %v929 = vunpack.c.h.b16 %v467
        %v930 = vunpack.c.l.b16 %v468
        %v931 = vunpack.c.h.b16 %v468
        %v932 = vunpack.c.l.b16 %v469
        %v933 = vunpack.c.h.b16 %v469
        %v934 = vunpack.c.l.b16 %v470
        %v935 = vunpack.c.h.b16 %v470
        %v936 = vunpack.c.l.b16 %v471
        %v937 = vunpack.c.h.b16 %v471
        %v938 = vunpack.c.l.b16 %v472
        %v939 = vunpack.c.h.b16 %v472
        %v940 = vunpack.c.l.b16 %v473
        %v941 = vunpack.c.h.b16 %v473
        %v942 = vunpack.c.l.b16 %v474
        %v943 = vunpack.c.h.b16 %v474
        %v944 = vunpack.c.l.b16 %v475
        %v945 = vunpack.c.h.b16 %v475
        %v946 = vunpack.c.l.b16 %v476
        %v947 = vunpack.c.h.b16 %v476
        %v948 = vunpack.c.l.b16 %v477
        %v949 = vunpack.c.h.b16 %v477
        %v950 = vunpack.c.l.b16 %v478
        %v951 = vunpack.c.h.b16 %v478
        %v952 = vunpack.c.l.b16 %v479
        %v953 = vunpack.c.h.b16 %v479
        %v954 = vunpack.c.l.b16 %v480
        %v955 = vunpack.c.h.b16 %v480
        %v956 = vunpack.c.l.b16 %v481
        %v957 = vunpack.c.h.b16 %v481
        %v958 = vunpack.c.l.b16 %v482
        %v959 = vunpack.c.h.b16 %v482
        %v960 = vunpack.c.l.b16 %v483
        %v961 = vunpack.c.h.b16 %v483
        %v962 = vunpack.c.l.b16 %v484
        %v963 = vunpack.c.h.b16 %v484
        %v964 = vunpack.c.l.b16 %v485
        %v965 = vunpack.c.h.b16 %v485
        %v966 = vunpack.c.l.b16 %v486
        %v967 = vunpack.c.h.b16 %v486
        %v968 = vunpack.c.l.b16 %v487
        %v969 = vunpack.c.h.b16 %v487
        %v970 = vunpack.c.l.b16 %v488
        %v971 = vunpack.c.h.b16 %v488
        %v972 = vunpack.c.l.b16 %v489
        %v973 = vunpack.c.h.b16 %v489
        %v974 = vunpack.c.l.b16 %v490
        %v975 = vunpack.c.h.b16 %v490
        %v976 = vunpack.c.l.b16 %v491
        %v977 = vunpack.c.h.b16 %v491
        %v978 = vunpack.c.l.b16 %v492
        %v979 = vunpack.c.h.b16 %v492
        %v980 = vunpack.c.l.b16 %v493
        %v981 = vunpack.c.h.b16 %v493
        %v982 = vunpack.c.l.b16 %v494
        %v983 = vunpack.c.h.b16 %v494
        %v984 = vunpack.c.l.b16 %v495
        %v985 = vunpack.c.h.b16 %v495
        %v986 = vunpack.c.l.b16 %v496
        %v987 = vunpack.c.h.b16 %v496
        %v988 = vunpack.c.l.b16 %v497
        %v989 = vunpack.c.h.b16 %v497
        %v990 = vunpack.c.l.b16 %v498
        %v991 = vunpack.c.h.b16 %v498
        %v992 = vunpack.c.l.b16 %v499
        %v993 = vunpack.c.h.b16 %v499
        %v994 = vunpack.c.l.b16 %v500
        %v995 = vunpack.c.h.b16 %v500
        %v996 = vunpack.c.l.b16 %v501
        %v997 = vunpack.c.h.b16 %v501
        %v998 = vunpack.c.l.b16 %v502
        %v999 = vunpack.c.h.b16 %v502
        %v1000 = vunpack.c.l.b16 %v503
        %v1001 = vunpack.c.h.b16 %v503
        %v1002 = vunpack.c.l.b16 %v504
        %v1003 = vunpack.c.h.b16 %v504
        %v1004 = vunpack.c.l.b16 %v505
        %v1005 = vunpack.c.h.b16 %v505
        %v1006 = vunpack.c.l.b16 %v506
        %v1007 = vunpack.c.h.b16 %v506
        %v1008 = vunpack.c.l.b16 %v507
        %v1009 = vunpack.c.h.b16 %v507
        %v1010 = vunpack.c.l.b16 %v508
        %v1011 = vunpack.c.h.b16 %v508
        %v1012 = vunpack.c.l.b16 %v509
        %v1013 = vunpack.c.h.b16 %v509
        %v1014 = vunpack.c.l.b16 %v510
        %v1015 = vunpack.c.h.b16 %v510
        %v1016 = vunpack.c.l.b16 %v511
        %v1017 = vunpack.c.h.b16 %v511
        %v1018 = vunpack.c.l.b16 %v512
        %v1019 = vunpack.c.h.b16 %v512
        %v1020 = vunpack.c.l.b16 %v513
        %v1021 = vunpack.c.h.b16 %v513
        %v1022 = vunpack.c.l.b16 %v514
        %v1023 = vunpack.c.h.b16 %v514
        %v1024 = vunpack.c.l.b16 %v515
        %v1025 = vunpack.c.h.b16 %v515
        %v1026 = vunpack.c.l.b16 %v516
        %v1027 = vunpack.c.h.b16 %v516
        %v1028 = vunpack.c.l.b16 %v517
        %v1029 = vunpack.c.h.b16 %v517
        %v1030 = vunpack.c.l.b16 %v518
        %v1031 = vunpack.c.h.b16 %v518
        %v1032 = vunpack.c.l.b16 %v519
        %v1033 = vunpack.c.h.b16 %v519
        %v1034 = vunpack.c.l.b16 %v520
        %v1035 = vunpack.c.h.b16 %v520
        %v1036 = vunpack.c.l.b16 %v521
        %v1037 = vunpack.c.h.b16 %v521
        %v1038 = vunpack.c.l.b16 %v522
        %v1039 = vunpack.c.h.b16 %v522
        %v1040 = vunpack.c.l.b16 %v523
        %v1041 = vunpack.c.h.b16 %v523
        %v1042 = vunpack.c.l.b16 %v524
        %v1043 = vunpack.c.h.b16 %v524
        %v1044 = vunpack.c.l.b16 %v525
        %v1045 = vunpack.c.h.b16 %v525
        %v1046 = vunpack.c.l.b16 %v526
        %v1047 = vunpack.c.h.b16 %v526
        %v1048 = vunpack.c.l.b16 %v527
        %v1049 = vunpack.c.h.b16 %v527
        %v1050 = vunpack.c.l.b16 %v528
        %v1051 = vunpack.c.h.b16 %v528
        %v1052 = vunpack.c.l.b16 %v529
        %v1053 = vunpack.c.h.b16 %v529
        %v1054 = vunpack.c.l.b16 %v530
        %v1055 = vunpack.c.h.b16 %v530
        %v1056 = vunpack.c.l.b16 %v531
        %v1057 = vunpack.c.h.b16 %v531
        %v1058 = vunpack.c.l.b16 %v532
        %v1059 = vunpack.c.h.b16 %v532
        %v1060 = vunpack.c.l.b16 %v533
        %v1061 = vunpack.c.h.b16 %v533
        %v1062 = vunpack.c.l.b16 %v534
        %v1063 = vunpack.c.h.b16 %v534
        %v1064 = vunpack.c.l.b16 %v535
        %v1065 = vunpack.c.h.b16 %v535
        %v1066 = vunpack.c.l.b16 %v536
        %v1067 = vunpack.c.h.b16 %v536
        %v1068 = vunpack.c.l.b16 %v537
        %v1069 = vunpack.c.h.b16 %v537
        %v1070 = vunpack.c.l.b16 %v538
        %v1071 = vunpack.c.h.b16 %v538
        %v1072 = vunpack.c.l.b16 %v539
        %v1073 = vunpack.c.h.b16 %v539
        %v1074 = vunpack.c.l.b16 %v540
        %v1075 = vunpack.c.h.b16 %v540
        %v1076 = vunpack.c.l.b16 %v541
        %v1077 = vunpack.c.h.b16 %v541
        %v1078 = vunpack.c.l.b16 %v542
        %v1079 = vunpack.c.h.b16 %v542
        %v1080 = vunpack.c.l.b16 %v543
        %v1081 = vunpack.c.h.b16 %v543
        %v1082 = vunpack.c.l.b16 %v544
        %v1083 = vunpack.c.h.b16 %v544
        %v1084 = vunpack.c.l.b16 %v545
        %v1085 = vunpack.c.h.b16 %v545
        %v1086 = vunpack.c.l.b16 %v546
        %v1087 = vunpack.c.h.b16 %v546
        %v1088 = vunpack.c.l.b16 %v547
        %v1089 = vunpack.c.h.b16 %v547
        %v1090 = vunpack.c.l.b16 %v548
        %v1091 = vunpack.c.h.b16 %v548
        %v1092 = vunpack.c.l.b16 %v549
        %v1093 = vunpack.c.h.b16 %v549
        %v1094 = vunpack.c.l.b16 %v550
        %v1095 = vunpack.c.h.b16 %v550
        %v1096 = vunpack.c.l.b16 %v551
        %v1097 = vunpack.c.h.b16 %v551
        %v1098 = vunpack.c.l.b16 %v552
        %v1099 = vunpack.c.h.b16 %v552
        %v1100 = vunpack.c.l.b16 %v553
        %v1101 = vunpack.c.h.b16 %v553
        %v1102 = vunpack.c.l.b16 %v554
        %v1103 = vunpack.c.h.b16 %v554
        %v1104 = vunpack.c.l.b16 %v555
        %v1105 = vunpack.c.h.b16 %v555
        %v1106 = vunpack.c.l.b16 %v556
        %v1107 = vunpack.c.h.b16 %v556
        %v1108 = vunpack.c.l.b16 %v557
        %v1109 = vunpack.c.h.b16 %v557
        %v1110 = vunpack.c.l.b16 %v558
        %v1111 = vunpack.c.h.b16 %v558
        %v1112 = vunpack.c.l.b16 %v559
        %v1113 = vunpack.c.h.b16 %v559
        %v1114 = vunpack.c.l.b16 %v560
        %v1115 = vunpack.c.h.b16 %v560
        %v1116 = vunpack.c.l.b16 %v561
        %v1117 = vunpack.c.h.b16 %v561
        %v1118 = vunpack.c.l.b16 %v562
        %v1119 = vunpack.c.h.b16 %v562
        %v1120 = vunpack.c.l.b16 %v563
        %v1121 = vunpack.c.h.b16 %v563
        %v1122 = vunpack.c.l.b16 %v564
        %v1123 = vunpack.c.h.b16 %v564
        %v1124 = vunpack.c.l.b16 %v565
        %v1125 = vunpack.c.h.b16 %v565
        %v1126 = vunpack.c.l.b16 %v566
        %v1127 = vunpack.c.h.b16 %v566
        %v1128 = vunpack.c.l.b16 %v567
        %v1129 = vunpack.c.h.b16 %v567
        %v1130 = vunpack.c.l.b16 %v568
        %v1131 = vunpack.c.h.b16 %v568
        %v1132 = vunpack.c.l.b16 %v569
        %v1133 = vunpack.c.h.b16 %v569
        %v1134 = vunpack.c.l.b16 %v570
        %v1135 = vunpack.c.h.b16 %v570
        %v1136 = vunpack.c.l.b16 %v571
        %v1137 = vunpack.c.h.b16 %v571
        %v1138 = vunpack.c.l.b16 %v572
        %v1139 = vunpack.c.h.b16 %v572
        %v1140 = vunpack.c.l.b16 %v573
        %v1141 = vunpack.c.h.b16 %v573
        %v1142 = vunpack.c.l.b16 %v574
        %v1143 = vunpack.c.h.b16 %v574
        %v1144 = vunpack.c.l.b16 %v575
        %v1145 = vunpack.c.h.b16 %v575
        %v1146 = vunpack.c.l.b16 %v576
        %v1147 = vunpack.c.h.b16 %v576
        %v1148 = vunpack.c.l.b16 %v577
        %v1149 = vunpack.c.h.b16 %v577
        %v1150 = vunpack.c.l.b16 %v578
        %v1151 = vunpack.c.h.b16 %v578
        %v1152 = vunpack.c.l.b16 %v579
        %v1153 = vunpack.c.h.b16 %v579
        %v1154 = vunpack.c.l.b16 %v580
        %v1155 = vunpack.c.h.b16 %v580
        %v1156 = vunpack.c.l.b16 %v581
        %v1157 = vunpack.c.h.b16 %v581
        %v1158 = vunpack.c.l.b16 %v582
        %v1159 = vunpack.c.h.b16 %v582
        %v1160 = vunpack.c.l.b16 %v583
        %v1161 = vunpack.c.h.b16 %v583
        %v1162 = vunpack.c.l.b16 %v584
        %v1163 = vunpack.c.h.b16 %v584
        %v1164 = vunpack.c.l.b16 %v585
        %v1165 = vunpack.c.h.b16 %v585
        %v1166 = vunpack.c.l.b16 %v586
        %v1167 = vunpack.c.h.b16 %v586
        %v1168 = vunpack.c.l.b16 %v587
        %v1169 = vunpack.c.h.b16 %v587
        %v1170 = vunpack.c.l.b16 %v588
        %v1171 = vunpack.c.h.b16 %v588
        %v1172 = vunpack.c.l.b16 %v589
        %v1173 = vunpack.c.h.b16 %v589
        %v1174 = vunpack.c.l.b16 %v590
        %v1175 = vunpack.c.h.b16 %v590
        %v1176 = vunpack.c.l.b16 %v591
        %v1177 = vunpack.c.h.b16 %v591
        %v1178 = vunpack.c.l.b16 %v592
        %v1179 = vunpack.c.h.b16 %v592
        %v1180 = vunpack.c.l.b16 %v593
        %v1181 = vunpack.c.h.b16 %v593
        %v1182 = vunpack.c.l.b16 %v594
        %v1183 = vunpack.c.h.b16 %v594
        %v1184 = vunpack.c.l.b16 %v595
        %v1185 = vunpack.c.h.b16 %v595
        %v1186 = vunpack.c.l.b16 %v596
        %v1187 = vunpack.c.h.b16 %v596
        %v1188 = vunpack.c.l.b16 %v597
        %v1189 = vunpack.c.h.b16 %v597
        %v1190 = vunpack.c.l.b16 %v598
        %v1191 = vunpack.c.h.b16 %v598
        %v1192 = vunpack.c.l.b16 %v599
        %v1193 = vunpack.c.h.b16 %v599
        %v1194 = vunpack.c.l.b16 %v600
        %v1195 = vunpack.c.h.b16 %v600
        %v1196 = vunpack.c.l.b16 %v601
        %v1197 = vunpack.c.h.b16 %v601
        %v1198 = vunpack.c.l.b16 %v602
        %v1199 = vunpack.c.h.b16 %v602
        %v1200 = vunpack.c.l.b16 %v603
        %v1201 = vunpack.c.h.b16 %v603
        %v1202 = vunpack.c.l.b16 %v604
        %v1203 = vunpack.c.h.b16 %v604
        %v1204 = vunpack.c.l.b16 %v605
        %v1205 = vunpack.c.h.b16 %v605
        %v1206 = vunpack.c.l.b16 %v606
        %v1207 = vunpack.c.h.b16 %v606
        %v1208 = vunpack.c.l.b16 %v607
        %v1209 = vunpack.c.h.b16 %v607
        %v1210 = vunpack.c.l.b16 %v608
        %v1211 = vunpack.c.h.b16 %v608
        %v1212 = vunpack.c.l.b16 %v609
        %v1213 = vunpack.c.h.b16 %v609
        %v1214 = vunpack.c.l.b16 %v610
        %v1215 = vunpack.c.h.b16 %v610
        %v1216 = vunpack.c.l.b16 %v611
        %v1217 = vunpack.c.h.b16 %v611
        %v1218 = vunpack.c.l.b16 %v612
        %v1219 = vunpack.c.h.b16 %v612
        %v1220 = vunpack.c.l.b16 %v613
        %v1221 = vunpack.c.h.b16 %v613
        %v1222 = vunpack.c.l.b16 %v614
        %v1223 = vunpack.c.h.b16 %v614
        %v1224 = vunpack.c.l.b16 %v615
        %v1225 = vunpack.c.h.b16 %v615
        %v1226 = vpack.c.b16 %v838, %v834
        %v1227 = vpack.c.b16 %v839, %v835
        %v1228 = vpack.c.b16 %v840, %v836
        %v1229 = vpack.c.b16 %v841, %v837
        %v1230 = vpack.c.b16 %v846, %v842
        %v1231 = vpack.c.b16 %v847, %v843
        %v1232 = vpack.c.b16 %v848, %v844
        %v1233 = vpack.c.b16 %v849, %v845
        %v1234 = vpack.c.b16 %v854, %v850
        %v1235 = vpack.c.b16 %v855, %v851
        %v1236 = vpack.c.b16 %v856, %v852
        %v1237 = vpack.c.b16 %v857, %v853
        %v1238 = vpack.c.b16 %v862, %v858
        %v1239 = vpack.c.b16 %v863, %v859
        %v1240 = vpack.c.b16 %v864, %v860
        %v1241 = vpack.c.b16 %v865, %v861
        %v1242 = vpack.c.b16 %v870, %v866
        %v1243 = vpack.c.b16 %v871, %v867
        %v1244 = vpack.c.b16 %v872, %v868
        %v1245 = vpack.c.b16 %v873, %v869
        %v1246 = vpack.c.b16 %v878, %v874
        %v1247 = vpack.c.b16 %v879, %v875
        %v1248 = vpack.c.b16 %v880, %v876
        %v1249 = vpack.c.b16 %v881, %v877
        %v1250 = vpack.c.b16 %v886, %v882
        %v1251 = vpack.c.b16 %v887, %v883
        %v1252 = vpack.c.b16 %v888, %v884
        %v1253 = vpack.c.b16 %v889, %v885
        %v1254 = vpack.c.b16 %v894, %v890
        %v1255 = vpack.c.b16 %v895, %v891
        %v1256 = vpack.c.b16 %v896, %v892
        %v1257 = vpack.c.b16 %v897, %v893
        %v1258 = vpack.c.b16 %v902, %v898
        %v1259 = vpack.c.b16 %v903, %v899
        %v1260 = vpack.c.b16 %v904, %v900
        %v1261 = vpack.c.b16 %v905, %v901
        %v1262 = vpack.c.b16 %v910, %v906
        %v1263 = vpack.c.b16 %v911, %v907
        %v1264 = vpack.c.b16 %v912, %v908
        %v1265 = vpack.c.b16 %v913, %v909
        %v1266 = vpack.c.b16 %v918, %v914
        %v1267 = vpack.c.b16 %v919, %v915
        %v1268 = vpack.c.b16 %v920, %v916
        %v1269 = vpack.c.b16 %v921, %v917
        %v1270 = vpack.c.b16 %v926, %v922
        %v1271 = vpack.c.b16 %v927, %v923
        %v1272 = vpack.c.b16 %v928, %v924
        %v1273 = vpack.c.b16 %v929, %v925
        %v1274 = vpack.c.b16 %v934, %v930
        %v1275 = vpack.c.b16 %v935, %v931
        %v1276 = vpack.c.b16 %v936, %v932
        %v1277 = vpack.c.b16 %v937, %v933
        %v1278 = vpack.c.b16 %v942, %v938
        %v1279 = vpack.c.b16 %v943, %v939
        %v1280 = vpack.c.b16 %v944, %v940
        %v1281 = vpack.c.b16 %v945, %v941
        %v1282 = vpack.c.b16 %v950, %v946
        %v1283 = vpack.c.b16 %v951, %v947
        %v1284 = vpack.c.b16 %v952, %v948
        %v1285 = vpack.c.b16 %v953, %v949
        %v1286 = vpack.c.b16 %v958, %v954
        %v1287 = vpack.c.b16 %v959, %v955
        %v1288 = vpack.c.b16 %v960, %v956
        %v1289 = vpack.c.b16 %v961, %v957
        %v1290 = vpack.c.b16 %v966, %v962
        %v1291 = vpack.c.b16 %v967, %v963
        %v1292 = vpack.c.b16 %v968, %v964
        %v1293 = vpack.c.b16 %v969, %v965
        %v1294 = vpack.c.b16 %v974, %v970
        %v1295 = vpack.c.b16 %v975, %v971
        %v1296 = vpack.c.b16 %v976, %v972
        %v1297 = vpack.c.b16 %v977, %v973
        %v1298 = vpack.c.b16 %v982, %v978
        %v1299 = vpack.c.b16 %v983, %v979
        %v1300 = vpack.c.b16 %v984, %v980
        %v1301 = vpack.c.b16 %v985, %v981
        %v1302 = vpack.c.b16 %v990, %v986
        %v1303 = vpack.c.b16 %v991, %v987
        %v1304 = vpack.c.b16 %v992, %v988
        %v1305 = vpack.c.b16 %v993, %v989
        %v1306 = vpack.c.b16 %v998, %v994
        %v1307 = vpack.c.b16 %v999, %v995
        %v1308 = vpack.c.b16 %v1000, %v996
        %v1309 = vpack.c.b16 %v1001, %v997
        %v1310 = vpack.c.b16 %v1006, %v1002
        %v1311 = vpack.c.b16 %v1007, %v1003
        %v1312 = vpack.c.b16 %v1008, %v1004
        %v1313 = vpack.c.b16 %v1009, %v1005
        %v1314 = vpack.c.b16 %v1014, %v1010
        %v1315 = vpack.c.b16 %v1015, %v1011
        %v1316 = vpack.c.b16 %v1016, %v1012
        %v1317 = vpack.c.b16 %v1017, %v1013
        %v1318 = vpack.c.b16 %v1022, %v1018
        %v1319 = vpack.c.b16 %v1023, %v1019
        %v1320 = vpack.c.b16 %v1024, %v1020
        %v1321 = vpack.c.b16 %v1025, %v1021
        %v1322 = vpack.c.b16 %v1030, %v1026
        %v1323 = vpack.c.b16 %v1031, %v1027
        %v1324 = vpack.c.b16 %v1032, %v1028
        %v1325 = vpack.c.b16 %v1033, %v1029
        %v1326 = vpack.c.b16 %v1038, %v1034
        %v1327 = vpack.c.b16 %v1039, %v1035
        %v1328 = vpack.c.b16 %v1040, %v1036
        %v1329 = vpack.c.b16 %v1041, %v1037
        %v1330 = vpack.c.b16 %v1046, %v1042
        %v1331 = vpack.c.b16 %v1047, %v1043
        %v1332 = vpack.c.b16 %v1048, %v1044
        %v1333 = vpack.c.b16 %v1049, %v1045
        %v1334 = vpack.c.b16 %v1054, %v1050
        %v1335 = vpack.c.b16 %v1055, %v1051
        %v1336 = vpack.c.b16 %v1056, %v1052
        %v1337 = vpack.c.b16 %v1057, %v1053
        %v1338 = vpack.c.b16 %v1062, %v1058
        %v1339 = vpack.c.b16 %v1063, %v1059
        %v1340 = vpack.c.b16 %v1064, %v1060
        %v1341 = vpack.c.b16 %v1065, %v1061
        %v1342 = vpack.c.b16 %v1070, %v1066
        %v1343 = vpack.c.b16 %v1071, %v1067
        %v1344 = vpack.c.b16 %v1072, %v1068
        %v1345 = vpack.c.b16 %v1073, %v1069
        %v1346 = vpack.c.b16 %v1078, %v1074
        %v1347 = vpack.c.b16 %v1079, %v1075
        %v1348 = vpack.c.b16 %v1080, %v1076
        %v1349 = vpack.c.b16 %v1081, %v1077
        %v1350 = vpack.c.b16 %v1086, %v1082
        %v1351 = vpack.c.b16 %v1087, %v1083
        %v1352 = vpack.c.b16 %v1088, %v1084
        %v1353 = vpack.c.b16 %v1089, %v1085
        %v1354 = vpack.c.b16 %v1094, %v1090
        %v1355 = vpack.c.b16 %v1095, %v1091
        %v1356 = vpack.c.b16 %v1096, %v1092
        %v1357 = vpack.c.b16 %v1097, %v1093
        %v1358 = vpack.c.b16 %v1102, %v1098
        %v1359 = vpack.c.b16 %v1103, %v1099
        %v1360 = vpack.c.b16 %v1104, %v1100
        %v1361 = vpack.c.b16 %v1105, %v1101
        %v1362 = vpack.c.b16 %v1110, %v1106
        %v1363 = vpack.c.b16 %v1111, %v1107
        %v1364 = vpack.c.b16 %v1112, %v1108
        %v1365 = vpack.c.b16 %v1113, %v1109
        %v1366 = vpack.c.b16 %v1118, %v1114
        %v1367 = vpack.c.b16 %v1119, %v1115
        %v1368 = vpack.c.b16 %v1120, %v1116
        %v1369 = vpack.c.b16 %v1121, %v1117
        %v1370 = vpack.c.b16 %v1126, %v1122
        %v1371 = vpack.c.b16 %v1127, %v1123
        %v1372 = vpack.c.b16 %v1128, %v1124
        %v1373 = vpack.c.b16 %v1129, %v1125
        %v1374 = vpack.c.b16 %v1134, %v1130
        %v1375 = vpack.c.b16 %v1135, %v1131
        %v1376 = vpack.c.b16 %v1136, %v1132
        %v1377 = vpack.c.b16 %v1137, %v1133
        %v1378 = vpack.c.b16 %v1142, %v1138
        %v1379 = vpack.c.b16 %v1143, %v1139
        %v1380 = vpack.c.b16 %v1144, %v1140
        %v1381 = vpack.c.b16 %v1145, %v1141
        %v1382 = vpack.c.b16 %v1150, %v1146
        %v1383 = vpack.c.b16 %v1151, %v1147
        %v1384 = vpack.c.b16 %v1152, %v1148
        %v1385 = vpack.c.b16 %v1153, %v1149
        %v1386 = vpack.c.b16 %v1158, %v1154
        %v1387 = vpack.c.b16 %v1159, %v1155
        %v1388 = vpack.c.b16 %v1160, %v1156
        %v1389 = vpack.c.b16 %v1161, %v1157
        %v1390 = vpack.c.b16 %v1166, %v1162
        %v1391 = vpack.c.b16 %v1167, %v1163
        %v1392 = vpack.c.b16 %v1168, %v1164
        %v1393 = vpack.c.b16 %v1169, %v1165
        %v1394 = vpack.c.b16 %v1174, %v1170
        %v1395 = vpack.c.b16 %v1175, %v1171
        %v1396 = vpack.c.b16 %v1176, %v1172
        %v1397 = vpack.c.b16 %v1177, %v1173
        %v1398 = vpack.c.b16 %v1182, %v1178
        %v1399 = vpack.c.b16 %v1183, %v1179
        %v1400 = vpack.c.b16 %v1184, %v1180
        %v1401 = vpack.c.b16 %v1185, %v1181
        %v1402 = vpack.c.b16 %v1190, %v1186
        %v1403 = vpack.c.b16 %v1191, %v1187
        %v1404 = vpack.c.b16 %v1192, %v1188
        %v1405 = vpack.c.b16 %v1193, %v1189
        %v1406 = vpack.c.b16 %v1198, %v1194
        %v1407 = vpack.c.b16 %v1199, %v1195
        %v1408 = vpack.c.b16 %v1200, %v1196
        %v1409 = vpack.c.b16 %v1201, %v1197
        %v1410 = vpack.c.b16 %v1206, %v1202
        %v1411 = vpack.c.b16 %v1207, %v1203
        %v1412 = vpack.c.b16 %v1208, %v1204
        %v1413 = vpack.c.b16 %v1209, %v1205
        %v1414 = vpack.c.b16 %v1214, %v1210
        %v1415 = vpack.c.b16 %v1215, %v1211
        %v1416 = vpack.c.b16 %v1216, %v1212
        %v1417 = vpack.c.b16 %v1217, %v1213
        %v1418 = vpack.c.b16 %v1222, %v1218
        %v1419 = vpack.c.b16 %v1223, %v1219
        %v1420 = vpack.c.b16 %v1224, %v1220
        %v1421 = vpack.c.b16 %v1225, %v1221
        %vm1618 = vcmask 130048
        %v1620 = vsel %vm1618, %v419, 0
        %1622 = vmatprep.subr.bf16.mxu0 %v1227
        %1623 = vmatpush1.bf16.msra.mxu0 %v1226
        %1624 = vmatprep.subr.bf16.mxu0 %v1231
        %1625 = vmatpush1.bf16.msra.mxu0 %v1230
        %1626 = vmatprep.subr.bf16.mxu0 %v1235
        %1627 = vmatpush1.bf16.msra.mxu0 %v1234
        %1628 = vmatprep.subr.bf16.mxu0 %v1239
        %1629 = vmatpush1.bf16.msra.mxu0 %v1238
        %1630 = vmatprep.subr.bf16.mxu0 %v1243
        %1631 = vmatpush1.bf16.msra.mxu0 %v1242
        %1632 = vmatprep.subr.bf16.mxu0 %v1247
        %1633 = vmatpush1.bf16.msra.mxu0 %v1246
        %1634 = vmatprep.subr.bf16.mxu0 %v1251
        %1635 = vmatpush1.bf16.msra.mxu0 %v1250
        %1636 = vmatprep.subr.bf16.mxu0 %v1255
        %1637 = vmatpush1.bf16.msra.mxu0 %v1254
        %1638 = vmatprep.subr.bf16.mxu0 %v1259
        %1639 = vmatpush1.bf16.msra.mxu0 %v1258
        %1640 = vmatprep.subr.bf16.mxu0 %v1263
        %1641 = vmatpush1.bf16.msra.mxu0 %v1262
        %1642 = vmatprep.subr.bf16.mxu0 %v1267
        %1643 = vmatpush1.bf16.msra.mxu0 %v1266
        %1644 = vmatprep.subr.bf16.mxu0 %v1271
        %1645 = vmatpush1.bf16.msra.mxu0 %v1270
        %1646 = vmatprep.subr.bf16.mxu0 %v1275
        %1647 = vmatpush1.bf16.msra.mxu0 %v1274
        %1648 = vmatprep.subr.bf16.mxu0 %v1279
        %1649 = vmatpush1.bf16.msra.mxu0 %v1278
        %1650 = vmatprep.subr.bf16.mxu0 %v1283
        %1651 = vmatpush1.bf16.msra.mxu0 %v1282
        %1652 = vmatprep.subr.bf16.mxu0 %v1287
        %1653 = vmatpush1.bf16.msra.mxu0 %v1286
        %1654 = vmatprep.mubr.bf16.mxu0 %v414
        %1655 = vmatmul.mubr.bf16.gmra.mrb[0].mxu0 %v413
        %v1656 = vpop.f32.mrb[0].mxu0
        %v1657 = vadd.f32 %v621, %v1656
        %v1658 = vpop.f32.mrb[0].mxu0
        %v1659 = vadd.f32 %v625, %v1658
        %v1660 = vpop.f32.mrb[0].mxu0
        %v1661 = vadd.f32 %v621, %v1660
        %v1662 = vpop.f32.mrb[0].mxu0
        %v1663 = vadd.f32 %v625, %v1662
        %1664 = vdwg.mxu0
        %1665 = vmatprep.subr.bf16.mxu0 %v1291
        %1666 = vmatpush1.bf16.msra.mxu0 %v1290
        %1667 = vmatprep.subr.bf16.mxu0 %v1295
        %1668 = vmatpush1.bf16.msra.mxu0 %v1294
        %1669 = vmatprep.subr.bf16.mxu0 %v1299
        %1670 = vmatpush1.bf16.msra.mxu0 %v1298
        %1671 = vmatprep.subr.bf16.mxu0 %v1303
        %1672 = vmatpush1.bf16.msra.mxu0 %v1302
        %1673 = vmatprep.subr.bf16.mxu0 %v1307
        %1674 = vmatpush1.bf16.msra.mxu0 %v1306
        %1675 = vmatprep.subr.bf16.mxu0 %v1311
        %1676 = vmatpush1.bf16.msra.mxu0 %v1310
        %1677 = vmatprep.subr.bf16.mxu0 %v1315
        %1678 = vmatpush1.bf16.msra.mxu0 %v1314
        %1679 = vmatprep.subr.bf16.mxu0 %v1319
        %1680 = vmatpush1.bf16.msra.mxu0 %v1318
        %1681 = vmatprep.subr.bf16.mxu0 %v1323
        %1682 = vmatpush1.bf16.msra.mxu0 %v1322
        %1683 = vmatprep.subr.bf16.mxu0 %v1327
        %1684 = vmatpush1.bf16.msra.mxu0 %v1326
        %1685 = vmatprep.subr.bf16.mxu0 %v1331
        %1686 = vmatpush1.bf16.msra.mxu0 %v1330
        %1687 = vmatprep.subr.bf16.mxu0 %v1335
        %1688 = vmatpush1.bf16.msra.mxu0 %v1334
        %1689 = vmatprep.subr.bf16.mxu0 %v1339
        %1690 = vmatpush1.bf16.msra.mxu0 %v1338
        %1691 = vmatprep.subr.bf16.mxu0 %v1343
        %1692 = vmatpush1.bf16.msra.mxu0 %v1342
        %1693 = vmatprep.subr.bf16.mxu0 %v1347
        %1694 = vmatpush1.bf16.msra.mxu0 %v1346
        %1695 = vmatprep.subr.bf16.mxu0 %v1351
        %1696 = vmatpush1.bf16.msra.mxu0 %v1350
        %1697 = vmatprep.mubr.bf16.mxu0 %v416
        %1698 = vmatmul.mubr.bf16.gmra.mrb[0].mxu0 %v415
        %v1699 = vpop.f32.mrb[0].mxu0
        %v1700 = vadd.f32 %v1657, %v1699
        %v1701 = vpop.f32.mrb[0].mxu0
        %v1702 = vadd.f32 %v1659, %v1701
        %v1703 = vpop.f32.mrb[0].mxu0
        %v1704 = vadd.f32 %v1661, %v1703
        %v1705 = vpop.f32.mrb[0].mxu0
        %v1706 = vadd.f32 %v1663, %v1705
        %1707 = vdwg.mxu0
        %1708 = vmatprep.subr.bf16.mxu0 %v1355
        %1709 = vmatpush1.bf16.msra.mxu0 %v1354
        %1710 = vmatprep.subr.bf16.mxu0 %v1359
        %1711 = vmatpush1.bf16.msra.mxu0 %v1358
        %1712 = vmatprep.subr.bf16.mxu0 %v1363
        %1713 = vmatpush1.bf16.msra.mxu0 %v1362
        %1714 = vmatprep.subr.bf16.mxu0 %v1367
        %1715 = vmatpush1.bf16.msra.mxu0 %v1366
        %1716 = vmatprep.subr.bf16.mxu0 %v1371
        %1717 = vmatpush1.bf16.msra.mxu0 %v1370
        %1718 = vmatprep.subr.bf16.mxu0 %v1375
        %1719 = vmatpush1.bf16.msra.mxu0 %v1374
        %1720 = vmatprep.subr.bf16.mxu0 %v1379
        %1721 = vmatpush1.bf16.msra.mxu0 %v1378
        %1722 = vmatprep.subr.bf16.mxu0 %v1383
        %1723 = vmatpush1.bf16.msra.mxu0 %v1382
        %1724 = vmatprep.subr.bf16.mxu0 %v1387
        %1725 = vmatpush1.bf16.msra.mxu0 %v1386
        %1726 = vmatprep.subr.bf16.mxu0 %v1391
        %1727 = vmatpush1.bf16.msra.mxu0 %v1390
        %1728 = vmatprep.subr.bf16.mxu0 %v1395
        %1729 = vmatpush1.bf16.msra.mxu0 %v1394
        %1730 = vmatprep.subr.bf16.mxu0 %v1399
        %1731 = vmatpush1.bf16.msra.mxu0 %v1398
        %1732 = vmatprep.subr.bf16.mxu0 %v1403
        %1733 = vmatpush1.bf16.msra.mxu0 %v1402
        %1734 = vmatprep.subr.bf16.mxu0 %v1407
        %1735 = vmatpush1.bf16.msra.mxu0 %v1406
        %1736 = vmatprep.subr.bf16.mxu0 %v1411
        %1737 = vmatpush1.bf16.msra.mxu0 %v1410
        %1738 = vmatprep.subr.bf16.mxu0 %v1415
        %1739 = vmatpush1.bf16.msra.mxu0 %v1414
        %1740 = vmatprep.mubr.bf16.mxu0 %v418
        %1741 = vmatmul.mubr.bf16.gmra.mrb[0].mxu0 %v417
        %v1742 = vpop.f32.mrb[0].mxu0
        %v1743 = vadd.f32 %v1700, %v1742
        %v1744 = vpop.f32.mrb[0].mxu0
        %v1745 = vadd.f32 %v1702, %v1744
        %v1746 = vpop.f32.mrb[0].mxu0
        %v1747 = vadd.f32 %v1704, %v1746
        %v1748 = vpop.f32.mrb[0].mxu0
        %v1749 = vadd.f32 %v1706, %v1748
        %1750 = vdwg.mxu0
        %1751 = vmatprep.subr.bf16.mxu0 %v1419
        %1752 = vmatpush1.bf16.msra.mxu0 %v1418
        %1753 = vmatprep.subr.bf16.mxu0 0
        %1754 = vmatpush1.bf16.msra.mxu0 0
        %1755 = vmatprep.subr.bf16.mxu0 0
        %1756 = vmatpush1.bf16.msra.mxu0 0
        %1757 = vmatprep.subr.bf16.mxu0 0
        %1758 = vmatpush1.bf16.msra.mxu0 0
        %1759 = vmatprep.subr.bf16.mxu0 0
        %1760 = vmatpush1.bf16.msra.mxu0 0
        %1761 = vmatprep.subr.bf16.mxu0 0
        %1762 = vmatpush1.bf16.msra.mxu0 0
        %1763 = vmatprep.subr.bf16.mxu0 0
        %1764 = vmatpush1.bf16.msra.mxu0 0
        %1765 = vmatprep.subr.bf16.mxu0 0
        %1766 = vmatpush1.bf16.msra.mxu0 0
        %1767 = vmatprep.subr.bf16.mxu0 0
        %1768 = vmatpush1.bf16.msra.mxu0 0
        %1769 = vmatprep.subr.bf16.mxu0 0
        %1770 = vmatpush1.bf16.msra.mxu0 0
        %1771 = vmatprep.subr.bf16.mxu0 0
        %1772 = vmatpush1.bf16.msra.mxu0 0
        %1773 = vmatprep.subr.bf16.mxu0 0
        %1774 = vmatpush1.bf16.msra.mxu0 0
        %1775 = vmatprep.subr.bf16.mxu0 0
        %1776 = vmatpush1.bf16.msra.mxu0 0
        %1777 = vmatprep.subr.bf16.mxu0 0
        %1778 = vmatpush1.bf16.msra.mxu0 0
        %1779 = vmatprep.subr.bf16.mxu0 0
        %1780 = vmatpush1.bf16.msra.mxu0 0
        %1781 = vmatprep.subr.bf16.mxu0 0
        %1782 = vmatpush1.bf16.msra.mxu0 0
        %1783 = vmatprep.mubr.bf16.mxu0 0
        %1784 = vmatmul.mubr.bf16.gmra.mrb[0].mxu0 %v1620
        %v1785 = vpop.f32.mrb[0].mxu0
        %v1786 = vadd.f32 %v1743, %v1785
        %v1787 = vpop.f32.mrb[0].mxu0
        %v1788 = vadd.f32 %v1745, %v1787
        %v1789 = vpop.f32.mrb[0].mxu0
        %v1790 = vadd.f32 %v1747, %v1789
        %v1791 = vpop.f32.mrb[0].mxu0
        %v1792 = vadd.f32 %v1749, %v1791
        %1793 = vdwg.mxu0
        %1794 = vmatprep.subr.bf16.mxu0 %v1229
        %1795 = vmatpush1.bf16.msra.mxu0 %v1228
        %1796 = vmatprep.subr.bf16.mxu0 %v1233
        %1797 = vmatpush1.bf16.msra.mxu0 %v1232
        %1798 = vmatprep.subr.bf16.mxu0 %v1237
        %1799 = vmatpush1.bf16.msra.mxu0 %v1236
        %1800 = vmatprep.subr.bf16.mxu0 %v1241
        %1801 = vmatpush1.bf16.msra.mxu0 %v1240
        %1802 = vmatprep.subr.bf16.mxu0 %v1245
        %1803 = vmatpush1.bf16.msra.mxu0 %v1244
        %1804 = vmatprep.subr.bf16.mxu0 %v1249
        %1805 = vmatpush1.bf16.msra.mxu0 %v1248
        %1806 = vmatprep.subr.bf16.mxu0 %v1253
        %1807 = vmatpush1.bf16.msra.mxu0 %v1252
        %1808 = vmatprep.subr.bf16.mxu0 %v1257
        %1809 = vmatpush1.bf16.msra.mxu0 %v1256
        %1810 = vmatprep.subr.bf16.mxu0 %v1261
        %1811 = vmatpush1.bf16.msra.mxu0 %v1260
        %1812 = vmatprep.subr.bf16.mxu0 %v1265
        %1813 = vmatpush1.bf16.msra.mxu0 %v1264
        %1814 = vmatprep.subr.bf16.mxu0 %v1269
        %1815 = vmatpush1.bf16.msra.mxu0 %v1268
        %1816 = vmatprep.subr.bf16.mxu0 %v1273
        %1817 = vmatpush1.bf16.msra.mxu0 %v1272
        %1818 = vmatprep.subr.bf16.mxu0 %v1277
        %1819 = vmatpush1.bf16.msra.mxu0 %v1276
        %1820 = vmatprep.subr.bf16.mxu0 %v1281
        %1821 = vmatpush1.bf16.msra.mxu0 %v1280
        %1822 = vmatprep.subr.bf16.mxu0 %v1285
        %1823 = vmatpush1.bf16.msra.mxu0 %v1284
        %1824 = vmatprep.subr.bf16.mxu0 %v1289
        %1825 = vmatpush1.bf16.msra.mxu0 %v1288
        %1826 = vmatprep.mubr.bf16.mxu0 %v414
        %1827 = vmatmul.mubr.bf16.gmra.mrb[0].mxu0 %v413
        %v1828 = vpop.f32.mrb[0].mxu0
        %v1829 = vadd.f32 %v629, %v1828
        %v1830 = vpop.f32.mrb[0].mxu0
        %v1831 = vadd.f32 %v633, %v1830
        %v1832 = vpop.f32.mrb[0].mxu0
        %v1833 = vadd.f32 %v629, %v1832
        %v1834 = vpop.f32.mrb[0].mxu0
        %v1835 = vadd.f32 %v633, %v1834
        %1836 = vdwg.mxu0
        %1837 = vmatprep.subr.bf16.mxu0 %v1293
        %1838 = vmatpush1.bf16.msra.mxu0 %v1292
        %1839 = vmatprep.subr.bf16.mxu0 %v1297
        %1840 = vmatpush1.bf16.msra.mxu0 %v1296
        %1841 = vmatprep.subr.bf16.mxu0 %v1301
        %1842 = vmatpush1.bf16.msra.mxu0 %v1300
        %1843 = vmatprep.subr.bf16.mxu0 %v1305
        %1844 = vmatpush1.bf16.msra.mxu0 %v1304
        %1845 = vmatprep.subr.bf16.mxu0 %v1309
        %1846 = vmatpush1.bf16.msra.mxu0 %v1308
        %1847 = vmatprep.subr.bf16.mxu0 %v1313
        %1848 = vmatpush1.bf16.msra.mxu0 %v1312
        %1849 = vmatprep.subr.bf16.mxu0 %v1317
        %1850 = vmatpush1.bf16.msra.mxu0 %v1316
        %1851 = vmatprep.subr.bf16.mxu0 %v1321
        %1852 = vmatpush1.bf16.msra.mxu0 %v1320
        %1853 = vmatprep.subr.bf16.mxu0 %v1325
        %1854 = vmatpush1.bf16.msra.mxu0 %v1324
        %1855 = vmatprep.subr.bf16.mxu0 %v1329
        %1856 = vmatpush1.bf16.msra.mxu0 %v1328
        %1857 = vmatprep.subr.bf16.mxu0 %v1333
        %1858 = vmatpush1.bf16.msra.mxu0 %v1332
        %1859 = vmatprep.subr.bf16.mxu0 %v1337
        %1860 = vmatpush1.bf16.msra.mxu0 %v1336
        %1861 = vmatprep.subr.bf16.mxu0 %v1341
        %1862 = vmatpush1.bf16.msra.mxu0 %v1340
        %1863 = vmatprep.subr.bf16.mxu0 %v1345
        %1864 = vmatpush1.bf16.msra.mxu0 %v1344
        %1865 = vmatprep.subr.bf16.mxu0 %v1349
        %1866 = vmatpush1.bf16.msra.mxu0 %v1348
        %1867 = vmatprep.subr.bf16.mxu0 %v1353
        %1868 = vmatpush1.bf16.msra.mxu0 %v1352
        %1869 = vmatprep.mubr.bf16.mxu0 %v416
        %1870 = vmatmul.mubr.bf16.gmra.mrb[0].mxu0 %v415
        %v1871 = vpop.f32.mrb[0].mxu0
        %v1872 = vadd.f32 %v1829, %v1871
        %v1873 = vpop.f32.mrb[0].mxu0
        %v1874 = vadd.f32 %v1831, %v1873
        %v1875 = vpop.f32.mrb[0].mxu0
        %v1876 = vadd.f32 %v1833, %v1875
        %v1877 = vpop.f32.mrb[0].mxu0
        %v1878 = vadd.f32 %v1835, %v1877
        %1879 = vdwg.mxu0
        %1880 = vmatprep.subr.bf16.mxu0 %v1357
        %1881 = vmatpush1.bf16.msra.mxu0 %v1356
        %1882 = vmatprep.subr.bf16.mxu0 %v1361
        %1883 = vmatpush1.bf16.msra.mxu0 %v1360
        %1884 = vmatprep.subr.bf16.mxu0 %v1365
        %1885 = vmatpush1.bf16.msra.mxu0 %v1364
        %1886 = vmatprep.subr.bf16.mxu0 %v1369
        %1887 = vmatpush1.bf16.msra.mxu0 %v1368
        %1888 = vmatprep.subr.bf16.mxu0 %v1373
        %1889 = vmatpush1.bf16.msra.mxu0 %v1372
        %1890 = vmatprep.subr.bf16.mxu0 %v1377
        %1891 = vmatpush1.bf16.msra.mxu0 %v1376
        %1892 = vmatprep.subr.bf16.mxu0 %v1381
        %1893 = vmatpush1.bf16.msra.mxu0 %v1380
        %1894 = vmatprep.subr.bf16.mxu0 %v1385
        %1895 = vmatpush1.bf16.msra.mxu0 %v1384
        %1896 = vmatprep.subr.bf16.mxu0 %v1389
        %1897 = vmatpush1.bf16.msra.mxu0 %v1388
        %1898 = vmatprep.subr.bf16.mxu0 %v1393
        %1899 = vmatpush1.bf16.msra.mxu0 %v1392
        %1900 = vmatprep.subr.bf16.mxu0 %v1397
        %1901 = vmatpush1.bf16.msra.mxu0 %v1396
        %1902 = vmatprep.subr.bf16.mxu0 %v1401
        %1903 = vmatpush1.bf16.msra.mxu0 %v1400
        %1904 = vmatprep.subr.bf16.mxu0 %v1405
        %1905 = vmatpush1.bf16.msra.mxu0 %v1404
        %1906 = vmatprep.subr.bf16.mxu0 %v1409
        %1907 = vmatpush1.bf16.msra.mxu0 %v1408
        %1908 = vmatprep.subr.bf16.mxu0 %v1413
        %1909 = vmatpush1.bf16.msra.mxu0 %v1412
        %1910 = vmatprep.subr.bf16.mxu0 %v1417
        %1911 = vmatpush1.bf16.msra.mxu0 %v1416
        %1912 = vmatprep.mubr.bf16.mxu0 %v418
        %1913 = vmatmul.mubr.bf16.gmra.mrb[0].mxu0 %v417
        %v1914 = vpop.f32.mrb[0].mxu0
        %v1915 = vadd.f32 %v1872, %v1914
        %v1916 = vpop.f32.mrb[0].mxu0
        %v1917 = vadd.f32 %v1874, %v1916
        %v1918 = vpop.f32.mrb[0].mxu0
        %v1919 = vadd.f32 %v1876, %v1918
        %v1920 = vpop.f32.mrb[0].mxu0
        %v1921 = vadd.f32 %v1878, %v1920
        %1922 = vdwg.mxu0
        %1923 = vmatprep.subr.bf16.mxu0 %v1421
        %1924 = vmatpush1.bf16.msra.mxu0 %v1420
        %1925 = vmatprep.subr.bf16.mxu0 0
        %1926 = vmatpush1.bf16.msra.mxu0 0
        %1927 = vmatprep.subr.bf16.mxu0 0
        %1928 = vmatpush1.bf16.msra.mxu0 0
        %1929 = vmatprep.subr.bf16.mxu0 0
        %1930 = vmatpush1.bf16.msra.mxu0 0
        %1931 = vmatprep.subr.bf16.mxu0 0
        %1932 = vmatpush1.bf16.msra.mxu0 0
        %1933 = vmatprep.subr.bf16.mxu0 0
        %1934 = vmatpush1.bf16.msra.mxu0 0
        %1935 = vmatprep.subr.bf16.mxu0 0
        %1936 = vmatpush1.bf16.msra.mxu0 0
        %1937 = vmatprep.subr.bf16.mxu0 0
        %1938 = vmatpush1.bf16.msra.mxu0 0
        %1939 = vmatprep.subr.bf16.mxu0 0
        %1940 = vmatpush1.bf16.msra.mxu0 0
        %1941 = vmatprep.subr.bf16.mxu0 0
        %1942 = vmatpush1.bf16.msra.mxu0 0
        %1943 = vmatprep.subr.bf16.mxu0 0
        %1944 = vmatpush1.bf16.msra.mxu0 0
        %1945 = vmatprep.subr.bf16.mxu0 0
        %1946 = vmatpush1.bf16.msra.mxu0 0
        %1947 = vmatprep.subr.bf16.mxu0 0
        %1948 = vmatpush1.bf16.msra.mxu0 0
        %1949 = vmatprep.subr.bf16.mxu0 0
        %1950 = vmatpush1.bf16.msra.mxu0 0
        %1951 = vmatprep.subr.bf16.mxu0 0
        %1952 = vmatpush1.bf16.msra.mxu0 0
        %1953 = vmatprep.subr.bf16.mxu0 0
        %1954 = vmatpush1.bf16.msra.mxu0 0
        %1955 = vmatprep.mubr.bf16.mxu0 0
        %1956 = vmatmul.mubr.bf16.gmra.mrb[0].mxu0 %v1620
        %v1957 = vpop.f32.mrb[0].mxu0
        %v1958 = vadd.f32 %v1915, %v1957
        %v1959 = vpop.f32.mrb[0].mxu0
        %v1960 = vadd.f32 %v1917, %v1959
        %v1961 = vpop.f32.mrb[0].mxu0
        %v1962 = vadd.f32 %v1919, %v1961
        %v1963 = vpop.f32.mrb[0].mxu0
        %v1964 = vadd.f32 %v1921, %v1963
        %1965 = vdwg.mxu0
        %v1966 = vld [vmem:[%s3] sm:$0xf]
        %v1968 = vlaneseq
        %v1969 = vshrl.u32 %v1968, 7
        %v1970 = vsub.s32 0, %v1969
        %v1971 = vrot.slane %v1966, %v1970
        %v1972 = vlaneseq
        %v1973 = vshrl.u32 %v1972, 7
        %v1974 = vsub.s32 1, %v1973
        %v1975 = vrot.slane %v1966, %v1974
        %v1976 = vlaneseq
        %v1977 = vshrl.u32 %v1976, 7
        %v1978 = vsub.s32 2, %v1977
        %v1979 = vrot.slane %v1966, %v1978
        %v1980 = vlaneseq
        %v1981 = vshrl.u32 %v1980, 7
        %v1982 = vsub.s32 3, %v1981
        %v1983 = vrot.slane %v1966, %v1982
        %v1988 = vmul.f32 %v1786, %v1971
        %v1989 = vmul.f32 %v1788, %v1975
        %v1990 = vmul.f32 %v1958, %v1979
        %v1991 = vmul.f32 %v1960, %v1983
        %v1992 = vmul.f32 %v1790, %v1971
        %v1993 = vmul.f32 %v1792, %v1975
        %v1994 = vmul.f32 %v1962, %v1979
        %v1995 = vmul.f32 %v1964, %v1983
        %v1996 = vand.u32 2147483647, %v1988
        %vm1997 = vcmp.le.f32.partialorder %v1996, 0.7853982
        %vm1998 = vcmp.lt.s32.totalorder %v1988, 0
        %v1999 = vand.u32 %v1988, 2139095040
        %v2000 = vshrl.u32 %v1999, 23
        %v2001 = vsub.s32 %v2000, 127
        %v2002 = vand.u32 2147483647, %v1988
        %v2003 = vand.u32 %v2002, 8388607
        %v2004 = vor.u32 %v2003, 8388608
        %v2005 = vsub.s32 0, %v2004
        %v2006 = vadd.s32 %v2001, 1
        %vm2007 = vcmp.gt.s32.totalorder %v2006, 0
        %v2008 = vsel %vm2007, %v2006, 0
        %v2009 = vshrl.u32 %v2008, 5
        %v2010 = vand.u32 %v2008, 31
        %v2011 = vsub.s32 32, %v2010
        %v2012 = vshrl.u32 683565275, %v2011
        %v2013 = vshll.u32 683565275, %v2010
        %v2014 = vshrl.u32 2475754826, %v2011
        %v2015 = vor.u32 %v2013, %v2014
        %v2016 = vshll.u32 2475754826, %v2010
        %v2017 = vshrl.u32 2131351028, %v2011
        %v2018 = vor.u32 %v2016, %v2017
        %v2019 = vshll.u32 2131351028, %v2010
        %v2020 = vshrl.u32 2102212464, %v2011
        %v2021 = vor.u32 %v2019, %v2020
        %v2022 = vshll.u32 2102212464, %v2010
        %v2023 = vshrl.u32 920167782, %v2011
        %v2024 = vor.u32 %v2022, %v2023
        %v2025 = vshll.u32 920167782, %v2010
        %v2026 = vshrl.u32 1326507024, %v2011
        %v2027 = vor.u32 %v2025, %v2026
        %vm2028 = vcmp.lt.s32.totalorder %v2009, 1
        %vm2029 = vcmp.lt.s32.totalorder %v2009, 2
        %vm2030 = vcmp.lt.s32.totalorder %v2009, 3
        %vm2031 = vcmp.lt.s32.totalorder %v2009, 4
        %v2032 = vsel %vm2028, %v2012, %v2015
        %v2033 = vsel %vm2031, %v2021, 2102212464
        %v2034 = vsel %vm2030, %v2018, %v2033
        %v2035 = vsel %vm2029, %v2032, %v2034
        %v2036 = vsel %vm2028, %v2015, %v2018
        %v2037 = vsel %vm2031, %v2024, 920167782
        %v2038 = vsel %vm2030, %v2021, %v2037
        %v2039 = vsel %vm2029, %v2036, %v2038
        %v2040 = vsel %vm2028, %v2018, %v2021
        %v2041 = vsel %vm2031, %v2027, 1326507024
        %v2042 = vsel %vm2030, %v2024, %v2041
        %v2043 = vsel %vm2029, %v2040, %v2042
        %v2044 = vshll.u32 %v2004, 8
        %v2045 = vmul.u32.u64.compose %v2044, %v2043
        %v2046 = vextract.low.u32 %v2045
        %v2047 = vextract.high.u32 %v2045
        %v2048 = vmul.u32.u64.compose %v2044, %v2039
        %v2049 = vextract.low.u32 %v2048
        %v2050 = vextract.high.u32 %v2048
        %v2051 = vmul.u32 %v2044, %v2035
        %v2052 = vadd.s32 %v2047, %v2049
        %vm2053 = vc.u32 %v2047, %v2049
        %v2054 = vadd.s32 %v2050, 1
        %v2055 = vsel %vm2053, %v2054, %v2050
        %v2056 = vadd.s32 %v2051, %v2055
        %v2057 = vadd.s32 %v2056, 536870912
        %v2058 = vshrl.u32 %v2057, 30
        %v2059 = vshll.u32 %v2058, 30
        %v2060 = vsub.s32 %v2056, %v2059
        %vm2061 = vcmp.lt.s32.totalorder %v2060, 0
        %v2062 = vsub.s32 0, %v2060
        %v2063 = vsel %vm2061, %v2062, %v2060
        %v2064 = vclz %v2063
        %v2065 = vsub.s32 %v2064, 2
        %vm2066 = vcmp.gt.s32.totalorder 0, %v2065
        %v2067 = vsel %vm2066, 0, %v2065
        %v2068 = vsub.s32 32, %v2067
        %v2069 = vshll.u32 %v2060, %v2067
        %v2070 = vshrl.u32 %v2052, %v2068
        %v2071 = vor.u32 %v2069, %v2070
        %v2072 = vsub.s32 4294967266, %v2067
        %v2073 = vadd.s32 %v2072, 127
        %v2074 = vshll.u32 %v2073, 23
        %v2075 = vor.u32 4788187, %v2074
        %v2076 = vand.u32 2147483647, %v2075
        %v2078 = vcvt.s32.f32 %v2071
        %v2079 = vmul.f32 %v2078, %v2076
        %v2080 = vxor.u32 %v2079, 2147483648
        %v2081 = vsel %vm1998, %v2080, %v2079
        %v2082 = vsub.s32 4, %v2058
        %v2083 = vsel %vm1998, %v2082, %v2058
        %v2084 = vsel %vm1997, %v1988, %v2081
        %v2085 = vsel %vm1997, 0, %v2083
        %v2086 = vcosq.f32.pop %v2084
        %v2087 = vsinq.f32.pop %v2084
        %vm2088 = vweird.f32 %v1988
        %v2089 = vadd.s32 %v2085, 3
        %v2090 = vand.u32 %v2089, 3
        %vm2091 = vcmp.lt.s32.totalorder %v2090, 2
        %vm2092 = vcmp.eq.s32.totalorder %v2090, 0
        %v2093 = vxor.u32 %v2087, 2147483648
        %v2094 = vsel %vm2092, %v2086, %v2093
        %vm2095 = vcmp.eq.s32.totalorder %v2090, 2
        %v2096 = vxor.u32 %v2086, 2147483648
        %v2097 = vsel %vm2095, %v2096, %v2087
        %v2098 = vsel %vm2091, %v2094, %v2097
        %v2099 = vsel %vm2088, nan, %v2098
        %v2100 = vand.u32 2147483647, %v1989
        %vm2101 = vcmp.le.f32.partialorder %v2100, 0.7853982
        %vm2102 = vcmp.lt.s32.totalorder %v1989, 0
        %v2103 = vand.u32 %v1989, 2139095040
        %v2104 = vshrl.u32 %v2103, 23
        %v2105 = vsub.s32 %v2104, 127
        %v2106 = vand.u32 2147483647, %v1989
        %v2107 = vand.u32 %v2106, 8388607
        %v2108 = vor.u32 %v2107, 8388608
        %v2109 = vsub.s32 0, %v2108
        %v2110 = vadd.s32 %v2105, 1
        %vm2111 = vcmp.gt.s32.totalorder %v2110, 0
        %v2112 = vsel %vm2111, %v2110, 0
        %v2113 = vshrl.u32 %v2112, 5
        %v2114 = vand.u32 %v2112, 31
        %v2115 = vsub.s32 32, %v2114
        %v2116 = vshrl.u32 683565275, %v2115
        %v2117 = vshll.u32 683565275, %v2114
        %v2118 = vshrl.u32 2475754826, %v2115
        %v2119 = vor.u32 %v2117, %v2118
        %v2120 = vshll.u32 2475754826, %v2114
        %v2121 = vshrl.u32 2131351028, %v2115
        %v2122 = vor.u32 %v2120, %v2121
        %v2123 = vshll.u32 2131351028, %v2114
        %v2124 = vshrl.u32 2102212464, %v2115
        %v2125 = vor.u32 %v2123, %v2124
        %v2126 = vshll.u32 2102212464, %v2114
        %v2127 = vshrl.u32 920167782, %v2115
        %v2128 = vor.u32 %v2126, %v2127
        %v2129 = vshll.u32 920167782, %v2114
        %v2130 = vshrl.u32 1326507024, %v2115
        %v2131 = vor.u32 %v2129, %v2130
        %vm2132 = vcmp.lt.s32.totalorder %v2113, 1
        %vm2133 = vcmp.lt.s32.totalorder %v2113, 2
        %vm2134 = vcmp.lt.s32.totalorder %v2113, 3
        %vm2135 = vcmp.lt.s32.totalorder %v2113, 4
        %v2136 = vsel %vm2132, %v2116, %v2119
        %v2137 = vsel %vm2135, %v2125, 2102212464
        %v2138 = vsel %vm2134, %v2122, %v2137
        %v2139 = vsel %vm2133, %v2136, %v2138
        %v2140 = vsel %vm2132, %v2119, %v2122
        %v2141 = vsel %vm2135, %v2128, 920167782
        %v2142 = vsel %vm2134, %v2125, %v2141
        %v2143 = vsel %vm2133, %v2140, %v2142
        %v2144 = vsel %vm2132, %v2122, %v2125
        %v2145 = vsel %vm2135, %v2131, 1326507024
        %v2146 = vsel %vm2134, %v2128, %v2145
        %v2147 = vsel %vm2133, %v2144, %v2146
        %v2148 = vshll.u32 %v2108, 8
        %v2149 = vmul.u32.u64.compose %v2148, %v2147
        %v2150 = vextract.low.u32 %v2149
        %v2151 = vextract.high.u32 %v2149
        %v2152 = vmul.u32.u64.compose %v2148, %v2143
        %v2153 = vextract.low.u32 %v2152
        %v2154 = vextract.high.u32 %v2152
        %v2155 = vmul.u32 %v2148, %v2139
        %v2156 = vadd.s32 %v2151, %v2153
        %vm2157 = vc.u32 %v2151, %v2153
        %v2158 = vadd.s32 %v2154, 1
        %v2159 = vsel %vm2157, %v2158, %v2154
        %v2160 = vadd.s32 %v2155, %v2159
        %v2161 = vadd.s32 %v2160, 536870912
        %v2162 = vshrl.u32 %v2161, 30
        %v2163 = vshll.u32 %v2162, 30
        %v2164 = vsub.s32 %v2160, %v2163
        %vm2165 = vcmp.lt.s32.totalorder %v2164, 0
        %v2166 = vsub.s32 0, %v2164
        %v2167 = vsel %vm2165, %v2166, %v2164
        %v2168 = vclz %v2167
        %v2169 = vsub.s32 %v2168, 2
        %vm2170 = vcmp.gt.s32.totalorder 0, %v2169
        %v2171 = vsel %vm2170, 0, %v2169
        %v2172 = vsub.s32 32, %v2171
        %v2173 = vshll.u32 %v2164, %v2171
        %v2174 = vshrl.u32 %v2156, %v2172
        %v2175 = vor.u32 %v2173, %v2174
        %v2176 = vsub.s32 4294967266, %v2171
        %v2177 = vadd.s32 %v2176, 127
        %v2178 = vshll.u32 %v2177, 23
        %v2179 = vor.u32 4788187, %v2178
        %v2180 = vand.u32 2147483647, %v2179
        %v2182 = vcvt.s32.f32 %v2175
        %v2183 = vmul.f32 %v2182, %v2180
        %v2184 = vxor.u32 %v2183, 2147483648
        %v2185 = vsel %vm2102, %v2184, %v2183
        %v2186 = vsub.s32 4, %v2162
        %v2187 = vsel %vm2102, %v2186, %v2162
        %v2188 = vsel %vm2101, %v1989, %v2185
        %v2189 = vsel %vm2101, 0, %v2187
        %v2190 = vcosq.f32.pop %v2188
        %v2191 = vsinq.f32.pop %v2188
        %vm2192 = vweird.f32 %v1989
        %v2193 = vadd.s32 %v2189, 3
        %v2194 = vand.u32 %v2193, 3
        %vm2195 = vcmp.lt.s32.totalorder %v2194, 2
        %vm2196 = vcmp.eq.s32.totalorder %v2194, 0
        %v2197 = vxor.u32 %v2191, 2147483648
        %v2198 = vsel %vm2196, %v2190, %v2197
        %vm2199 = vcmp.eq.s32.totalorder %v2194, 2
        %v2200 = vxor.u32 %v2190, 2147483648
        %v2201 = vsel %vm2199, %v2200, %v2191
        %v2202 = vsel %vm2195, %v2198, %v2201
        %v2203 = vsel %vm2192, nan, %v2202
        %v2204 = vand.u32 2147483647, %v1990
        %vm2205 = vcmp.le.f32.partialorder %v2204, 0.7853982
        %vm2206 = vcmp.lt.s32.totalorder %v1990, 0
        %v2207 = vand.u32 %v1990, 2139095040
        %v2208 = vshrl.u32 %v2207, 23
        %v2209 = vsub.s32 %v2208, 127
        %v2210 = vand.u32 2147483647, %v1990
        %v2211 = vand.u32 %v2210, 8388607
        %v2212 = vor.u32 %v2211, 8388608
        %v2213 = vsub.s32 0, %v2212
        %v2214 = vadd.s32 %v2209, 1
        %vm2215 = vcmp.gt.s32.totalorder %v2214, 0
        %v2216 = vsel %vm2215, %v2214, 0
        %v2217 = vshrl.u32 %v2216, 5
        %v2218 = vand.u32 %v2216, 31
        %v2219 = vsub.s32 32, %v2218
        %v2220 = vshrl.u32 683565275, %v2219
        %v2221 = vshll.u32 683565275, %v2218
        %v2222 = vshrl.u32 2475754826, %v2219
        %v2223 = vor.u32 %v2221, %v2222
        %v2224 = vshll.u32 2475754826, %v2218
        %v2225 = vshrl.u32 2131351028, %v2219
        %v2226 = vor.u32 %v2224, %v2225
        %v2227 = vshll.u32 2131351028, %v2218
        %v2228 = vshrl.u32 2102212464, %v2219
        %v2229 = vor.u32 %v2227, %v2228
        %v2230 = vshll.u32 2102212464, %v2218
        %v2231 = vshrl.u32 920167782, %v2219
        %v2232 = vor.u32 %v2230, %v2231
        %v2233 = vshll.u32 920167782, %v2218
        %v2234 = vshrl.u32 1326507024, %v2219
        %v2235 = vor.u32 %v2233, %v2234
        %vm2236 = vcmp.lt.s32.totalorder %v2217, 1
        %vm2237 = vcmp.lt.s32.totalorder %v2217, 2
        %vm2238 = vcmp.lt.s32.totalorder %v2217, 3
        %vm2239 = vcmp.lt.s32.totalorder %v2217, 4
        %v2240 = vsel %vm2236, %v2220, %v2223
        %v2241 = vsel %vm2239, %v2229, 2102212464
        %v2242 = vsel %vm2238, %v2226, %v2241
        %v2243 = vsel %vm2237, %v2240, %v2242
        %v2244 = vsel %vm2236, %v2223, %v2226
        %v2245 = vsel %vm2239, %v2232, 920167782
        %v2246 = vsel %vm2238, %v2229, %v2245
        %v2247 = vsel %vm2237, %v2244, %v2246
        %v2248 = vsel %vm2236, %v2226, %v2229
        %v2249 = vsel %vm2239, %v2235, 1326507024
        %v2250 = vsel %vm2238, %v2232, %v2249
        %v2251 = vsel %vm2237, %v2248, %v2250
        %v2252 = vshll.u32 %v2212, 8
        %v2253 = vmul.u32.u64.compose %v2252, %v2251
        %v2254 = vextract.low.u32 %v2253
        %v2255 = vextract.high.u32 %v2253
        %v2256 = vmul.u32.u64.compose %v2252, %v2247
        %v2257 = vextract.low.u32 %v2256
        %v2258 = vextract.high.u32 %v2256
        %v2259 = vmul.u32 %v2252, %v2243
        %v2260 = vadd.s32 %v2255, %v2257
        %vm2261 = vc.u32 %v2255, %v2257
        %v2262 = vadd.s32 %v2258, 1
        %v2263 = vsel %vm2261, %v2262, %v2258
        %v2264 = vadd.s32 %v2259, %v2263
        %v2265 = vadd.s32 %v2264, 536870912
        %v2266 = vshrl.u32 %v2265, 30
        %v2267 = vshll.u32 %v2266, 30
        %v2268 = vsub.s32 %v2264, %v2267
        %vm2269 = vcmp.lt.s32.totalorder %v2268, 0
        %v2270 = vsub.s32 0, %v2268
        %v2271 = vsel %vm2269, %v2270, %v2268
        %v2272 = vclz %v2271
        %v2273 = vsub.s32 %v2272, 2
        %vm2274 = vcmp.gt.s32.totalorder 0, %v2273
        %v2275 = vsel %vm2274, 0, %v2273
        %v2276 = vsub.s32 32, %v2275
        %v2277 = vshll.u32 %v2268, %v2275
        %v2278 = vshrl.u32 %v2260, %v2276
        %v2279 = vor.u32 %v2277, %v2278
        %v2280 = vsub.s32 4294967266, %v2275
        %v2281 = vadd.s32 %v2280, 127
        %v2282 = vshll.u32 %v2281, 23
        %v2283 = vor.u32 4788187, %v2282
        %v2284 = vand.u32 2147483647, %v2283
        %v2286 = vcvt.s32.f32 %v2279
        %v2287 = vmul.f32 %v2286, %v2284
        %v2288 = vxor.u32 %v2287, 2147483648
        %v2289 = vsel %vm2206, %v2288, %v2287
        %v2290 = vsub.s32 4, %v2266
        %v2291 = vsel %vm2206, %v2290, %v2266
        %v2292 = vsel %vm2205, %v1990, %v2289
        %v2293 = vsel %vm2205, 0, %v2291
        %v2294 = vcosq.f32.pop %v2292
        %v2295 = vsinq.f32.pop %v2292
        %vm2296 = vweird.f32 %v1990
        %v2297 = vadd.s32 %v2293, 3
        %v2298 = vand.u32 %v2297, 3
        %vm2299 = vcmp.lt.s32.totalorder %v2298, 2
        %vm2300 = vcmp.eq.s32.totalorder %v2298, 0
        %v2301 = vxor.u32 %v2295, 2147483648
        %v2302 = vsel %vm2300, %v2294, %v2301
        %vm2303 = vcmp.eq.s32.totalorder %v2298, 2
        %v2304 = vxor.u32 %v2294, 2147483648
        %v2305 = vsel %vm2303, %v2304, %v2295
        %v2306 = vsel %vm2299, %v2302, %v2305
        %v2307 = vsel %vm2296, nan, %v2306
        %v2308 = vand.u32 2147483647, %v1991
        %vm2309 = vcmp.le.f32.partialorder %v2308, 0.7853982
        %vm2310 = vcmp.lt.s32.totalorder %v1991, 0
        %v2311 = vand.u32 %v1991, 2139095040
        %v2312 = vshrl.u32 %v2311, 23
        %v2313 = vsub.s32 %v2312, 127
        %v2314 = vand.u32 2147483647, %v1991
        %v2315 = vand.u32 %v2314, 8388607
        %v2316 = vor.u32 %v2315, 8388608
        %v2317 = vsub.s32 0, %v2316
        %v2318 = vadd.s32 %v2313, 1
        %vm2319 = vcmp.gt.s32.totalorder %v2318, 0
        %v2320 = vsel %vm2319, %v2318, 0
        %v2321 = vshrl.u32 %v2320, 5
        %v2322 = vand.u32 %v2320, 31
        %v2323 = vsub.s32 32, %v2322
        %v2324 = vshrl.u32 683565275, %v2323
        %v2325 = vshll.u32 683565275, %v2322
        %v2326 = vshrl.u32 2475754826, %v2323
        %v2327 = vor.u32 %v2325, %v2326
        %v2328 = vshll.u32 2475754826, %v2322
        %v2329 = vshrl.u32 2131351028, %v2323
        %v2330 = vor.u32 %v2328, %v2329
        %v2331 = vshll.u32 2131351028, %v2322
        %v2332 = vshrl.u32 2102212464, %v2323
        %v2333 = vor.u32 %v2331, %v2332
        %v2334 = vshll.u32 2102212464, %v2322
        %v2335 = vshrl.u32 920167782, %v2323
        %v2336 = vor.u32 %v2334, %v2335
        %v2337 = vshll.u32 920167782, %v2322
        %v2338 = vshrl.u32 1326507024, %v2323
        %v2339 = vor.u32 %v2337, %v2338
        %vm2340 = vcmp.lt.s32.totalorder %v2321, 1
        %vm2341 = vcmp.lt.s32.totalorder %v2321, 2
        %vm2342 = vcmp.lt.s32.totalorder %v2321, 3
        %vm2343 = vcmp.lt.s32.totalorder %v2321, 4
        %v2344 = vsel %vm2340, %v2324, %v2327
        %v2345 = vsel %vm2343, %v2333, 2102212464
        %v2346 = vsel %vm2342, %v2330, %v2345
        %v2347 = vsel %vm2341, %v2344, %v2346
        %v2348 = vsel %vm2340, %v2327, %v2330
        %v2349 = vsel %vm2343, %v2336, 920167782
        %v2350 = vsel %vm2342, %v2333, %v2349
        %v2351 = vsel %vm2341, %v2348, %v2350
        %v2352 = vsel %vm2340, %v2330, %v2333
        %v2353 = vsel %vm2343, %v2339, 1326507024
        %v2354 = vsel %vm2342, %v2336, %v2353
        %v2355 = vsel %vm2341, %v2352, %v2354
        %v2356 = vshll.u32 %v2316, 8
        %v2357 = vmul.u32.u64.compose %v2356, %v2355
        %v2358 = vextract.low.u32 %v2357
        %v2359 = vextract.high.u32 %v2357
        %v2360 = vmul.u32.u64.compose %v2356, %v2351
        %v2361 = vextract.low.u32 %v2360
        %v2362 = vextract.high.u32 %v2360
        %v2363 = vmul.u32 %v2356, %v2347
        %v2364 = vadd.s32 %v2359, %v2361
        %vm2365 = vc.u32 %v2359, %v2361
        %v2366 = vadd.s32 %v2362, 1
        %v2367 = vsel %vm2365, %v2366, %v2362
        %v2368 = vadd.s32 %v2363, %v2367
        %v2369 = vadd.s32 %v2368, 536870912
        %v2370 = vshrl.u32 %v2369, 30
        %v2371 = vshll.u32 %v2370, 30
        %v2372 = vsub.s32 %v2368, %v2371
        %vm2373 = vcmp.lt.s32.totalorder %v2372, 0
        %v2374 = vsub.s32 0, %v2372
        %v2375 = vsel %vm2373, %v2374, %v2372
        %v2376 = vclz %v2375
        %v2377 = vsub.s32 %v2376, 2
        %vm2378 = vcmp.gt.s32.totalorder 0, %v2377
        %v2379 = vsel %vm2378, 0, %v2377
        %v2380 = vsub.s32 32, %v2379
        %v2381 = vshll.u32 %v2372, %v2379
        %v2382 = vshrl.u32 %v2364, %v2380
        %v2383 = vor.u32 %v2381, %v2382
        %v2384 = vsub.s32 4294967266, %v2379
        %v2385 = vadd.s32 %v2384, 127
        %v2386 = vshll.u32 %v2385, 23
        %v2387 = vor.u32 4788187, %v2386
        %v2388 = vand.u32 2147483647, %v2387
        %v2390 = vcvt.s32.f32 %v2383
        %v2391 = vmul.f32 %v2390, %v2388
        %v2392 = vxor.u32 %v2391, 2147483648
        %v2393 = vsel %vm2310, %v2392, %v2391
        %v2394 = vsub.s32 4, %v2370
        %v2395 = vsel %vm2310, %v2394, %v2370
        %v2396 = vsel %vm2309, %v1991, %v2393
        %v2397 = vsel %vm2309, 0, %v2395
        %v2398 = vcosq.f32.pop %v2396
        %v2399 = vsinq.f32.pop %v2396
        %vm2400 = vweird.f32 %v1991
        %v2401 = vadd.s32 %v2397, 3
        %v2402 = vand.u32 %v2401, 3
        %vm2403 = vcmp.lt.s32.totalorder %v2402, 2
        %vm2404 = vcmp.eq.s32.totalorder %v2402, 0
        %v2405 = vxor.u32 %v2399, 2147483648
        %v2406 = vsel %vm2404, %v2398, %v2405
        %vm2407 = vcmp.eq.s32.totalorder %v2402, 2
        %v2408 = vxor.u32 %v2398, 2147483648
        %v2409 = vsel %vm2407, %v2408, %v2399
        %v2410 = vsel %vm2403, %v2406, %v2409
        %v2411 = vsel %vm2400, nan, %v2410
        %v2412 = vand.u32 2147483647, %v1992
        %vm2413 = vcmp.le.f32.partialorder %v2412, 0.7853982
        %vm2414 = vcmp.lt.s32.totalorder %v1992, 0
        %v2415 = vand.u32 %v1992, 2139095040
        %v2416 = vshrl.u32 %v2415, 23
        %v2417 = vsub.s32 %v2416, 127
        %v2418 = vand.u32 2147483647, %v1992
        %v2419 = vand.u32 %v2418, 8388607
        %v2420 = vor.u32 %v2419, 8388608
        %v2421 = vsub.s32 0, %v2420
        %v2422 = vadd.s32 %v2417, 1
        %vm2423 = vcmp.gt.s32.totalorder %v2422, 0
        %v2424 = vsel %vm2423, %v2422, 0
        %v2425 = vshrl.u32 %v2424, 5
        %v2426 = vand.u32 %v2424, 31
        %v2427 = vsub.s32 32, %v2426
        %v2428 = vshrl.u32 683565275, %v2427
        %v2429 = vshll.u32 683565275, %v2426
        %v2430 = vshrl.u32 2475754826, %v2427
        %v2431 = vor.u32 %v2429, %v2430
        %v2432 = vshll.u32 2475754826, %v2426
        %v2433 = vshrl.u32 2131351028, %v2427
        %v2434 = vor.u32 %v2432, %v2433
        %v2435 = vshll.u32 2131351028, %v2426
        %v2436 = vshrl.u32 2102212464, %v2427
        %v2437 = vor.u32 %v2435, %v2436
        %v2438 = vshll.u32 2102212464, %v2426
        %v2439 = vshrl.u32 920167782, %v2427
        %v2440 = vor.u32 %v2438, %v2439
        %v2441 = vshll.u32 920167782, %v2426
        %v2442 = vshrl.u32 1326507024, %v2427
        %v2443 = vor.u32 %v2441, %v2442
        %vm2444 = vcmp.lt.s32.totalorder %v2425, 1
        %vm2445 = vcmp.lt.s32.totalorder %v2425, 2
        %vm2446 = vcmp.lt.s32.totalorder %v2425, 3
        %vm2447 = vcmp.lt.s32.totalorder %v2425, 4
        %v2448 = vsel %vm2444, %v2428, %v2431
        %v2449 = vsel %vm2447, %v2437, 2102212464
        %v2450 = vsel %vm2446, %v2434, %v2449
        %v2451 = vsel %vm2445, %v2448, %v2450
        %v2452 = vsel %vm2444, %v2431, %v2434
        %v2453 = vsel %vm2447, %v2440, 920167782
        %v2454 = vsel %vm2446, %v2437, %v2453
        %v2455 = vsel %vm2445, %v2452, %v2454
        %v2456 = vsel %vm2444, %v2434, %v2437
        %v2457 = vsel %vm2447, %v2443, 1326507024
        %v2458 = vsel %vm2446, %v2440, %v2457
        %v2459 = vsel %vm2445, %v2456, %v2458
        %v2460 = vshll.u32 %v2420, 8
        %v2461 = vmul.u32.u64.compose %v2460, %v2459
        %v2462 = vextract.low.u32 %v2461
        %v2463 = vextract.high.u32 %v2461
        %v2464 = vmul.u32.u64.compose %v2460, %v2455
        %v2465 = vextract.low.u32 %v2464
        %v2466 = vextract.high.u32 %v2464
        %v2467 = vmul.u32 %v2460, %v2451
        %v2468 = vadd.s32 %v2463, %v2465
        %vm2469 = vc.u32 %v2463, %v2465
        %v2470 = vadd.s32 %v2466, 1
        %v2471 = vsel %vm2469, %v2470, %v2466
        %v2472 = vadd.s32 %v2467, %v2471
        %v2473 = vadd.s32 %v2472, 536870912
        %v2474 = vshrl.u32 %v2473, 30
        %v2475 = vshll.u32 %v2474, 30
        %v2476 = vsub.s32 %v2472, %v2475
        %vm2477 = vcmp.lt.s32.totalorder %v2476, 0
        %v2478 = vsub.s32 0, %v2476
        %v2479 = vsel %vm2477, %v2478, %v2476
        %v2480 = vclz %v2479
        %v2481 = vsub.s32 %v2480, 2
        %vm2482 = vcmp.gt.s32.totalorder 0, %v2481
        %v2483 = vsel %vm2482, 0, %v2481
        %v2484 = vsub.s32 32, %v2483
        %v2485 = vshll.u32 %v2476, %v2483
        %v2486 = vshrl.u32 %v2468, %v2484
        %v2487 = vor.u32 %v2485, %v2486
        %v2488 = vsub.s32 4294967266, %v2483
        %v2489 = vadd.s32 %v2488, 127
        %v2490 = vshll.u32 %v2489, 23
        %v2491 = vor.u32 4788187, %v2490
        %v2492 = vand.u32 2147483647, %v2491
        %v2494 = vcvt.s32.f32 %v2487
        %v2495 = vmul.f32 %v2494, %v2492
        %v2496 = vxor.u32 %v2495, 2147483648
        %v2497 = vsel %vm2414, %v2496, %v2495
        %v2498 = vsub.s32 4, %v2474
        %v2499 = vsel %vm2414, %v2498, %v2474
        %v2500 = vsel %vm2413, %v1992, %v2497
        %v2501 = vsel %vm2413, 0, %v2499
        %v2502 = vcosq.f32.pop %v2500
        %v2503 = vsinq.f32.pop %v2500
        %vm2504 = vweird.f32 %v1992
        %v2505 = vadd.s32 %v2501, 3
        %v2506 = vand.u32 %v2505, 3
        %vm2507 = vcmp.lt.s32.totalorder %v2506, 2
        %vm2508 = vcmp.eq.s32.totalorder %v2506, 0
        %v2509 = vxor.u32 %v2503, 2147483648
        %v2510 = vsel %vm2508, %v2502, %v2509
        %vm2511 = vcmp.eq.s32.totalorder %v2506, 2
        %v2512 = vxor.u32 %v2502, 2147483648
        %v2513 = vsel %vm2511, %v2512, %v2503
        %v2514 = vsel %vm2507, %v2510, %v2513
        %v2515 = vsel %vm2504, nan, %v2514
        %v2516 = vand.u32 2147483647, %v1993
        %vm2517 = vcmp.le.f32.partialorder %v2516, 0.7853982
        %vm2518 = vcmp.lt.s32.totalorder %v1993, 0
        %v2519 = vand.u32 %v1993, 2139095040
        %v2520 = vshrl.u32 %v2519, 23
        %v2521 = vsub.s32 %v2520, 127
        %v2522 = vand.u32 2147483647, %v1993
        %v2523 = vand.u32 %v2522, 8388607
        %v2524 = vor.u32 %v2523, 8388608
        %v2525 = vsub.s32 0, %v2524
        %v2526 = vadd.s32 %v2521, 1
        %vm2527 = vcmp.gt.s32.totalorder %v2526, 0
        %v2528 = vsel %vm2527, %v2526, 0
        %v2529 = vshrl.u32 %v2528, 5
        %v2530 = vand.u32 %v2528, 31
        %v2531 = vsub.s32 32, %v2530
        %v2532 = vshrl.u32 683565275, %v2531
        %v2533 = vshll.u32 683565275, %v2530
        %v2534 = vshrl.u32 2475754826, %v2531
        %v2535 = vor.u32 %v2533, %v2534
        %v2536 = vshll.u32 2475754826, %v2530
        %v2537 = vshrl.u32 2131351028, %v2531
        %v2538 = vor.u32 %v2536, %v2537
        %v2539 = vshll.u32 2131351028, %v2530
        %v2540 = vshrl.u32 2102212464, %v2531
        %v2541 = vor.u32 %v2539, %v2540
        %v2542 = vshll.u32 2102212464, %v2530
        %v2543 = vshrl.u32 920167782, %v2531
        %v2544 = vor.u32 %v2542, %v2543
        %v2545 = vshll.u32 920167782, %v2530
        %v2546 = vshrl.u32 1326507024, %v2531
        %v2547 = vor.u32 %v2545, %v2546
        %vm2548 = vcmp.lt.s32.totalorder %v2529, 1
        %vm2549 = vcmp.lt.s32.totalorder %v2529, 2
        %vm2550 = vcmp.lt.s32.totalorder %v2529, 3
        %vm2551 = vcmp.lt.s32.totalorder %v2529, 4
        %v2552 = vsel %vm2548, %v2532, %v2535
        %v2553 = vsel %vm2551, %v2541, 2102212464
        %v2554 = vsel %vm2550, %v2538, %v2553
        %v2555 = vsel %vm2549, %v2552, %v2554
        %v2556 = vsel %vm2548, %v2535, %v2538
        %v2557 = vsel %vm2551, %v2544, 920167782
        %v2558 = vsel %vm2550, %v2541, %v2557
        %v2559 = vsel %vm2549, %v2556, %v2558
        %v2560 = vsel %vm2548, %v2538, %v2541
        %v2561 = vsel %vm2551, %v2547, 1326507024
        %v2562 = vsel %vm2550, %v2544, %v2561
        %v2563 = vsel %vm2549, %v2560, %v2562
        %v2564 = vshll.u32 %v2524, 8
        %v2565 = vmul.u32.u64.compose %v2564, %v2563
        %v2566 = vextract.low.u32 %v2565
        %v2567 = vextract.high.u32 %v2565
        %v2568 = vmul.u32.u64.compose %v2564, %v2559
        %v2569 = vextract.low.u32 %v2568
        %v2570 = vextract.high.u32 %v2568
        %v2571 = vmul.u32 %v2564, %v2555
        %v2572 = vadd.s32 %v2567, %v2569
        %vm2573 = vc.u32 %v2567, %v2569
        %v2574 = vadd.s32 %v2570, 1
        %v2575 = vsel %vm2573, %v2574, %v2570
        %v2576 = vadd.s32 %v2571, %v2575
        %v2577 = vadd.s32 %v2576, 536870912
        %v2578 = vshrl.u32 %v2577, 30
        %v2579 = vshll.u32 %v2578, 30
        %v2580 = vsub.s32 %v2576, %v2579
        %vm2581 = vcmp.lt.s32.totalorder %v2580, 0
        %v2582 = vsub.s32 0, %v2580
        %v2583 = vsel %vm2581, %v2582, %v2580
        %v2584 = vclz %v2583
        %v2585 = vsub.s32 %v2584, 2
        %vm2586 = vcmp.gt.s32.totalorder 0, %v2585
        %v2587 = vsel %vm2586, 0, %v2585
        %v2588 = vsub.s32 32, %v2587
        %v2589 = vshll.u32 %v2580, %v2587
        %v2590 = vshrl.u32 %v2572, %v2588
        %v2591 = vor.u32 %v2589, %v2590
        %v2592 = vsub.s32 4294967266, %v2587
        %v2593 = vadd.s32 %v2592, 127
        %v2594 = vshll.u32 %v2593, 23
        %v2595 = vor.u32 4788187, %v2594
        %v2596 = vand.u32 2147483647, %v2595
        %v2598 = vcvt.s32.f32 %v2591
        %v2599 = vmul.f32 %v2598, %v2596
        %v2600 = vxor.u32 %v2599, 2147483648
        %v2601 = vsel %vm2518, %v2600, %v2599
        %v2602 = vsub.s32 4, %v2578
        %v2603 = vsel %vm2518, %v2602, %v2578
        %v2604 = vsel %vm2517, %v1993, %v2601
        %v2605 = vsel %vm2517, 0, %v2603
        %v2606 = vcosq.f32.pop %v2604
        %v2607 = vsinq.f32.pop %v2604
        %vm2608 = vweird.f32 %v1993
        %v2609 = vadd.s32 %v2605, 3
        %v2610 = vand.u32 %v2609, 3
        %vm2611 = vcmp.lt.s32.totalorder %v2610, 2
        %vm2612 = vcmp.eq.s32.totalorder %v2610, 0
        %v2613 = vxor.u32 %v2607, 2147483648
        %v2614 = vsel %vm2612, %v2606, %v2613
        %vm2615 = vcmp.eq.s32.totalorder %v2610, 2
        %v2616 = vxor.u32 %v2606, 2147483648
        %v2617 = vsel %vm2615, %v2616, %v2607
        %v2618 = vsel %vm2611, %v2614, %v2617
        %v2619 = vsel %vm2608, nan, %v2618
        %v2620 = vand.u32 2147483647, %v1994
        %vm2621 = vcmp.le.f32.partialorder %v2620, 0.7853982
        %vm2622 = vcmp.lt.s32.totalorder %v1994, 0
        %v2623 = vand.u32 %v1994, 2139095040
        %v2624 = vshrl.u32 %v2623, 23
        %v2625 = vsub.s32 %v2624, 127
        %v2626 = vand.u32 2147483647, %v1994
        %v2627 = vand.u32 %v2626, 8388607
        %v2628 = vor.u32 %v2627, 8388608
        %v2629 = vsub.s32 0, %v2628
        %v2630 = vadd.s32 %v2625, 1
        %vm2631 = vcmp.gt.s32.totalorder %v2630, 0
        %v2632 = vsel %vm2631, %v2630, 0
        %v2633 = vshrl.u32 %v2632, 5
        %v2634 = vand.u32 %v2632, 31
        %v2635 = vsub.s32 32, %v2634
        %v2636 = vshrl.u32 683565275, %v2635
        %v2637 = vshll.u32 683565275, %v2634
        %v2638 = vshrl.u32 2475754826, %v2635
        %v2639 = vor.u32 %v2637, %v2638
        %v2640 = vshll.u32 2475754826, %v2634
        %v2641 = vshrl.u32 2131351028, %v2635
        %v2642 = vor.u32 %v2640, %v2641
        %v2643 = vshll.u32 2131351028, %v2634
        %v2644 = vshrl.u32 2102212464, %v2635
        %v2645 = vor.u32 %v2643, %v2644
        %v2646 = vshll.u32 2102212464, %v2634
        %v2647 = vshrl.u32 920167782, %v2635
        %v2648 = vor.u32 %v2646, %v2647
        %v2649 = vshll.u32 920167782, %v2634
        %v2650 = vshrl.u32 1326507024, %v2635
        %v2651 = vor.u32 %v2649, %v2650
        %vm2652 = vcmp.lt.s32.totalorder %v2633, 1
        %vm2653 = vcmp.lt.s32.totalorder %v2633, 2
        %vm2654 = vcmp.lt.s32.totalorder %v2633, 3
        %vm2655 = vcmp.lt.s32.totalorder %v2633, 4
        %v2656 = vsel %vm2652, %v2636, %v2639
        %v2657 = vsel %vm2655, %v2645, 2102212464
        %v2658 = vsel %vm2654, %v2642, %v2657
        %v2659 = vsel %vm2653, %v2656, %v2658
        %v2660 = vsel %vm2652, %v2639, %v2642
        %v2661 = vsel %vm2655, %v2648, 920167782
        %v2662 = vsel %vm2654, %v2645, %v2661
        %v2663 = vsel %vm2653, %v2660, %v2662
        %v2664 = vsel %vm2652, %v2642, %v2645
        %v2665 = vsel %vm2655, %v2651, 1326507024
        %v2666 = vsel %vm2654, %v2648, %v2665
        %v2667 = vsel %vm2653, %v2664, %v2666
        %v2668 = vshll.u32 %v2628, 8
        %v2669 = vmul.u32.u64.compose %v2668, %v2667
        %v2670 = vextract.low.u32 %v2669
        %v2671 = vextract.high.u32 %v2669
        %v2672 = vmul.u32.u64.compose %v2668, %v2663
        %v2673 = vextract.low.u32 %v2672
        %v2674 = vextract.high.u32 %v2672
        %v2675 = vmul.u32 %v2668, %v2659
        %v2676 = vadd.s32 %v2671, %v2673
        %vm2677 = vc.u32 %v2671, %v2673
        %v2678 = vadd.s32 %v2674, 1
        %v2679 = vsel %vm2677, %v2678, %v2674
        %v2680 = vadd.s32 %v2675, %v2679
        %v2681 = vadd.s32 %v2680, 536870912
        %v2682 = vshrl.u32 %v2681, 30
        %v2683 = vshll.u32 %v2682, 30
        %v2684 = vsub.s32 %v2680, %v2683
        %vm2685 = vcmp.lt.s32.totalorder %v2684, 0
        %v2686 = vsub.s32 0, %v2684
        %v2687 = vsel %vm2685, %v2686, %v2684
        %v2688 = vclz %v2687
        %v2689 = vsub.s32 %v2688, 2
        %vm2690 = vcmp.gt.s32.totalorder 0, %v2689
        %v2691 = vsel %vm2690, 0, %v2689
        %v2692 = vsub.s32 32, %v2691
        %v2693 = vshll.u32 %v2684, %v2691
        %v2694 = vshrl.u32 %v2676, %v2692
        %v2695 = vor.u32 %v2693, %v2694
        %v2696 = vsub.s32 4294967266, %v2691
        %v2697 = vadd.s32 %v2696, 127
        %v2698 = vshll.u32 %v2697, 23
        %v2699 = vor.u32 4788187, %v2698
        %v2700 = vand.u32 2147483647, %v2699
        %v2702 = vcvt.s32.f32 %v2695
        %v2703 = vmul.f32 %v2702, %v2700
        %v2704 = vxor.u32 %v2703, 2147483648
        %v2705 = vsel %vm2622, %v2704, %v2703
        %v2706 = vsub.s32 4, %v2682
        %v2707 = vsel %vm2622, %v2706, %v2682
        %v2708 = vsel %vm2621, %v1994, %v2705
        %v2709 = vsel %vm2621, 0, %v2707
        %v2710 = vcosq.f32.pop %v2708
        %v2711 = vsinq.f32.pop %v2708
        %vm2712 = vweird.f32 %v1994
        %v2713 = vadd.s32 %v2709, 3
        %v2714 = vand.u32 %v2713, 3
        %vm2715 = vcmp.lt.s32.totalorder %v2714, 2
        %vm2716 = vcmp.eq.s32.totalorder %v2714, 0
        %v2717 = vxor.u32 %v2711, 2147483648
        %v2718 = vsel %vm2716, %v2710, %v2717
        %vm2719 = vcmp.eq.s32.totalorder %v2714, 2
        %v2720 = vxor.u32 %v2710, 2147483648
        %v2721 = vsel %vm2719, %v2720, %v2711
        %v2722 = vsel %vm2715, %v2718, %v2721
        %v2723 = vsel %vm2712, nan, %v2722
        %v2724 = vand.u32 2147483647, %v1995
        %vm2725 = vcmp.le.f32.partialorder %v2724, 0.7853982
        %vm2726 = vcmp.lt.s32.totalorder %v1995, 0
        %v2727 = vand.u32 %v1995, 2139095040
        %v2728 = vshrl.u32 %v2727, 23
        %v2729 = vsub.s32 %v2728, 127
        %v2730 = vand.u32 2147483647, %v1995
        %v2731 = vand.u32 %v2730, 8388607
        %v2732 = vor.u32 %v2731, 8388608
        %v2733 = vsub.s32 0, %v2732
        %v2734 = vadd.s32 %v2729, 1
        %vm2735 = vcmp.gt.s32.totalorder %v2734, 0
        %v2736 = vsel %vm2735, %v2734, 0
        %v2737 = vshrl.u32 %v2736, 5
        %v2738 = vand.u32 %v2736, 31
        %v2739 = vsub.s32 32, %v2738
        %v2740 = vshrl.u32 683565275, %v2739
        %v2741 = vshll.u32 683565275, %v2738
        %v2742 = vshrl.u32 2475754826, %v2739
        %v2743 = vor.u32 %v2741, %v2742
        %v2744 = vshll.u32 2475754826, %v2738
        %v2745 = vshrl.u32 2131351028, %v2739
        %v2746 = vor.u32 %v2744, %v2745
        %v2747 = vshll.u32 2131351028, %v2738
        %v2748 = vshrl.u32 2102212464, %v2739
        %v2749 = vor.u32 %v2747, %v2748
        %v2750 = vshll.u32 2102212464, %v2738
        %v2751 = vshrl.u32 920167782, %v2739
        %v2752 = vor.u32 %v2750, %v2751
        %v2753 = vshll.u32 920167782, %v2738
        %v2754 = vshrl.u32 1326507024, %v2739
        %v2755 = vor.u32 %v2753, %v2754
        %vm2756 = vcmp.lt.s32.totalorder %v2737, 1
        %vm2757 = vcmp.lt.s32.totalorder %v2737, 2
        %vm2758 = vcmp.lt.s32.totalorder %v2737, 3
        %vm2759 = vcmp.lt.s32.totalorder %v2737, 4
        %v2760 = vsel %vm2756, %v2740, %v2743
        %v2761 = vsel %vm2759, %v2749, 2102212464
        %v2762 = vsel %vm2758, %v2746, %v2761
        %v2763 = vsel %vm2757, %v2760, %v2762
        %v2764 = vsel %vm2756, %v2743, %v2746
        %v2765 = vsel %vm2759, %v2752, 920167782
        %v2766 = vsel %vm2758, %v2749, %v2765
        %v2767 = vsel %vm2757, %v2764, %v2766
        %v2768 = vsel %vm2756, %v2746, %v2749
        %v2769 = vsel %vm2759, %v2755, 1326507024
        %v2770 = vsel %vm2758, %v2752, %v2769
        %v2771 = vsel %vm2757, %v2768, %v2770
        %v2772 = vshll.u32 %v2732, 8
        %v2773 = vmul.u32.u64.compose %v2772, %v2771
        %v2774 = vextract.low.u32 %v2773
        %v2775 = vextract.high.u32 %v2773
        %v2776 = vmul.u32.u64.compose %v2772, %v2767
        %v2777 = vextract.low.u32 %v2776
        %v2778 = vextract.high.u32 %v2776
        %v2779 = vmul.u32 %v2772, %v2763
        %v2780 = vadd.s32 %v2775, %v2777
        %vm2781 = vc.u32 %v2775, %v2777
        %v2782 = vadd.s32 %v2778, 1
        %v2783 = vsel %vm2781, %v2782, %v2778
        %v2784 = vadd.s32 %v2779, %v2783
        %v2785 = vadd.s32 %v2784, 536870912
        %v2786 = vshrl.u32 %v2785, 30
        %v2787 = vshll.u32 %v2786, 30
        %v2788 = vsub.s32 %v2784, %v2787
        %vm2789 = vcmp.lt.s32.totalorder %v2788, 0
        %v2790 = vsub.s32 0, %v2788
        %v2791 = vsel %vm2789, %v2790, %v2788
        %v2792 = vclz %v2791
        %v2793 = vsub.s32 %v2792, 2
        %vm2794 = vcmp.gt.s32.totalorder 0, %v2793
        %v2795 = vsel %vm2794, 0, %v2793
        %v2796 = vsub.s32 32, %v2795
        %v2797 = vshll.u32 %v2788, %v2795
        %v2798 = vshrl.u32 %v2780, %v2796
        %v2799 = vor.u32 %v2797, %v2798
        %v2800 = vsub.s32 4294967266, %v2795
        %v2801 = vadd.s32 %v2800, 127
        %v2802 = vshll.u32 %v2801, 23
        %v2803 = vor.u32 4788187, %v2802
        %v2804 = vand.u32 2147483647, %v2803
        %v2806 = vcvt.s32.f32 %v2799
        %v2807 = vmul.f32 %v2806, %v2804
        %v2808 = vxor.u32 %v2807, 2147483648
        %v2809 = vsel %vm2726, %v2808, %v2807
        %v2810 = vsub.s32 4, %v2786
        %v2811 = vsel %vm2726, %v2810, %v2786
        %v2812 = vsel %vm2725, %v1995, %v2809
        %v2813 = vsel %vm2725, 0, %v2811
        %v2814 = vcosq.f32.pop %v2812
        %v2815 = vsinq.f32.pop %v2812
        %vm2816 = vweird.f32 %v1995
        %v2817 = vadd.s32 %v2813, 3
        %v2818 = vand.u32 %v2817, 3
        %vm2819 = vcmp.lt.s32.totalorder %v2818, 2
        %vm2820 = vcmp.eq.s32.totalorder %v2818, 0
        %v2821 = vxor.u32 %v2815, 2147483648
        %v2822 = vsel %vm2820, %v2814, %v2821
        %vm2823 = vcmp.eq.s32.totalorder %v2818, 2
        %v2824 = vxor.u32 %v2814, 2147483648
        %v2825 = vsel %vm2823, %v2824, %v2815
        %v2826 = vsel %vm2819, %v2822, %v2825
        %v2827 = vsel %vm2816, nan, %v2826
        %v2828 = vmul.f32 %v1786, 0.1
        %v2829 = vmul.f32 %v1788, 0.1
        %v2830 = vmul.f32 %v1958, 0.1
        %v2831 = vmul.f32 %v1960, 0.1
        %v2832 = vmul.f32 %v1790, 0.1
        %v2833 = vmul.f32 %v1792, 0.1
        %v2834 = vmul.f32 %v1962, 0.1
        %v2835 = vmul.f32 %v1964, 0.1
        %v2836 = vadd.f32 %v2099, %v2828
        %v2837 = vadd.f32 %v2203, %v2829
        %v2838 = vadd.f32 %v2307, %v2830
        %v2839 = vadd.f32 %v2411, %v2831
        %v2840 = vadd.f32 %v2515, %v2832
        %v2841 = vadd.f32 %v2619, %v2833
        %v2842 = vadd.f32 %v2723, %v2834
        %v2843 = vadd.f32 %v2827, %v2835
        %v2844 = vpack.c.bf16 %v2840, %v2836
        %v2845 = vpack.c.bf16 %v2841, %v2837
        %v2846 = vpack.c.bf16 %v2842, %v2838
        %v2847 = vpack.c.bf16 %v2843, %v2839
        %v2848 = vld [vmem:[#allocation7] sm:$0xff]
        %v2849 = vld [vmem:[#allocation7 + $0x8] sm:$0xff]
        %v2850 = vld [vmem:[#allocation7 + $0x10] sm:$0xff]
        %v2851 = vld [vmem:[#allocation7 + $0x18] sm:$0xff]
        %v2852 = vld [vmem:[#allocation7 + $0x20] sm:$0xff]
        %v2853 = vld [vmem:[#allocation7 + $0x28] sm:$0xff]
        %v2854 = vld [vmem:[#allocation7 + $0x30] sm:$0xff]
        %v2855 = vld [vmem:[#allocation7 + $0x38] sm:$0xff]
        %v2856 = vld [vmem:[#allocation7 + $0x40] sm:$0xff]
        %v2857 = vld [vmem:[#allocation7 + $0x48] sm:$0xff]
        %v2858 = vld [vmem:[#allocation7 + $0x50] sm:$0xff]
        %v2859 = vld [vmem:[#allocation7 + $0x58] sm:$0xff]
        %v2860 = vld [vmem:[#allocation7 + $0x60] sm:$0xff]
        %v2861 = vld [vmem:[#allocation7 + $0x68] sm:$0xff]
        %v2862 = vld [vmem:[#allocation7 + $0x70] sm:$0xff]
        %v2863 = vld [vmem:[#allocation7 + $0x78] sm:$0xff]
        %v2864 = vld [vmem:[#allocation7 + $0x80] sm:$0xff]
        %v2865 = vld [vmem:[#allocation7 + $0x88] sm:$0xff]
        %v2866 = vld [vmem:[#allocation7 + $0x90] sm:$0xff]
        %v2867 = vld [vmem:[#allocation7 + $0x98] sm:$0xff]
        %v2868 = vld [vmem:[#allocation7 + $0xa0] sm:$0xff]
        %v2869 = vld [vmem:[#allocation7 + $0xa8] sm:$0xff]
        %v2870 = vld [vmem:[#allocation7 + $0xb0] sm:$0xff]
        %v2871 = vld [vmem:[#allocation7 + $0xb8] sm:$0xff]
        %v2872 = vld [vmem:[#allocation7 + $0xc0] sm:$0xff]
        %v2873 = vld [vmem:[#allocation7 + $0xc8] sm:$0xff]
        %v2874 = vld [vmem:[#allocation7 + $0xd0] sm:$0xff]
        %v2875 = vld [vmem:[#allocation7 + $0xd8] sm:$0xff]
        %v2876 = vld [vmem:[#allocation7 + $0xe0] sm:$0xff]
        %v2877 = vld [vmem:[#allocation7 + $0xe8] sm:$0xff]
        %v2878 = vld [vmem:[#allocation7 + $0xf0] sm:$0xff]
        %v2879 = vld [vmem:[#allocation7 + $0xf8] sm:$0xff]
        %v2880 = vld [vmem:[#allocation7 + $0x100] sm:$0xff]
        %v2881 = vld [vmem:[#allocation7 + $0x108] sm:$0xff]
        %v2882 = vld [vmem:[#allocation7 + $0x110] sm:$0xff]
        %v2883 = vld [vmem:[#allocation7 + $0x118] sm:$0xff]
        %v2884 = vld [vmem:[#allocation7 + $0x120] sm:$0xff]
        %v2885 = vld [vmem:[#allocation7 + $0x128] sm:$0xff]
        %v2886 = vld [vmem:[#allocation7 + $0x130] sm:$0xff]
        %v2887 = vld [vmem:[#allocation7 + $0x138] sm:$0xff]
        %v2888 = vld [vmem:[#allocation7 + $0x140] sm:$0xff]
        %v2889 = vld [vmem:[#allocation7 + $0x148] sm:$0xff]
        %v2890 = vld [vmem:[#allocation7 + $0x150] sm:$0xff]
        %v2891 = vld [vmem:[#allocation7 + $0x158] sm:$0xff]
        %v2892 = vld [vmem:[#allocation7 + $0x160] sm:$0xff]
        %v2893 = vld [vmem:[#allocation7 + $0x168] sm:$0xff]
        %v2894 = vld [vmem:[#allocation7 + $0x170] sm:$0xff]
        %v2895 = vld [vmem:[#allocation7 + $0x178] sm:$0xff]
        %v2896 = vld [vmem:[#allocation7 + $0x180] sm:$0xff]
        %v2897 = vld [vmem:[#allocation7 + $0x188] sm:$0xff]
        %v2898 = vld [vmem:[#allocation7 + $0x190] sm:$0xff]
        %v2899 = vld [vmem:[#allocation7 + $0x198] sm:$0xff]
        %v2900 = vld [vmem:[#allocation7 + $0x1a0] sm:$0xff]
        %v2901 = vld [vmem:[#allocation7 + $0x1a8] sm:$0xff]
        %v2902 = vld [vmem:[#allocation7 + $0x1b0] sm:$0xff]
        %v2903 = vld [vmem:[#allocation7 + $0x1b8] sm:$0xff]
        %v2904 = vld [vmem:[#allocation7 + $0x1c0] sm:$0xff]
        %v2905 = vld [vmem:[#allocation7 + $0x1c8] sm:$0xff]
        %v2906 = vld [vmem:[#allocation7 + $0x1d0] sm:$0xff]
        %v2907 = vld [vmem:[#allocation7 + $0x1d8] sm:$0xff]
        %v2908 = vld [vmem:[#allocation7 + $0x1e0] sm:$0xff]
        %v2909 = vld [vmem:[#allocation7 + $0x1e8] sm:$0xff]
        %v2910 = vld [vmem:[#allocation7 + $0x1f0] sm:$0xff]
        %v2911 = vld [vmem:[#allocation7 + $0x1f8] sm:$0xff]
        %v2912 = vld [vmem:[%s5] sm:$0x3]
        %v2914 = vlaneseq
        %v2915 = vshrl.u32 %v2914, 7
        %v2916 = vsub.s32 0, %v2915
        %v2917 = vrot.slane %v2912, %v2916
        %v2918 = vlaneseq
        %v2919 = vshrl.u32 %v2918, 7
        %v2920 = vsub.s32 1, %v2919
        %v2921 = vrot.slane %v2912, %v2920
        %v2988 = vunpack.c.l.b16 %v2848
        %v2989 = vunpack.c.h.b16 %v2848
        %v2990 = vunpack.c.l.b16 %v2849
        %v2991 = vunpack.c.h.b16 %v2849
        %v2992 = vunpack.c.l.b16 %v2850
        %v2993 = vunpack.c.h.b16 %v2850
        %v2994 = vunpack.c.l.b16 %v2851
        %v2995 = vunpack.c.h.b16 %v2851
        %v2996 = vunpack.c.l.b16 %v2852
        %v2997 = vunpack.c.h.b16 %v2852
        %v2998 = vunpack.c.l.b16 %v2853
        %v2999 = vunpack.c.h.b16 %v2853
        %v3000 = vunpack.c.l.b16 %v2854
        %v3001 = vunpack.c.h.b16 %v2854
        %v3002 = vunpack.c.l.b16 %v2855
        %v3003 = vunpack.c.h.b16 %v2855
        %v3004 = vunpack.c.l.b16 %v2856
        %v3005 = vunpack.c.h.b16 %v2856
        %v3006 = vunpack.c.l.b16 %v2857
        %v3007 = vunpack.c.h.b16 %v2857
        %v3008 = vunpack.c.l.b16 %v2858
        %v3009 = vunpack.c.h.b16 %v2858
        %v3010 = vunpack.c.l.b16 %v2859
        %v3011 = vunpack.c.h.b16 %v2859
        %v3012 = vunpack.c.l.b16 %v2860
        %v3013 = vunpack.c.h.b16 %v2860
        %v3014 = vunpack.c.l.b16 %v2861
        %v3015 = vunpack.c.h.b16 %v2861
        %v3016 = vunpack.c.l.b16 %v2862
        %v3017 = vunpack.c.h.b16 %v2862
        %v3018 = vunpack.c.l.b16 %v2863
        %v3019 = vunpack.c.h.b16 %v2863
        %v3020 = vunpack.c.l.b16 %v2864
        %v3021 = vunpack.c.h.b16 %v2864
        %v3022 = vunpack.c.l.b16 %v2865
        %v3023 = vunpack.c.h.b16 %v2865
        %v3024 = vunpack.c.l.b16 %v2866
        %v3025 = vunpack.c.h.b16 %v2866
        %v3026 = vunpack.c.l.b16 %v2867
        %v3027 = vunpack.c.h.b16 %v2867
        %v3028 = vunpack.c.l.b16 %v2868
        %v3029 = vunpack.c.h.b16 %v2868
        %v3030 = vunpack.c.l.b16 %v2869
        %v3031 = vunpack.c.h.b16 %v2869
        %v3032 = vunpack.c.l.b16 %v2870
        %v3033 = vunpack.c.h.b16 %v2870
        %v3034 = vunpack.c.l.b16 %v2871
        %v3035 = vunpack.c.h.b16 %v2871
        %v3036 = vunpack.c.l.b16 %v2872
        %v3037 = vunpack.c.h.b16 %v2872
        %v3038 = vunpack.c.l.b16 %v2873
        %v3039 = vunpack.c.h.b16 %v2873
        %v3040 = vunpack.c.l.b16 %v2874
        %v3041 = vunpack.c.h.b16 %v2874
        %v3042 = vunpack.c.l.b16 %v2875
        %v3043 = vunpack.c.h.b16 %v2875
        %v3044 = vunpack.c.l.b16 %v2876
        %v3045 = vunpack.c.h.b16 %v2876
        %v3046 = vunpack.c.l.b16 %v2877
        %v3047 = vunpack.c.h.b16 %v2877
        %v3048 = vunpack.c.l.b16 %v2878
        %v3049 = vunpack.c.h.b16 %v2878
        %v3050 = vunpack.c.l.b16 %v2879
        %v3051 = vunpack.c.h.b16 %v2879
        %v3052 = vunpack.c.l.b16 %v2880
        %v3053 = vunpack.c.h.b16 %v2880
        %v3054 = vunpack.c.l.b16 %v2881
        %v3055 = vunpack.c.h.b16 %v2881
        %v3056 = vunpack.c.l.b16 %v2882
        %v3057 = vunpack.c.h.b16 %v2882
        %v3058 = vunpack.c.l.b16 %v2883
        %v3059 = vunpack.c.h.b16 %v2883
        %v3060 = vunpack.c.l.b16 %v2884
        %v3061 = vunpack.c.h.b16 %v2884
        %v3062 = vunpack.c.l.b16 %v2885
        %v3063 = vunpack.c.h.b16 %v2885
        %v3064 = vunpack.c.l.b16 %v2886
        %v3065 = vunpack.c.h.b16 %v2886
        %v3066 = vunpack.c.l.b16 %v2887
        %v3067 = vunpack.c.h.b16 %v2887
        %v3068 = vunpack.c.l.b16 %v2888
        %v3069 = vunpack.c.h.b16 %v2888
        %v3070 = vunpack.c.l.b16 %v2889
        %v3071 = vunpack.c.h.b16 %v2889
        %v3072 = vunpack.c.l.b16 %v2890
        %v3073 = vunpack.c.h.b16 %v2890
        %v3074 = vunpack.c.l.b16 %v2891
        %v3075 = vunpack.c.h.b16 %v2891
        %v3076 = vunpack.c.l.b16 %v2892
        %v3077 = vunpack.c.h.b16 %v2892
        %v3078 = vunpack.c.l.b16 %v2893
        %v3079 = vunpack.c.h.b16 %v2893
        %v3080 = vunpack.c.l.b16 %v2894
        %v3081 = vunpack.c.h.b16 %v2894
        %v3082 = vunpack.c.l.b16 %v2895
        %v3083 = vunpack.c.h.b16 %v2895
        %v3084 = vunpack.c.l.b16 %v2896
        %v3085 = vunpack.c.h.b16 %v2896
        %v3086 = vunpack.c.l.b16 %v2897
        %v3087 = vunpack.c.h.b16 %v2897
        %v3088 = vunpack.c.l.b16 %v2898
        %v3089 = vunpack.c.h.b16 %v2898
        %v3090 = vunpack.c.l.b16 %v2899
        %v3091 = vunpack.c.h.b16 %v2899
        %v3092 = vunpack.c.l.b16 %v2900
        %v3093 = vunpack.c.h.b16 %v2900
        %v3094 = vunpack.c.l.b16 %v2901
        %v3095 = vunpack.c.h.b16 %v2901
        %v3096 = vunpack.c.l.b16 %v2902
        %v3097 = vunpack.c.h.b16 %v2902
        %v3098 = vunpack.c.l.b16 %v2903
        %v3099 = vunpack.c.h.b16 %v2903
        %v3100 = vunpack.c.l.b16 %v2904
        %v3101 = vunpack.c.h.b16 %v2904
        %v3102 = vunpack.c.l.b16 %v2905
        %v3103 = vunpack.c.h.b16 %v2905
        %v3104 = vunpack.c.l.b16 %v2906
        %v3105 = vunpack.c.h.b16 %v2906
        %v3106 = vunpack.c.l.b16 %v2907
        %v3107 = vunpack.c.h.b16 %v2907
        %v3108 = vunpack.c.l.b16 %v2908
        %v3109 = vunpack.c.h.b16 %v2908
        %v3110 = vunpack.c.l.b16 %v2909
        %v3111 = vunpack.c.h.b16 %v2909
        %v3112 = vunpack.c.l.b16 %v2910
        %v3113 = vunpack.c.h.b16 %v2910
        %v3114 = vunpack.c.l.b16 %v2911
        %v3115 = vunpack.c.h.b16 %v2911
        %v3116 = vpack.c.b16 %v2990, %v2988
        %v3117 = vpack.c.b16 %v2991, %v2989
        %v3118 = vpack.c.b16 %v2994, %v2992
        %v3119 = vpack.c.b16 %v2995, %v2993
        %v3120 = vpack.c.b16 %v2998, %v2996
        %v3121 = vpack.c.b16 %v2999, %v2997
        %v3122 = vpack.c.b16 %v3002, %v3000
        %v3123 = vpack.c.b16 %v3003, %v3001
        %v3124 = vpack.c.b16 %v3006, %v3004
        %v3125 = vpack.c.b16 %v3007, %v3005
        %v3126 = vpack.c.b16 %v3010, %v3008
        %v3127 = vpack.c.b16 %v3011, %v3009
        %v3128 = vpack.c.b16 %v3014, %v3012
        %v3129 = vpack.c.b16 %v3015, %v3013
        %v3130 = vpack.c.b16 %v3018, %v3016
        %v3131 = vpack.c.b16 %v3019, %v3017
        %v3132 = vpack.c.b16 %v3022, %v3020
        %v3133 = vpack.c.b16 %v3023, %v3021
        %v3134 = vpack.c.b16 %v3026, %v3024
        %v3135 = vpack.c.b16 %v3027, %v3025
        %v3136 = vpack.c.b16 %v3030, %v3028
        %v3137 = vpack.c.b16 %v3031, %v3029
        %v3138 = vpack.c.b16 %v3034, %v3032
        %v3139 = vpack.c.b16 %v3035, %v3033
        %v3140 = vpack.c.b16 %v3038, %v3036
        %v3141 = vpack.c.b16 %v3039, %v3037
        %v3142 = vpack.c.b16 %v3042, %v3040
        %v3143 = vpack.c.b16 %v3043, %v3041
        %v3144 = vpack.c.b16 %v3046, %v3044
        %v3145 = vpack.c.b16 %v3047, %v3045
        %v3146 = vpack.c.b16 %v3050, %v3048
        %v3147 = vpack.c.b16 %v3051, %v3049
        %v3148 = vpack.c.b16 %v3054, %v3052
        %v3149 = vpack.c.b16 %v3055, %v3053
        %v3150 = vpack.c.b16 %v3058, %v3056
        %v3151 = vpack.c.b16 %v3059, %v3057
        %v3152 = vpack.c.b16 %v3062, %v3060
        %v3153 = vpack.c.b16 %v3063, %v3061
        %v3154 = vpack.c.b16 %v3066, %v3064
        %v3155 = vpack.c.b16 %v3067, %v3065
        %v3156 = vpack.c.b16 %v3070, %v3068
        %v3157 = vpack.c.b16 %v3071, %v3069
        %v3158 = vpack.c.b16 %v3074, %v3072
        %v3159 = vpack.c.b16 %v3075, %v3073
        %v3160 = vpack.c.b16 %v3078, %v3076
        %v3161 = vpack.c.b16 %v3079, %v3077
        %v3162 = vpack.c.b16 %v3082, %v3080
        %v3163 = vpack.c.b16 %v3083, %v3081
        %v3164 = vpack.c.b16 %v3086, %v3084
        %v3165 = vpack.c.b16 %v3087, %v3085
        %v3166 = vpack.c.b16 %v3090, %v3088
        %v3167 = vpack.c.b16 %v3091, %v3089
        %v3168 = vpack.c.b16 %v3094, %v3092
        %v3169 = vpack.c.b16 %v3095, %v3093
        %v3170 = vpack.c.b16 %v3098, %v3096
        %v3171 = vpack.c.b16 %v3099, %v3097
        %v3172 = vpack.c.b16 %v3102, %v3100
        %v3173 = vpack.c.b16 %v3103, %v3101
        %v3174 = vpack.c.b16 %v3106, %v3104
        %v3175 = vpack.c.b16 %v3107, %v3105
        %v3176 = vpack.c.b16 %v3110, %v3108
        %v3177 = vpack.c.b16 %v3111, %v3109
        %v3178 = vpack.c.b16 %v3114, %v3112
        %v3179 = vpack.c.b16 %v3115, %v3113
        %3244 = vmatprep.subr.bf16.mxu0 %v3117
        %3245 = vmatpush1.bf16.msra.mxu0 %v3116
        %3246 = vmatprep.subr.bf16.mxu0 %v3119
        %3247 = vmatpush1.bf16.msra.mxu0 %v3118
        %3248 = vmatprep.subr.bf16.mxu0 %v3121
        %3249 = vmatpush1.bf16.msra.mxu0 %v3120
        %3250 = vmatprep.subr.bf16.mxu0 %v3123
        %3251 = vmatpush1.bf16.msra.mxu0 %v3122
        %3252 = vmatprep.subr.bf16.mxu0 %v3125
        %3253 = vmatpush1.bf16.msra.mxu0 %v3124
        %3254 = vmatprep.subr.bf16.mxu0 %v3127
        %3255 = vmatpush1.bf16.msra.mxu0 %v3126
        %3256 = vmatprep.subr.bf16.mxu0 %v3129
        %3257 = vmatpush1.bf16.msra.mxu0 %v3128
        %3258 = vmatprep.subr.bf16.mxu0 %v3131
        %3259 = vmatpush1.bf16.msra.mxu0 %v3130
        %3260 = vmatprep.subr.bf16.mxu0 %v3133
        %3261 = vmatpush1.bf16.msra.mxu0 %v3132
        %3262 = vmatprep.subr.bf16.mxu0 %v3135
        %3263 = vmatpush1.bf16.msra.mxu0 %v3134
        %3264 = vmatprep.subr.bf16.mxu0 %v3137
        %3265 = vmatpush1.bf16.msra.mxu0 %v3136
        %3266 = vmatprep.subr.bf16.mxu0 %v3139
        %3267 = vmatpush1.bf16.msra.mxu0 %v3138
        %3268 = vmatprep.subr.bf16.mxu0 %v3141
        %3269 = vmatpush1.bf16.msra.mxu0 %v3140
        %3270 = vmatprep.subr.bf16.mxu0 %v3143
        %3271 = vmatpush1.bf16.msra.mxu0 %v3142
        %3272 = vmatprep.subr.bf16.mxu0 %v3145
        %3273 = vmatpush1.bf16.msra.mxu0 %v3144
        %3274 = vmatprep.subr.bf16.mxu0 %v3147
        %3275 = vmatpush1.bf16.msra.mxu0 %v3146
        %3276 = vmatprep.mubr.bf16.mxu0 %v2845
        %3277 = vmatmul.mubr.bf16.gmra.mrb[0].mxu0 %v2844
        %v3278 = vpop.f32.mrb[0].mxu0
        %v3279 = vadd.f32 %v2917, %v3278
        %v3280 = vpop.f32.mrb[0].mxu0
        %v3281 = vadd.f32 %v2921, %v3280
        %v3282 = vpop.f32.mrb[0].mxu0
        %v3283 = vadd.f32 %v2917, %v3282
        %v3284 = vpop.f32.mrb[0].mxu0
        %v3285 = vadd.f32 %v2921, %v3284
        %3286 = vdwg.mxu0
        %3287 = vmatprep.subr.bf16.mxu0 %v3149
        %3288 = vmatpush1.bf16.msra.mxu0 %v3148
        %3289 = vmatprep.subr.bf16.mxu0 %v3151
        %3290 = vmatpush1.bf16.msra.mxu0 %v3150
        %3291 = vmatprep.subr.bf16.mxu0 %v3153
        %3292 = vmatpush1.bf16.msra.mxu0 %v3152
        %3293 = vmatprep.subr.bf16.mxu0 %v3155
        %3294 = vmatpush1.bf16.msra.mxu0 %v3154
        %3295 = vmatprep.subr.bf16.mxu0 %v3157
        %3296 = vmatpush1.bf16.msra.mxu0 %v3156
        %3297 = vmatprep.subr.bf16.mxu0 %v3159
        %3298 = vmatpush1.bf16.msra.mxu0 %v3158
        %3299 = vmatprep.subr.bf16.mxu0 %v3161
        %3300 = vmatpush1.bf16.msra.mxu0 %v3160
        %3301 = vmatprep.subr.bf16.mxu0 %v3163
        %3302 = vmatpush1.bf16.msra.mxu0 %v3162
        %3303 = vmatprep.subr.bf16.mxu0 %v3165
        %3304 = vmatpush1.bf16.msra.mxu0 %v3164
        %3305 = vmatprep.subr.bf16.mxu0 %v3167
        %3306 = vmatpush1.bf16.msra.mxu0 %v3166
        %3307 = vmatprep.subr.bf16.mxu0 %v3169
        %3308 = vmatpush1.bf16.msra.mxu0 %v3168
        %3309 = vmatprep.subr.bf16.mxu0 %v3171
        %3310 = vmatpush1.bf16.msra.mxu0 %v3170
        %3311 = vmatprep.subr.bf16.mxu0 %v3173
        %3312 = vmatpush1.bf16.msra.mxu0 %v3172
        %3313 = vmatprep.subr.bf16.mxu0 %v3175
        %3314 = vmatpush1.bf16.msra.mxu0 %v3174
        %3315 = vmatprep.subr.bf16.mxu0 %v3177
        %3316 = vmatpush1.bf16.msra.mxu0 %v3176
        %3317 = vmatprep.subr.bf16.mxu0 %v3179
        %3318 = vmatpush1.bf16.msra.mxu0 %v3178
        %3319 = vmatprep.mubr.bf16.mxu0 %v2847
        %3320 = vmatmul.mubr.bf16.gmra.mrb[0].mxu0 %v2846
        %v3321 = vpop.f32.mrb[0].mxu0
        %v3322 = vadd.f32 %v3279, %v3321
        %v3323 = vpop.f32.mrb[0].mxu0
        %v3324 = vadd.f32 %v3281, %v3323
        %v3325 = vpop.f32.mrb[0].mxu0
        %v3326 = vadd.f32 %v3283, %v3325
        %v3327 = vpop.f32.mrb[0].mxu0
        %v3328 = vadd.f32 %v3285, %v3327
        %3329 = vdwg.mxu0
        %v3330 = vld [vmem:[%s6] sm:$0x3]
        %v3332 = vlaneseq
        %v3333 = vshrl.u32 %v3332, 7
        %v3334 = vsub.s32 0, %v3333
        %v3335 = vrot.slane %v3330, %v3334
        %v3336 = vlaneseq
        %v3337 = vshrl.u32 %v3336, 7
        %v3338 = vsub.s32 1, %v3337
        %v3339 = vrot.slane %v3330, %v3338
        %v3342 = vmul.f32 %v3322, %v3335
        %v3343 = vmul.f32 %v3324, %v3339
        %v3344 = vmul.f32 %v3326, %v3335
        %v3345 = vmul.f32 %v3328, %v3339
        %v3346 = vand.u32 2147483647, %v3342
        %vm3347 = vcmp.le.f32.partialorder %v3346, 0.7853982
        %vm3348 = vcmp.lt.s32.totalorder %v3342, 0
        %v3349 = vand.u32 %v3342, 2139095040
        %v3350 = vshrl.u32 %v3349, 23
        %v3351 = vsub.s32 %v3350, 127
        %v3352 = vand.u32 2147483647, %v3342
        %v3353 = vand.u32 %v3352, 8388607
        %v3354 = vor.u32 %v3353, 8388608
        %v3355 = vsub.s32 0, %v3354
        %v3356 = vadd.s32 %v3351, 1
        %vm3357 = vcmp.gt.s32.totalorder %v3356, 0
        %v3358 = vsel %vm3357, %v3356, 0
        %v3359 = vshrl.u32 %v3358, 5
        %v3360 = vand.u32 %v3358, 31
        %v3361 = vsub.s32 32, %v3360
        %v3362 = vshrl.u32 683565275, %v3361
        %v3363 = vshll.u32 683565275, %v3360
        %v3364 = vshrl.u32 2475754826, %v3361
        %v3365 = vor.u32 %v3363, %v3364
        %v3366 = vshll.u32 2475754826, %v3360
        %v3367 = vshrl.u32 2131351028, %v3361
        %v3368 = vor.u32 %v3366, %v3367
        %v3369 = vshll.u32 2131351028, %v3360
        %v3370 = vshrl.u32 2102212464, %v3361
        %v3371 = vor.u32 %v3369, %v3370
        %v3372 = vshll.u32 2102212464, %v3360
        %v3373 = vshrl.u32 920167782, %v3361
        %v3374 = vor.u32 %v3372, %v3373
        %v3375 = vshll.u32 920167782, %v3360
        %v3376 = vshrl.u32 1326507024, %v3361
        %v3377 = vor.u32 %v3375, %v3376
        %vm3378 = vcmp.lt.s32.totalorder %v3359, 1
        %vm3379 = vcmp.lt.s32.totalorder %v3359, 2
        %vm3380 = vcmp.lt.s32.totalorder %v3359, 3
        %vm3381 = vcmp.lt.s32.totalorder %v3359, 4
        %v3382 = vsel %vm3378, %v3362, %v3365
        %v3383 = vsel %vm3381, %v3371, 2102212464
        %v3384 = vsel %vm3380, %v3368, %v3383
        %v3385 = vsel %vm3379, %v3382, %v3384
        %v3386 = vsel %vm3378, %v3365, %v3368
        %v3387 = vsel %vm3381, %v3374, 920167782
        %v3388 = vsel %vm3380, %v3371, %v3387
        %v3389 = vsel %vm3379, %v3386, %v3388
        %v3390 = vsel %vm3378, %v3368, %v3371
        %v3391 = vsel %vm3381, %v3377, 1326507024
        %v3392 = vsel %vm3380, %v3374, %v3391
        %v3393 = vsel %vm3379, %v3390, %v3392
        %v3394 = vshll.u32 %v3354, 8
        %v3395 = vmul.u32.u64.compose %v3394, %v3393
        %v3396 = vextract.low.u32 %v3395
        %v3397 = vextract.high.u32 %v3395
        %v3398 = vmul.u32.u64.compose %v3394, %v3389
        %v3399 = vextract.low.u32 %v3398
        %v3400 = vextract.high.u32 %v3398
        %v3401 = vmul.u32 %v3394, %v3385
        %v3402 = vadd.s32 %v3397, %v3399
        %vm3403 = vc.u32 %v3397, %v3399
        %v3404 = vadd.s32 %v3400, 1
        %v3405 = vsel %vm3403, %v3404, %v3400
        %v3406 = vadd.s32 %v3401, %v3405
        %v3407 = vadd.s32 %v3406, 536870912
        %v3408 = vshrl.u32 %v3407, 30
        %v3409 = vshll.u32 %v3408, 30
        %v3410 = vsub.s32 %v3406, %v3409
        %vm3411 = vcmp.lt.s32.totalorder %v3410, 0
        %v3412 = vsub.s32 0, %v3410
        %v3413 = vsel %vm3411, %v3412, %v3410
        %v3414 = vclz %v3413
        %v3415 = vsub.s32 %v3414, 2
        %vm3416 = vcmp.gt.s32.totalorder 0, %v3415
        %v3417 = vsel %vm3416, 0, %v3415
        %v3418 = vsub.s32 32, %v3417
        %v3419 = vshll.u32 %v3410, %v3417
        %v3420 = vshrl.u32 %v3402, %v3418
        %v3421 = vor.u32 %v3419, %v3420
        %v3422 = vsub.s32 4294967266, %v3417
        %v3423 = vadd.s32 %v3422, 127
        %v3424 = vshll.u32 %v3423, 23
        %v3425 = vor.u32 4788187, %v3424
        %v3426 = vand.u32 2147483647, %v3425
        %v3428 = vcvt.s32.f32 %v3421
        %v3429 = vmul.f32 %v3428, %v3426
        %v3430 = vxor.u32 %v3429, 2147483648
        %v3431 = vsel %vm3348, %v3430, %v3429
        %v3432 = vsub.s32 4, %v3408
        %v3433 = vsel %vm3348, %v3432, %v3408
        %v3434 = vsel %vm3347, %v3342, %v3431
        %v3435 = vsel %vm3347, 0, %v3433
        %v3436 = vcosq.f32.pop %v3434
        %v3437 = vsinq.f32.pop %v3434
        %vm3438 = vweird.f32 %v3342
        %v3439 = vadd.s32 %v3435, 3
        %v3440 = vand.u32 %v3439, 3
        %vm3441 = vcmp.lt.s32.totalorder %v3440, 2
        %vm3442 = vcmp.eq.s32.totalorder %v3440, 0
        %v3443 = vxor.u32 %v3437, 2147483648
        %v3444 = vsel %vm3442, %v3436, %v3443
        %vm3445 = vcmp.eq.s32.totalorder %v3440, 2
        %v3446 = vxor.u32 %v3436, 2147483648
        %v3447 = vsel %vm3445, %v3446, %v3437
        %v3448 = vsel %vm3441, %v3444, %v3447
        %v3449 = vsel %vm3438, nan, %v3448
        %v3450 = vand.u32 2147483647, %v3343
        %vm3451 = vcmp.le.f32.partialorder %v3450, 0.7853982
        %vm3452 = vcmp.lt.s32.totalorder %v3343, 0
        %v3453 = vand.u32 %v3343, 2139095040
        %v3454 = vshrl.u32 %v3453, 23
        %v3455 = vsub.s32 %v3454, 127
        %v3456 = vand.u32 2147483647, %v3343
        %v3457 = vand.u32 %v3456, 8388607
        %v3458 = vor.u32 %v3457, 8388608
        %v3459 = vsub.s32 0, %v3458
        %v3460 = vadd.s32 %v3455, 1
        %vm3461 = vcmp.gt.s32.totalorder %v3460, 0
        %v3462 = vsel %vm3461, %v3460, 0
        %v3463 = vshrl.u32 %v3462, 5
        %v3464 = vand.u32 %v3462, 31
        %v3465 = vsub.s32 32, %v3464
        %v3466 = vshrl.u32 683565275, %v3465
        %v3467 = vshll.u32 683565275, %v3464
        %v3468 = vshrl.u32 2475754826, %v3465
        %v3469 = vor.u32 %v3467, %v3468
        %v3470 = vshll.u32 2475754826, %v3464
        %v3471 = vshrl.u32 2131351028, %v3465
        %v3472 = vor.u32 %v3470, %v3471
        %v3473 = vshll.u32 2131351028, %v3464
        %v3474 = vshrl.u32 2102212464, %v3465
        %v3475 = vor.u32 %v3473, %v3474
        %v3476 = vshll.u32 2102212464, %v3464
        %v3477 = vshrl.u32 920167782, %v3465
        %v3478 = vor.u32 %v3476, %v3477
        %v3479 = vshll.u32 920167782, %v3464
        %v3480 = vshrl.u32 1326507024, %v3465
        %v3481 = vor.u32 %v3479, %v3480
        %vm3482 = vcmp.lt.s32.totalorder %v3463, 1
        %vm3483 = vcmp.lt.s32.totalorder %v3463, 2
        %vm3484 = vcmp.lt.s32.totalorder %v3463, 3
        %vm3485 = vcmp.lt.s32.totalorder %v3463, 4
        %v3486 = vsel %vm3482, %v3466, %v3469
        %v3487 = vsel %vm3485, %v3475, 2102212464
        %v3488 = vsel %vm3484, %v3472, %v3487
        %v3489 = vsel %vm3483, %v3486, %v3488
        %v3490 = vsel %vm3482, %v3469, %v3472
        %v3491 = vsel %vm3485, %v3478, 920167782
        %v3492 = vsel %vm3484, %v3475, %v3491
        %v3493 = vsel %vm3483, %v3490, %v3492
        %v3494 = vsel %vm3482, %v3472, %v3475
        %v3495 = vsel %vm3485, %v3481, 1326507024
        %v3496 = vsel %vm3484, %v3478, %v3495
        %v3497 = vsel %vm3483, %v3494, %v3496
        %v3498 = vshll.u32 %v3458, 8
        %v3499 = vmul.u32.u64.compose %v3498, %v3497
        %v3500 = vextract.low.u32 %v3499
        %v3501 = vextract.high.u32 %v3499
        %v3502 = vmul.u32.u64.compose %v3498, %v3493
        %v3503 = vextract.low.u32 %v3502
        %v3504 = vextract.high.u32 %v3502
        %v3505 = vmul.u32 %v3498, %v3489
        %v3506 = vadd.s32 %v3501, %v3503
        %vm3507 = vc.u32 %v3501, %v3503
        %v3508 = vadd.s32 %v3504, 1
        %v3509 = vsel %vm3507, %v3508, %v3504
        %v3510 = vadd.s32 %v3505, %v3509
        %v3511 = vadd.s32 %v3510, 536870912
        %v3512 = vshrl.u32 %v3511, 30
        %v3513 = vshll.u32 %v3512, 30
        %v3514 = vsub.s32 %v3510, %v3513
        %vm3515 = vcmp.lt.s32.totalorder %v3514, 0
        %v3516 = vsub.s32 0, %v3514
        %v3517 = vsel %vm3515, %v3516, %v3514
        %v3518 = vclz %v3517
        %v3519 = vsub.s32 %v3518, 2
        %vm3520 = vcmp.gt.s32.totalorder 0, %v3519
        %v3521 = vsel %vm3520, 0, %v3519
        %v3522 = vsub.s32 32, %v3521
        %v3523 = vshll.u32 %v3514, %v3521
        %v3524 = vshrl.u32 %v3506, %v3522
        %v3525 = vor.u32 %v3523, %v3524
        %v3526 = vsub.s32 4294967266, %v3521
        %v3527 = vadd.s32 %v3526, 127
        %v3528 = vshll.u32 %v3527, 23
        %v3529 = vor.u32 4788187, %v3528
        %v3530 = vand.u32 2147483647, %v3529
        %v3532 = vcvt.s32.f32 %v3525
        %v3533 = vmul.f32 %v3532, %v3530
        %v3534 = vxor.u32 %v3533, 2147483648
        %v3535 = vsel %vm3452, %v3534, %v3533
        %v3536 = vsub.s32 4, %v3512
        %v3537 = vsel %vm3452, %v3536, %v3512
        %v3538 = vsel %vm3451, %v3343, %v3535
        %v3539 = vsel %vm3451, 0, %v3537
        %v3540 = vcosq.f32.pop %v3538
        %v3541 = vsinq.f32.pop %v3538
        %vm3542 = vweird.f32 %v3343
        %v3543 = vadd.s32 %v3539, 3
        %v3544 = vand.u32 %v3543, 3
        %vm3545 = vcmp.lt.s32.totalorder %v3544, 2
        %vm3546 = vcmp.eq.s32.totalorder %v3544, 0
        %v3547 = vxor.u32 %v3541, 2147483648
        %v3548 = vsel %vm3546, %v3540, %v3547
        %vm3549 = vcmp.eq.s32.totalorder %v3544, 2
        %v3550 = vxor.u32 %v3540, 2147483648
        %v3551 = vsel %vm3549, %v3550, %v3541
        %v3552 = vsel %vm3545, %v3548, %v3551
        %v3553 = vsel %vm3542, nan, %v3552
        %v3554 = vand.u32 2147483647, %v3344
        %vm3555 = vcmp.le.f32.partialorder %v3554, 0.7853982
        %vm3556 = vcmp.lt.s32.totalorder %v3344, 0
        %v3557 = vand.u32 %v3344, 2139095040
        %v3558 = vshrl.u32 %v3557, 23
        %v3559 = vsub.s32 %v3558, 127
        %v3560 = vand.u32 2147483647, %v3344
        %v3561 = vand.u32 %v3560, 8388607
        %v3562 = vor.u32 %v3561, 8388608
        %v3563 = vsub.s32 0, %v3562
        %v3564 = vadd.s32 %v3559, 1
        %vm3565 = vcmp.gt.s32.totalorder %v3564, 0
        %v3566 = vsel %vm3565, %v3564, 0
        %v3567 = vshrl.u32 %v3566, 5
        %v3568 = vand.u32 %v3566, 31
        %v3569 = vsub.s32 32, %v3568
        %v3570 = vshrl.u32 683565275, %v3569
        %v3571 = vshll.u32 683565275, %v3568
        %v3572 = vshrl.u32 2475754826, %v3569
        %v3573 = vor.u32 %v3571, %v3572
        %v3574 = vshll.u32 2475754826, %v3568
        %v3575 = vshrl.u32 2131351028, %v3569
        %v3576 = vor.u32 %v3574, %v3575
        %v3577 = vshll.u32 2131351028, %v3568
        %v3578 = vshrl.u32 2102212464, %v3569
        %v3579 = vor.u32 %v3577, %v3578
        %v3580 = vshll.u32 2102212464, %v3568
        %v3581 = vshrl.u32 920167782, %v3569
        %v3582 = vor.u32 %v3580, %v3581
        %v3583 = vshll.u32 920167782, %v3568
        %v3584 = vshrl.u32 1326507024, %v3569
        %v3585 = vor.u32 %v3583, %v3584
        %vm3586 = vcmp.lt.s32.totalorder %v3567, 1
        %vm3587 = vcmp.lt.s32.totalorder %v3567, 2
        %vm3588 = vcmp.lt.s32.totalorder %v3567, 3
        %vm3589 = vcmp.lt.s32.totalorder %v3567, 4
        %v3590 = vsel %vm3586, %v3570, %v3573
        %v3591 = vsel %vm3589, %v3579, 2102212464
        %v3592 = vsel %vm3588, %v3576, %v3591
        %v3593 = vsel %vm3587, %v3590, %v3592
        %v3594 = vsel %vm3586, %v3573, %v3576
        %v3595 = vsel %vm3589, %v3582, 920167782
        %v3596 = vsel %vm3588, %v3579, %v3595
        %v3597 = vsel %vm3587, %v3594, %v3596
        %v3598 = vsel %vm3586, %v3576, %v3579
        %v3599 = vsel %vm3589, %v3585, 1326507024
        %v3600 = vsel %vm3588, %v3582, %v3599
        %v3601 = vsel %vm3587, %v3598, %v3600
        %v3602 = vshll.u32 %v3562, 8
        %v3603 = vmul.u32.u64.compose %v3602, %v3601
        %v3604 = vextract.low.u32 %v3603
        %v3605 = vextract.high.u32 %v3603
        %v3606 = vmul.u32.u64.compose %v3602, %v3597
        %v3607 = vextract.low.u32 %v3606
        %v3608 = vextract.high.u32 %v3606
        %v3609 = vmul.u32 %v3602, %v3593
        %v3610 = vadd.s32 %v3605, %v3607
        %vm3611 = vc.u32 %v3605, %v3607
        %v3612 = vadd.s32 %v3608, 1
        %v3613 = vsel %vm3611, %v3612, %v3608
        %v3614 = vadd.s32 %v3609, %v3613
        %v3615 = vadd.s32 %v3614, 536870912
        %v3616 = vshrl.u32 %v3615, 30
        %v3617 = vshll.u32 %v3616, 30
        %v3618 = vsub.s32 %v3614, %v3617
        %vm3619 = vcmp.lt.s32.totalorder %v3618, 0
        %v3620 = vsub.s32 0, %v3618
        %v3621 = vsel %vm3619, %v3620, %v3618
        %v3622 = vclz %v3621
        %v3623 = vsub.s32 %v3622, 2
        %vm3624 = vcmp.gt.s32.totalorder 0, %v3623
        %v3625 = vsel %vm3624, 0, %v3623
        %v3626 = vsub.s32 32, %v3625
        %v3627 = vshll.u32 %v3618, %v3625
        %v3628 = vshrl.u32 %v3610, %v3626
        %v3629 = vor.u32 %v3627, %v3628
        %v3630 = vsub.s32 4294967266, %v3625
        %v3631 = vadd.s32 %v3630, 127
        %v3632 = vshll.u32 %v3631, 23
        %v3633 = vor.u32 4788187, %v3632
        %v3634 = vand.u32 2147483647, %v3633
        %v3636 = vcvt.s32.f32 %v3629
        %v3637 = vmul.f32 %v3636, %v3634
        %v3638 = vxor.u32 %v3637, 2147483648
        %v3639 = vsel %vm3556, %v3638, %v3637
        %v3640 = vsub.s32 4, %v3616
        %v3641 = vsel %vm3556, %v3640, %v3616
        %v3642 = vsel %vm3555, %v3344, %v3639
        %v3643 = vsel %vm3555, 0, %v3641
        %v3644 = vcosq.f32.pop %v3642
        %v3645 = vsinq.f32.pop %v3642
        %vm3646 = vweird.f32 %v3344
        %v3647 = vadd.s32 %v3643, 3
        %v3648 = vand.u32 %v3647, 3
        %vm3649 = vcmp.lt.s32.totalorder %v3648, 2
        %vm3650 = vcmp.eq.s32.totalorder %v3648, 0
        %v3651 = vxor.u32 %v3645, 2147483648
        %v3652 = vsel %vm3650, %v3644, %v3651
        %vm3653 = vcmp.eq.s32.totalorder %v3648, 2
        %v3654 = vxor.u32 %v3644, 2147483648
        %v3655 = vsel %vm3653, %v3654, %v3645
        %v3656 = vsel %vm3649, %v3652, %v3655
        %v3657 = vsel %vm3646, nan, %v3656
        %v3658 = vand.u32 2147483647, %v3345
        %vm3659 = vcmp.le.f32.partialorder %v3658, 0.7853982
        %vm3660 = vcmp.lt.s32.totalorder %v3345, 0
        %v3661 = vand.u32 %v3345, 2139095040
        %v3662 = vshrl.u32 %v3661, 23
        %v3663 = vsub.s32 %v3662, 127
        %v3664 = vand.u32 2147483647, %v3345
        %v3665 = vand.u32 %v3664, 8388607
        %v3666 = vor.u32 %v3665, 8388608
        %v3667 = vsub.s32 0, %v3666
        %v3668 = vadd.s32 %v3663, 1
        %vm3669 = vcmp.gt.s32.totalorder %v3668, 0
        %v3670 = vsel %vm3669, %v3668, 0
        %v3671 = vshrl.u32 %v3670, 5
        %v3672 = vand.u32 %v3670, 31
        %v3673 = vsub.s32 32, %v3672
        %v3674 = vshrl.u32 683565275, %v3673
        %v3675 = vshll.u32 683565275, %v3672
        %v3676 = vshrl.u32 2475754826, %v3673
        %v3677 = vor.u32 %v3675, %v3676
        %v3678 = vshll.u32 2475754826, %v3672
        %v3679 = vshrl.u32 2131351028, %v3673
        %v3680 = vor.u32 %v3678, %v3679
        %v3681 = vshll.u32 2131351028, %v3672
        %v3682 = vshrl.u32 2102212464, %v3673
        %v3683 = vor.u32 %v3681, %v3682
        %v3684 = vshll.u32 2102212464, %v3672
        %v3685 = vshrl.u32 920167782, %v3673
        %v3686 = vor.u32 %v3684, %v3685
        %v3687 = vshll.u32 920167782, %v3672
        %v3688 = vshrl.u32 1326507024, %v3673
        %v3689 = vor.u32 %v3687, %v3688
        %vm3690 = vcmp.lt.s32.totalorder %v3671, 1
        %vm3691 = vcmp.lt.s32.totalorder %v3671, 2
        %vm3692 = vcmp.lt.s32.totalorder %v3671, 3
        %vm3693 = vcmp.lt.s32.totalorder %v3671, 4
        %v3694 = vsel %vm3690, %v3674, %v3677
        %v3695 = vsel %vm3693, %v3683, 2102212464
        %v3696 = vsel %vm3692, %v3680, %v3695
        %v3697 = vsel %vm3691, %v3694, %v3696
        %v3698 = vsel %vm3690, %v3677, %v3680
        %v3699 = vsel %vm3693, %v3686, 920167782
        %v3700 = vsel %vm3692, %v3683, %v3699
        %v3701 = vsel %vm3691, %v3698, %v3700
        %v3702 = vsel %vm3690, %v3680, %v3683
        %v3703 = vsel %vm3693, %v3689, 1326507024
        %v3704 = vsel %vm3692, %v3686, %v3703
        %v3705 = vsel %vm3691, %v3702, %v3704
        %v3706 = vshll.u32 %v3666, 8
        %v3707 = vmul.u32.u64.compose %v3706, %v3705
        %v3708 = vextract.low.u32 %v3707
        %v3709 = vextract.high.u32 %v3707
        %v3710 = vmul.u32.u64.compose %v3706, %v3701
        %v3711 = vextract.low.u32 %v3710
        %v3712 = vextract.high.u32 %v3710
        %v3713 = vmul.u32 %v3706, %v3697
        %v3714 = vadd.s32 %v3709, %v3711
        %vm3715 = vc.u32 %v3709, %v3711
        %v3716 = vadd.s32 %v3712, 1
        %v3717 = vsel %vm3715, %v3716, %v3712
        %v3718 = vadd.s32 %v3713, %v3717
        %v3719 = vadd.s32 %v3718, 536870912
        %v3720 = vshrl.u32 %v3719, 30
        %v3721 = vshll.u32 %v3720, 30
        %v3722 = vsub.s32 %v3718, %v3721
        %vm3723 = vcmp.lt.s32.totalorder %v3722, 0
        %v3724 = vsub.s32 0, %v3722
        %v3725 = vsel %vm3723, %v3724, %v3722
        %v3726 = vclz %v3725
        %v3727 = vsub.s32 %v3726, 2
        %vm3728 = vcmp.gt.s32.totalorder 0, %v3727
        %v3729 = vsel %vm3728, 0, %v3727
        %v3730 = vsub.s32 32, %v3729
        %v3731 = vshll.u32 %v3722, %v3729
        %v3732 = vshrl.u32 %v3714, %v3730
        %v3733 = vor.u32 %v3731, %v3732
        %v3734 = vsub.s32 4294967266, %v3729
        %v3735 = vadd.s32 %v3734, 127
        %v3736 = vshll.u32 %v3735, 23
        %v3737 = vor.u32 4788187, %v3736
        %v3738 = vand.u32 2147483647, %v3737
        %v3740 = vcvt.s32.f32 %v3733
        %v3741 = vmul.f32 %v3740, %v3738
        %v3742 = vxor.u32 %v3741, 2147483648
        %v3743 = vsel %vm3660, %v3742, %v3741
        %v3744 = vsub.s32 4, %v3720
        %v3745 = vsel %vm3660, %v3744, %v3720
        %v3746 = vsel %vm3659, %v3345, %v3743
        %v3747 = vsel %vm3659, 0, %v3745
        %v3748 = vcosq.f32.pop %v3746
        %v3749 = vsinq.f32.pop %v3746
        %vm3750 = vweird.f32 %v3345
        %v3751 = vadd.s32 %v3747, 3
        %v3752 = vand.u32 %v3751, 3
        %vm3753 = vcmp.lt.s32.totalorder %v3752, 2
        %vm3754 = vcmp.eq.s32.totalorder %v3752, 0
        %v3755 = vxor.u32 %v3749, 2147483648
        %v3756 = vsel %vm3754, %v3748, %v3755
        %vm3757 = vcmp.eq.s32.totalorder %v3752, 2
        %v3758 = vxor.u32 %v3748, 2147483648
        %v3759 = vsel %vm3757, %v3758, %v3749
        %v3760 = vsel %vm3753, %v3756, %v3759
        %v3761 = vsel %vm3750, nan, %v3760
        %v3762 = vmul.f32 %v3322, 0.1
        %v3763 = vmul.f32 %v3324, 0.1
        %v3764 = vmul.f32 %v3326, 0.1
        %v3765 = vmul.f32 %v3328, 0.1
        %v3766 = vadd.f32 %v3449, %v3762
        %v3767 = vadd.f32 %v3553, %v3763
        %v3768 = vadd.f32 %v3657, %v3764
        %v3769 = vadd.f32 %v3761, %v3765
        %v3770 = vpack.c.bf16 %v3768, %v3766
        %v3771 = vpack.c.bf16 %v3769, %v3767
        %v3772 = vld [vmem:[#allocation8] sm:$0xf]
        %v3773 = vld [vmem:[#allocation8 + $0x4] sm:$0xf]
        %v3774 = vld [vmem:[#allocation8 + $0x8] sm:$0xf]
        %v3775 = vld [vmem:[#allocation8 + $0xc] sm:$0xf]
        %v3776 = vld [vmem:[#allocation8 + $0x10] sm:$0xf]
        %v3777 = vld [vmem:[#allocation8 + $0x14] sm:$0xf]
        %v3778 = vld [vmem:[#allocation8 + $0x18] sm:$0xf]
        %v3779 = vld [vmem:[#allocation8 + $0x1c] sm:$0xf]
        %v3780 = vld [vmem:[#allocation8 + $0x20] sm:$0xf]
        %v3781 = vld [vmem:[#allocation8 + $0x24] sm:$0xf]
        %v3782 = vld [vmem:[#allocation8 + $0x28] sm:$0xf]
        %v3783 = vld [vmem:[#allocation8 + $0x2c] sm:$0xf]
        %v3784 = vld [vmem:[#allocation8 + $0x30] sm:$0xf]
        %v3785 = vld [vmem:[#allocation8 + $0x34] sm:$0xf]
        %v3786 = vld [vmem:[#allocation8 + $0x38] sm:$0xf]
        %v3787 = vld [vmem:[#allocation8 + $0x3c] sm:$0xf]
        %v3788 = vld [vmem:[#allocation8 + $0x40] sm:$0xf]
        %v3789 = vld [vmem:[#allocation8 + $0x44] sm:$0xf]
        %v3790 = vld [vmem:[#allocation8 + $0x48] sm:$0xf]
        %v3791 = vld [vmem:[#allocation8 + $0x4c] sm:$0xf]
        %v3792 = vld [vmem:[#allocation8 + $0x50] sm:$0xf]
        %v3793 = vld [vmem:[#allocation8 + $0x54] sm:$0xf]
        %v3794 = vld [vmem:[#allocation8 + $0x58] sm:$0xf]
        %v3795 = vld [vmem:[#allocation8 + $0x5c] sm:$0xf]
        %v3796 = vld [vmem:[#allocation8 + $0x60] sm:$0xf]
        %v3797 = vld [vmem:[#allocation8 + $0x64] sm:$0xf]
        %v3798 = vld [vmem:[#allocation8 + $0x68] sm:$0xf]
        %v3799 = vld [vmem:[#allocation8 + $0x6c] sm:$0xf]
        %v3800 = vld [vmem:[#allocation8 + $0x70] sm:$0xf]
        %v3801 = vld [vmem:[#allocation8 + $0x74] sm:$0xf]
        %v3802 = vld [vmem:[#allocation8 + $0x78] sm:$0xf]
        %v3803 = vld [vmem:[#allocation8 + $0x7c] sm:$0xf]
        %v3804 = vld [vmem:[%s8] sm:$0x1]
        %v3806 = vlaneseq
        %v3807 = vshrl.u32 %v3806, 7
        %v3808 = vsub.s32 0, %v3807
        %v3809 = vrot.slane %v3804, %v3808
        %v3843 = vunpack.c.l.b16 %v3772
        %v3844 = vunpack.c.l.b16 %v3773
        %v3845 = vunpack.c.l.b16 %v3774
        %v3846 = vunpack.c.l.b16 %v3775
        %v3847 = vunpack.c.l.b16 %v3776
        %v3848 = vunpack.c.l.b16 %v3777
        %v3849 = vunpack.c.l.b16 %v3778
        %v3850 = vunpack.c.l.b16 %v3779
        %v3851 = vunpack.c.l.b16 %v3780
        %v3852 = vunpack.c.l.b16 %v3781
        %v3853 = vunpack.c.l.b16 %v3782
        %v3854 = vunpack.c.l.b16 %v3783
        %v3855 = vunpack.c.l.b16 %v3784
        %v3856 = vunpack.c.l.b16 %v3785
        %v3857 = vunpack.c.l.b16 %v3786
        %v3858 = vunpack.c.l.b16 %v3787
        %v3859 = vunpack.c.l.b16 %v3788
        %v3860 = vunpack.c.l.b16 %v3789
        %v3861 = vunpack.c.l.b16 %v3790
        %v3862 = vunpack.c.l.b16 %v3791
        %v3863 = vunpack.c.l.b16 %v3792
        %v3864 = vunpack.c.l.b16 %v3793
        %v3865 = vunpack.c.l.b16 %v3794
        %v3866 = vunpack.c.l.b16 %v3795
        %v3867 = vunpack.c.l.b16 %v3796
        %v3868 = vunpack.c.l.b16 %v3797
        %v3869 = vunpack.c.l.b16 %v3798
        %v3870 = vunpack.c.l.b16 %v3799
        %v3871 = vunpack.c.l.b16 %v3800
        %v3872 = vunpack.c.l.b16 %v3801
        %v3873 = vunpack.c.l.b16 %v3802
        %v3874 = vunpack.c.l.b16 %v3803
        %v3875 = vpack.c.b16 %v3844, %v3843
        %v3876 = vpack.c.b16 %v3846, %v3845
        %v3877 = vpack.c.b16 %v3848, %v3847
        %v3878 = vpack.c.b16 %v3850, %v3849
        %v3879 = vpack.c.b16 %v3852, %v3851
        %v3880 = vpack.c.b16 %v3854, %v3853
        %v3881 = vpack.c.b16 %v3856, %v3855
        %v3882 = vpack.c.b16 %v3858, %v3857
        %v3883 = vpack.c.b16 %v3860, %v3859
        %v3884 = vpack.c.b16 %v3862, %v3861
        %v3885 = vpack.c.b16 %v3864, %v3863
        %v3886 = vpack.c.b16 %v3866, %v3865
        %v3887 = vpack.c.b16 %v3868, %v3867
        %v3888 = vpack.c.b16 %v3870, %v3869
        %v3889 = vpack.c.b16 %v3872, %v3871
        %v3890 = vpack.c.b16 %v3874, %v3873
        %3907 = vmatprep.subr.bf16.mxu0 0
        %3908 = vmatpush1.bf16.msra.mxu0 %v3875
        %3909 = vmatprep.subr.bf16.mxu0 0
        %3910 = vmatpush1.bf16.msra.mxu0 %v3876
        %3911 = vmatprep.subr.bf16.mxu0 0
        %3912 = vmatpush1.bf16.msra.mxu0 %v3877
        %3913 = vmatprep.subr.bf16.mxu0 0
        %3914 = vmatpush1.bf16.msra.mxu0 %v3878
        %3915 = vmatprep.subr.bf16.mxu0 0
        %3916 = vmatpush1.bf16.msra.mxu0 %v3879
        %3917 = vmatprep.subr.bf16.mxu0 0
        %3918 = vmatpush1.bf16.msra.mxu0 %v3880
        %3919 = vmatprep.subr.bf16.mxu0 0
        %3920 = vmatpush1.bf16.msra.mxu0 %v3881
        %3921 = vmatprep.subr.bf16.mxu0 0
        %3922 = vmatpush1.bf16.msra.mxu0 %v3882
        %3923 = vmatprep.subr.bf16.mxu0 0
        %3924 = vmatpush1.bf16.msra.mxu0 %v3883
        %3925 = vmatprep.subr.bf16.mxu0 0
        %3926 = vmatpush1.bf16.msra.mxu0 %v3884
        %3927 = vmatprep.subr.bf16.mxu0 0
        %3928 = vmatpush1.bf16.msra.mxu0 %v3885
        %3929 = vmatprep.subr.bf16.mxu0 0
        %3930 = vmatpush1.bf16.msra.mxu0 %v3886
        %3931 = vmatprep.subr.bf16.mxu0 0
        %3932 = vmatpush1.bf16.msra.mxu0 %v3887
        %3933 = vmatprep.subr.bf16.mxu0 0
        %3934 = vmatpush1.bf16.msra.mxu0 %v3888
        %3935 = vmatprep.subr.bf16.mxu0 0
        %3936 = vmatpush1.bf16.msra.mxu0 %v3889
        %3937 = vmatprep.subr.bf16.mxu0 0
        %3938 = vmatpush1.bf16.msra.mxu0 %v3890
        %3939 = vmatprep.mubr.bf16.mxu0 %v3771
        %3940 = vmatmul.mubr.bf16.gmra.mrb[0].mxu0 %v3770
        %v3941 = vpop.f32.mrb[0].mxu0
        %v3942 = vadd.f32 %v3809, %v3941
        %v3943 = vpop.f32.mrb[0].mxu0
        %v3944 = vpop.f32.mrb[0].mxu0
        %v3945 = vadd.f32 %v3809, %v3944
        %v3946 = vpop.f32.mrb[0].mxu0
        %3947 = vdwg.mxu0
        %3948 = vst [vmem:[%s395] sm:$0xff] %v3942
        %3949 = vst [vmem:[%s395 + $0x8] sm:$0xff] %v3945
        %s3950 = sand.u32 %s230, 1
        %s3951 = scalar_lea.sflag [#allocation4], %s3950
        %s3952 = sand.u32 %s230, 1
        %s3953 = smul.addr %s3952, 16
        %s3954 = scalar_lea.vmem [#allocation10], %s3953
        // Predicated region
        $region73: #{tpu_custom_call.1} parent=55 // pred_check
          %p3955 = pneg %p240
        $region74: #{tpu_custom_call.1} parent=55 // pred_check_branch
          %3957 = sbr.rel (%p3955) target = $region76
        $region75: #{tpu_custom_call.1} parent=55 // pred_region
          %s3958 = smul.u32 2, %s28
          %s3960 = ssub.s32 256, 256
          %3961 = vsyncadd %s3951, %s3960
          %s3962 = smul.addr %s3958, 128
          %s3963 = scalar_lea.hbm %s9, %s3962
          %s3964 = sshll.u32 %s3954, 4
          %s3965 = int_to_ptr.vmem [resolvable:$true] %s3964
          %3970 = dma.vmem_to_hbm [thread:$0]  %s3965, 256, %s3963, %s3951, 128, 128, 8
        $region76: #{tpu_custom_call.1} parent=55 // pred_fallthru
          _
      $region56: #{tpu_custom_call.1} parent=5 // pred_fallthru
        _
      %p3971 = scmp.le.s32.totalorder 2, %s23
      // Predicated region
      $region77: #{tpu_custom_call.1} parent=5 // pred_check
        %p3972 = pneg %p3971
      $region78: #{tpu_custom_call.1} parent=5 // pred_check_branch
        %3974 = sbr.rel (%p3972) target = $region80
      $region79: #{tpu_custom_call.1} parent=5 // pred_region
        %s3975 = ssub.s32 %s23, 2
        // Predicated region
        $region81: #{tpu_custom_call.1} parent=79 // pred_check
          %p3976 = pneg %p246
        $region82: #{tpu_custom_call.1} parent=79 // pred_check_branch
          %3978 = sbr.rel (%p3976) target = $region84
        $region83: #{tpu_custom_call.1} parent=79 // pred_region
          %s3979 = sand.u32 %s231, 1
          %s3980 = scalar_lea.sflag [#allocation4], %s3979
          %s3981 = sand.u32 %s231, 1
          %s3982 = smul.addr %s3981, 16
          %s3983 = scalar_lea.vmem [#allocation10], %s3982
          %3984 = dma.done %s3980, 256
        $region84: #{tpu_custom_call.1} parent=79 // pred_fallthru
          _
      $region80: #{tpu_custom_call.1} parent=5 // pred_fallthru
        _
    $region6: #{tpu_custom_call.1} parent=1 // loop_footer
      %s27 = sadd.s32 1, %s23
    $region7: #{tpu_custom_call.1} parent=1 // loop_footer_branch
      %22 = sbr.rel target = $region3
    $region8: #{tpu_custom_call.1} parent=1 // loop_exit
      _
    %3985 = vsyncpa [#allocation3], 1
    %s3986 = scalar_lea.sflag [#allocation3], 1
    %3987 = vsyncpa %s3986, 1
    %3988 = vsyncpa [#allocation6], 1
    %3989 = vsyncpa [#allocation9], 1
    %3990 = vsyncpa [#allocation4], 1
    %s3991 = scalar_lea.sflag [#allocation4], 1
    %3992 = vsyncpa %s3991, 1

</llo_original>
